<compile_context>
chip_gen: v7x
topology: tpu7x:2x2x1
jax: 0.10.0
libtpu: 0.0.40
codegen_flags: <defaults>
</compile_context>

<pallas_src>
from collections import namedtuple

import jax
import jax.numpy as jnp
from jax.experimental import pallas as pl
from jax.experimental.pallas import tpu as pltpu

ModelState = namedtuple("ModelState", ["hidden", "cell"])

_GP = 128  # lanes per gate (one full lane group) -> lane-aligned gate slices


def _round_up(a, m):
    return ((a + m - 1) // m) * m


def _lstm_kernel(x_ref, h0_ref, c0_ref, wih_ref, whh_ref, b_ref,
                 y_ref, hn_ref, cn_ref):
    """One batch tile, full sequence.

    x_ref : (TB, T, Din)        f32
    h0/c0 : (TB, GP)            f32 (hidden padded to GP lanes, padding == 0)
    wih   : (Din, 4*GP)         fused input->gate weights (gate g in cols [g*GP, g*GP+H))
    whh   : (GP, 4*GP)          fused hidden->gate weights
    b     : (1, 4*GP)           fused bias (b_ih + b_hh)
    y_ref : (TB, T, GP)         outputs (padded lanes stay 0)
    hn/cn : (TB, GP)            final state
    """
    TB, T, Din = x_ref.shape
    GP = hn_ref.shape[-1]

    wih = wih_ref[...]
    whh = whh_ref[...]
    b = b_ref[...]

    # Hoisted input projection: independent of the recurrent carry, so all of
    # these dots can be scheduled/pipelined ahead of (and under) the recurrence.
    gx = [jnp.dot(x_ref[:, t, :], wih, preferred_element_type=jnp.float32) + b
          for t in range(T)]

    h = h0_ref[...]          # (TB, GP)
    c = c0_ref[...]          # (TB, GP)

    # T is static and small -> fully unrolled recurrence with constant indices
    # (equivalent to fori_loop(..., unroll=True) but with compile-time slices).
    # TODO(synk): for long sequences, switch to a chunked lax.fori_loop over T.
    for t in range(T):
        g = gx[t] + jnp.dot(h, whh, preferred_element_type=jnp.float32)  # (TB, 4*GP)
        i_g = jax.nn.sigmoid(g[:, 0 * GP:1 * GP])
        f_g = jax.nn.sigmoid(g[:, 1 * GP:2 * GP])
        g_g = jnp.tanh(g[:, 2 * GP:3 * GP])
        o_g = jax.nn.sigmoid(g[:, 3 * GP:4 * GP])
        c = f_g * c + i_g * g_g
        h = o_g * jnp.tanh(c)
        y_ref[:, t, :] = h   # lane-dense (GP-wide) store

    hn_ref[...] = h
    cn_ref[...] = c


def stateful_model_forward(x, state, w_ih, w_hh, b_ih, b_hh):
    """LSTM forward matching torch.nn.LSTM(Din, H, batch_first=True).

    x:     (B, T, Din) f32
    state: ModelState(hidden=(1, B, H), cell=(1, B, H))
    w_ih:  (4H, Din), w_hh: (4H, H), b_ih / b_hh: (4H,)   (PyTorch layout, gate order i,f,g,o)
    Returns (output (B, T, H), ModelState(hidden=(1, B, H), cell=(1, B, H))).
    """
    B, T, Din = x.shape
    H = w_hh.shape[1]
    GP = _GP

    # --- Fused, per-gate lane-padded weights (PyTorch gate order i, f, g, o). ---
    wih_g = w_ih.reshape(4, H, Din).astype(jnp.float32)
    whh_g = w_hh.reshape(4, H, H).astype(jnp.float32)
    bias = (b_ih + b_hh).reshape(4, H).astype(jnp.float32)
    wih_f = jnp.zeros((Din, 4 * GP), jnp.float32)
    whh_f = jnp.zeros((GP, 4 * GP), jnp.float32)
    b_f = jnp.zeros((1, 4 * GP), jnp.float32)
    for k in range(4):
        wih_f = wih_f.at[:, k * GP:k * GP + H].set(wih_g[k].T)
        whh_f = whh_f.at[:H, k * GP:k * GP + H].set(whh_g[k].T)
        b_f = b_f.at[0, k * GP:k * GP + H].set(bias[k])
    # Zero padding in wih_f/whh_f/b_f guarantees padded h/c lanes stay exactly 0.

    # --- Batch tiling: >=2 tiles for large B so v7x's two TCs both get work. ---
    if B <= 8:
        TB = _round_up(max(B, 1), 8)                      # single 8-sublane tile
    else:
        TB = min(256, _round_up(pl.cdiv(B, 2), 8))
    Bp = _round_up(B, TB)

    # --- Pad inputs (batch -> Bp, hidden -> GP); padding rows/lanes are zero. ---
    x_p = x.astype(jnp.float32)
    if Bp != B:
        x_p = jnp.pad(x_p, ((0, Bp - B), (0, 0), (0, 0)))
    h0_p = jnp.zeros((Bp, GP), jnp.float32).at[:B, :H].set(
        state.hidden[0].astype(jnp.float32))
    c0_p = jnp.zeros((Bp, GP), jnp.float32).at[:B, :H].set(
        state.cell[0].astype(jnp.float32))

    grid = (Bp // TB,)

    y_p, h_n, c_n = pl.pallas_call(
        _lstm_kernel,
        out_shape=(
            jax.ShapeDtypeStruct((Bp, T, GP), jnp.float32),   # output (batch-major)
            jax.ShapeDtypeStruct((Bp, GP), jnp.float32),      # h_n
            jax.ShapeDtypeStruct((Bp, GP), jnp.float32),      # c_n
        ),
        grid=grid,
        in_specs=[
            pl.BlockSpec((TB, T, Din), lambda b: (b, 0, 0)),    # x tile
            pl.BlockSpec((TB, GP), lambda b: (b, 0)),           # h0
            pl.BlockSpec((TB, GP), lambda b: (b, 0)),           # c0
            pl.BlockSpec((Din, 4 * GP), lambda b: (0, 0)),      # W_ih fused
            pl.BlockSpec((GP, 4 * GP), lambda b: (0, 0)),       # W_hh fused
            pl.BlockSpec((1, 4 * GP), lambda b: (0, 0)),        # bias fused
        ],
        out_specs=(
            pl.BlockSpec((TB, T, GP), lambda b: (b, 0, 0)),     # y tile
            pl.BlockSpec((TB, GP), lambda b: (b, 0)),           # h_n
            pl.BlockSpec((TB, GP), lambda b: (b, 0)),           # c_n
        ),
        compiler_params=pltpu.CompilerParams(
            dimension_semantics=("parallel",)),
    )(x_p, h0_p, c0_p, wih_f, whh_f, b_f)

    output = y_p[:B, :, :H]                                     # (B, T, H)
    new_state = ModelState(hidden=h_n[:B, :H][None], cell=c_n[:B, :H][None])
    return output, new_state


def _lstm_reference(x, state, w_ih, w_hh, b_ih, b_hh):
    """Pure-JAX reference with the exact PyTorch LSTM cell math."""
    B, T, Din = x.shape
    H = w_hh.shape[1]
    h, c = state.hidden[0], state.cell[0]
    ys = []
    for t in range(T):
        gates = x[:, t, :] @ w_ih.T + b_ih + h @ w_hh.T + b_hh   # (B, 4H)
        i = jax.nn.sigmoid(gates[:, 0:H])
        f = jax.nn.sigmoid(gates[:, H:2 * H])
        g = jnp.tanh(gates[:, 2 * H:3 * H])
        o = jax.nn.sigmoid(gates[:, 3 * H:4 * H])
        c = f * c + i * g
        h = o * jnp.tanh(c)
        ys.append(h)
    return jnp.stack(ys, axis=1), ModelState(hidden=h[None], cell=c[None])


if __name__ == "__main__":
    key = jax.random.PRNGKey(0)
    kx, kh, kc, k1, k2, k3, k4 = jax.random.split(key, 7)

    B, T, Din, H = 2, 8, 10, 5
    x = jax.random.normal(kx, (B, T, Din), jnp.float32)
    state = ModelState(hidden=jax.random.normal(kh, (1, B, H), jnp.float32),
                       cell=jax.random.normal(kc, (1, B, H), jnp.float32))

    lim = float(1.0 / (H ** 0.5))     # PyTorch LSTM default init range
    w_ih = jax.random.uniform(k1, (4 * H, Din), jnp.float32, -lim, lim)
    w_hh = jax.random.uniform(k2, (4 * H, H), jnp.float32, -lim, lim)
    b_ih = jax.random.uniform(k3, (4 * H,), jnp.float32, -lim, lim)
    b_hh = jax.random.uniform(k4, (4 * H,), jnp.float32, -lim, lim)

    fwd = jax.jit(stateful_model_forward)
    out, new_state = fwd(x, state, w_ih, w_hh, b_ih, b_hh)
    jax.block_until_ready((out, new_state))

    out_ref, ref_state = _lstm_reference(x, state, w_ih, w_hh, b_ih, b_hh)
    assert out.shape == (B, T, H), f"bad output shape {out.shape}"
    assert jnp.allclose(out, out_ref, atol=1e-4), "output mismatch"
    assert jnp.allclose(new_state.hidden, ref_state.hidden, atol=1e-4), "hidden mismatch"
    assert jnp.allclose(new_state.cell, ref_state.cell, atol=1e-4), "cell mismatch"

    print("KERNEL_OK")
</pallas_src>

<mosaic_0001>
module attributes {stable_mosaic.version = 11 : i64} {
  func.func @_lstm_kernel(%arg0: i32, %arg1: memref<8x8x10xf32, #tpu.memory_space<vmem>>, %arg2: memref<8x128xf32, #tpu.memory_space<vmem>>, %arg3: memref<8x128xf32, #tpu.memory_space<vmem>>, %arg4: memref<10x512xf32, #tpu.memory_space<vmem>>, %arg5: memref<128x512xf32, #tpu.memory_space<vmem>>, %arg6: memref<1x512xf32, #tpu.memory_space<vmem>>, %arg7: memref<8x8x128xf32, #tpu.memory_space<vmem>>, %arg8: memref<8x128xf32, #tpu.memory_space<vmem>>, %arg9: memref<8x128xf32, #tpu.memory_space<vmem>>) attributes {dimension_semantics = [#tpu.dimension_semantics<parallel>], iteration_bounds = array<i64: 1>, scalar_prefetch = 0 : i64, scratch_operands = 0 : i64, tpu.core_type = #tpu.core_type<tc>, window_params = [{transform_indices = @transform_0, window_bounds = array<i64: 8, 8, 10>}, {transform_indices = @transform_1, window_bounds = array<i64: 8, 128>}, {transform_indices = @transform_2, window_bounds = array<i64: 8, 128>}, {pipeline_mode = #tpu.pipeline_mode<synchronous>, transform_indices = @transform_3, window_bounds = array<i64: 10, 512>}, {pipeline_mode = #tpu.pipeline_mode<synchronous>, transform_indices = @transform_4, window_bounds = array<i64: 128, 512>}, {pipeline_mode = #tpu.pipeline_mode<synchronous>, transform_indices = @transform_5, window_bounds = array<i64: 1, 512>}, {transform_indices = @transform_6, window_bounds = array<i64: 8, 8, 128>}, {transform_indices = @transform_7, window_bounds = array<i64: 8, 128>}, {transform_indices = @transform_8, window_bounds = array<i64: 8, 128>}]} {
    %c0 = arith.constant 0 : index
    %c0_0 = arith.constant 0 : index
    %0 = vector.load %arg4[%c0, %c0_0] : memref<10x512xf32, #tpu.memory_space<vmem>>, vector<10x512xf32>
    %c0_1 = arith.constant 0 : index
    %c0_2 = arith.constant 0 : index
    %1 = vector.load %arg5[%c0_1, %c0_2] : memref<128x512xf32, #tpu.memory_space<vmem>>, vector<128x512xf32>
    %c0_3 = arith.constant 0 : index
    %c0_4 = arith.constant 0 : index
    %2 = vector.load %arg6[%c0_3, %c0_4] : memref<1x512xf32, #tpu.memory_space<vmem>>, vector<1x512xf32>
    %c0_5 = arith.constant 0 : index
    %c0_6 = arith.constant 0 : index
    %c0_7 = arith.constant 0 : index
    %3 = vector.load %arg1[%c0_5, %c0_6, %c0_7] : memref<8x8x10xf32, #tpu.memory_space<vmem>>, vector<8x1x10xf32>
    %4 = vector.shape_cast %3 : vector<8x1x10xf32> to vector<8x10xf32>
    %cst = arith.constant dense<0.000000e+00> : vector<8x512xf32>
    %5 = tpu.matmul %4, %0, %cst {dimension_numbers = #tpu.dot_dimension_numbers<[1], [0], [0], [1], [0, 0, 1, 1], [], []>} : vector<8x10xf32>, vector<10x512xf32>, vector<8x512xf32> -> vector<8x512xf32>
    %6 = vector.broadcast %2 : vector<1x512xf32> to vector<8x512xf32>
    %7 = arith.addf %5, %6 : vector<8x512xf32>
    %c0_8 = arith.constant 0 : index
    %c1 = arith.constant 1 : index
    %c0_9 = arith.constant 0 : index
    %8 = vector.load %arg1[%c0_8, %c1, %c0_9] : memref<8x8x10xf32, #tpu.memory_space<vmem>>, vector<8x1x10xf32>
    %9 = vector.shape_cast %8 : vector<8x1x10xf32> to vector<8x10xf32>
    %cst_10 = arith.constant dense<0.000000e+00> : vector<8x512xf32>
    %10 = tpu.matmul %9, %0, %cst_10 {dimension_numbers = #tpu.dot_dimension_numbers<[1], [0], [0], [1], [0, 0, 1, 1], [], []>} : vector<8x10xf32>, vector<10x512xf32>, vector<8x512xf32> -> vector<8x512xf32>
    %11 = vector.broadcast %2 : vector<1x512xf32> to vector<8x512xf32>
    %12 = arith.addf %10, %11 : vector<8x512xf32>
    %c0_11 = arith.constant 0 : index
    %c2 = arith.constant 2 : index
    %c0_12 = arith.constant 0 : index
    %13 = vector.load %arg1[%c0_11, %c2, %c0_12] : memref<8x8x10xf32, #tpu.memory_space<vmem>>, vector<8x1x10xf32>
    %14 = vector.shape_cast %13 : vector<8x1x10xf32> to vector<8x10xf32>
    %cst_13 = arith.constant dense<0.000000e+00> : vector<8x512xf32>
    %15 = tpu.matmul %14, %0, %cst_13 {dimension_numbers = #tpu.dot_dimension_numbers<[1], [0], [0], [1], [0, 0, 1, 1], [], []>} : vector<8x10xf32>, vector<10x512xf32>, vector<8x512xf32> -> vector<8x512xf32>
    %16 = vector.broadcast %2 : vector<1x512xf32> to vector<8x512xf32>
    %17 = arith.addf %15, %16 : vector<8x512xf32>
    %c0_14 = arith.constant 0 : index
    %c3 = arith.constant 3 : index
    %c0_15 = arith.constant 0 : index
    %18 = vector.load %arg1[%c0_14, %c3, %c0_15] : memref<8x8x10xf32, #tpu.memory_space<vmem>>, vector<8x1x10xf32>
    %19 = vector.shape_cast %18 : vector<8x1x10xf32> to vector<8x10xf32>
    %cst_16 = arith.constant dense<0.000000e+00> : vector<8x512xf32>
    %20 = tpu.matmul %19, %0, %cst_16 {dimension_numbers = #tpu.dot_dimension_numbers<[1], [0], [0], [1], [0, 0, 1, 1], [], []>} : vector<8x10xf32>, vector<10x512xf32>, vector<8x512xf32> -> vector<8x512xf32>
    %21 = vector.broadcast %2 : vector<1x512xf32> to vector<8x512xf32>
    %22 = arith.addf %20, %21 : vector<8x512xf32>
    %c0_17 = arith.constant 0 : index
    %c4 = arith.constant 4 : index
    %c0_18 = arith.constant 0 : index
    %23 = vector.load %arg1[%c0_17, %c4, %c0_18] : memref<8x8x10xf32, #tpu.memory_space<vmem>>, vector<8x1x10xf32>
    %24 = vector.shape_cast %23 : vector<8x1x10xf32> to vector<8x10xf32>
    %cst_19 = arith.constant dense<0.000000e+00> : vector<8x512xf32>
    %25 = tpu.matmul %24, %0, %cst_19 {dimension_numbers = #tpu.dot_dimension_numbers<[1], [0], [0], [1], [0, 0, 1, 1], [], []>} : vector<8x10xf32>, vector<10x512xf32>, vector<8x512xf32> -> vector<8x512xf32>
    %26 = vector.broadcast %2 : vector<1x512xf32> to vector<8x512xf32>
    %27 = arith.addf %25, %26 : vector<8x512xf32>
    %c0_20 = arith.constant 0 : index
    %c5 = arith.constant 5 : index
    %c0_21 = arith.constant 0 : index
    %28 = vector.load %arg1[%c0_20, %c5, %c0_21] : memref<8x8x10xf32, #tpu.memory_space<vmem>>, vector<8x1x10xf32>
    %29 = vector.shape_cast %28 : vector<8x1x10xf32> to vector<8x10xf32>
    %cst_22 = arith.constant dense<0.000000e+00> : vector<8x512xf32>
    %30 = tpu.matmul %29, %0, %cst_22 {dimension_numbers = #tpu.dot_dimension_numbers<[1], [0], [0], [1], [0, 0, 1, 1], [], []>} : vector<8x10xf32>, vector<10x512xf32>, vector<8x512xf32> -> vector<8x512xf32>
    %31 = vector.broadcast %2 : vector<1x512xf32> to vector<8x512xf32>
    %32 = arith.addf %30, %31 : vector<8x512xf32>
    %c0_23 = arith.constant 0 : index
    %c6 = arith.constant 6 : index
    %c0_24 = arith.constant 0 : index
    %33 = vector.load %arg1[%c0_23, %c6, %c0_24] : memref<8x8x10xf32, #tpu.memory_space<vmem>>, vector<8x1x10xf32>
    %34 = vector.shape_cast %33 : vector<8x1x10xf32> to vector<8x10xf32>
    %cst_25 = arith.constant dense<0.000000e+00> : vector<8x512xf32>
    %35 = tpu.matmul %34, %0, %cst_25 {dimension_numbers = #tpu.dot_dimension_numbers<[1], [0], [0], [1], [0, 0, 1, 1], [], []>} : vector<8x10xf32>, vector<10x512xf32>, vector<8x512xf32> -> vector<8x512xf32>
    %36 = vector.broadcast %2 : vector<1x512xf32> to vector<8x512xf32>
    %37 = arith.addf %35, %36 : vector<8x512xf32>
    %c0_26 = arith.constant 0 : index
    %c7 = arith.constant 7 : index
    %c0_27 = arith.constant 0 : index
    %38 = vector.load %arg1[%c0_26, %c7, %c0_27] : memref<8x8x10xf32, #tpu.memory_space<vmem>>, vector<8x1x10xf32>
    %39 = vector.shape_cast %38 : vector<8x1x10xf32> to vector<8x10xf32>
    %cst_28 = arith.constant dense<0.000000e+00> : vector<8x512xf32>
    %40 = tpu.matmul %39, %0, %cst_28 {dimension_numbers = #tpu.dot_dimension_numbers<[1], [0], [0], [1], [0, 0, 1, 1], [], []>} : vector<8x10xf32>, vector<10x512xf32>, vector<8x512xf32> -> vector<8x512xf32>
    %41 = vector.broadcast %2 : vector<1x512xf32> to vector<8x512xf32>
    %42 = arith.addf %40, %41 : vector<8x512xf32>
    %c0_29 = arith.constant 0 : index
    %c0_30 = arith.constant 0 : index
    %43 = vector.load %arg2[%c0_29, %c0_30] : memref<8x128xf32, #tpu.memory_space<vmem>>, vector<8x128xf32>
    %c0_31 = arith.constant 0 : index
    %c0_32 = arith.constant 0 : index
    %44 = vector.load %arg3[%c0_31, %c0_32] : memref<8x128xf32, #tpu.memory_space<vmem>>, vector<8x128xf32>
    %cst_33 = arith.constant dense<0.000000e+00> : vector<8x512xf32>
    %45 = tpu.matmul %43, %1, %cst_33 {dimension_numbers = #tpu.dot_dimension_numbers<[1], [0], [0], [1], [0, 0, 1, 1], [], []>} : vector<8x128xf32>, vector<128x512xf32>, vector<8x512xf32> -> vector<8x512xf32>
    %46 = arith.addf %7, %45 : vector<8x512xf32>
    %47 = vector.extract_strided_slice %46 {offsets = [0, 0], sizes = [8, 128], strides = [1, 1]} : vector<8x512xf32> to vector<8x128xf32>
    %48 = arith.negf %47 : vector<8x128xf32>
    %49 = math.exp %48 : vector<8x128xf32>
    %cst_34 = arith.constant 1.000000e+00 : f32
    %50 = vector.broadcast %cst_34 : f32 to vector<8x128xf32>
    %51 = arith.addf %50, %49 : vector<8x128xf32>
    %52 = arith.divf %50, %51 : vector<8x128xf32>
    %53 = vector.extract_strided_slice %46 {offsets = [0, 128], sizes = [8, 128], strides = [1, 1]} : vector<8x512xf32> to vector<8x128xf32>
    %54 = arith.negf %53 : vector<8x128xf32>
    %55 = math.exp %54 : vector<8x128xf32>
    %cst_35 = arith.constant 1.000000e+00 : f32
    %56 = vector.broadcast %cst_35 : f32 to vector<8x128xf32>
    %57 = arith.addf %56, %55 : vector<8x128xf32>
    %58 = arith.divf %56, %57 : vector<8x128xf32>
    %59 = vector.extract_strided_slice %46 {offsets = [0, 256], sizes = [8, 128], strides = [1, 1]} : vector<8x512xf32> to vector<8x128xf32>
    %60 = math.tanh %59 : vector<8x128xf32>
    %61 = vector.extract_strided_slice %46 {offsets = [0, 384], sizes = [8, 128], strides = [1, 1]} : vector<8x512xf32> to vector<8x128xf32>
    %62 = arith.negf %61 : vector<8x128xf32>
    %63 = math.exp %62 : vector<8x128xf32>
    %cst_36 = arith.constant 1.000000e+00 : f32
    %64 = vector.broadcast %cst_36 : f32 to vector<8x128xf32>
    %65 = arith.addf %64, %63 : vector<8x128xf32>
    %66 = arith.divf %64, %65 : vector<8x128xf32>
    %67 = arith.mulf %58, %44 : vector<8x128xf32>
    %68 = arith.mulf %52, %60 : vector<8x128xf32>
    %69 = arith.addf %67, %68 : vector<8x128xf32>
    %70 = math.tanh %69 : vector<8x128xf32>
    %71 = arith.mulf %66, %70 : vector<8x128xf32>
    %c0_37 = arith.constant 0 : index
    %c0_38 = arith.constant 0 : index
    %c0_39 = arith.constant 0 : index
    %72 = vector.load %arg7[%c0_37, %c0_38, %c0_39] : memref<8x8x128xf32, #tpu.memory_space<vmem>>, vector<8x1x128xf32>
    %73 = vector.shape_cast %72 : vector<8x1x128xf32> to vector<8x128xf32>
    %74 = vector.shape_cast %71 : vector<8x128xf32> to vector<8x1x128xf32>
    tpu.vector_store %arg7[%c0_37, %c0_38, %c0_39], %74 {strides = array<i32>} : memref<8x8x128xf32, #tpu.memory_space<vmem>>, vector<8x1x128xf32>,
    %cst_40 = arith.constant dense<0.000000e+00> : vector<8x512xf32>
    %75 = tpu.matmul %71, %1, %cst_40 {dimension_numbers = #tpu.dot_dimension_numbers<[1], [0], [0], [1], [0, 0, 1, 1], [], []>} : vector<8x128xf32>, vector<128x512xf32>, vector<8x512xf32> -> vector<8x512xf32>
    %76 = arith.addf %12, %75 : vector<8x512xf32>
    %77 = vector.extract_strided_slice %76 {offsets = [0, 0], sizes = [8, 128], strides = [1, 1]} : vector<8x512xf32> to vector<8x128xf32>
    %78 = arith.negf %77 : vector<8x128xf32>
    %79 = math.exp %78 : vector<8x128xf32>
    %cst_41 = arith.constant 1.000000e+00 : f32
    %80 = vector.broadcast %cst_41 : f32 to vector<8x128xf32>
    %81 = arith.addf %80, %79 : vector<8x128xf32>
    %82 = arith.divf %80, %81 : vector<8x128xf32>
    %83 = vector.extract_strided_slice %76 {offsets = [0, 128], sizes = [8, 128], strides = [1, 1]} : vector<8x512xf32> to vector<8x128xf32>
    %84 = arith.negf %83 : vector<8x128xf32>
    %85 = math.exp %84 : vector<8x128xf32>
    %cst_42 = arith.constant 1.000000e+00 : f32
    %86 = vector.broadcast %cst_42 : f32 to vector<8x128xf32>
    %87 = arith.addf %86, %85 : vector<8x128xf32>
    %88 = arith.divf %86, %87 : vector<8x128xf32>
    %89 = vector.extract_strided_slice %76 {offsets = [0, 256], sizes = [8, 128], strides = [1, 1]} : vector<8x512xf32> to vector<8x128xf32>
    %90 = math.tanh %89 : vector<8x128xf32>
    %91 = vector.extract_strided_slice %76 {offsets = [0, 384], sizes = [8, 128], strides = [1, 1]} : vector<8x512xf32> to vector<8x128xf32>
    %92 = arith.negf %91 : vector<8x128xf32>
    %93 = math.exp %92 : vector<8x128xf32>
    %cst_43 = arith.constant 1.000000e+00 : f32
    %94 = vector.broadcast %cst_43 : f32 to vector<8x128xf32>
    %95 = arith.addf %94, %93 : vector<8x128xf32>
    %96 = arith.divf %94, %95 : vector<8x128xf32>
    %97 = arith.mulf %88, %69 : vector<8x128xf32>
    %98 = arith.mulf %82, %90 : vector<8x128xf32>
    %99 = arith.addf %97, %98 : vector<8x128xf32>
    %100 = math.tanh %99 : vector<8x128xf32>
    %101 = arith.mulf %96, %100 : vector<8x128xf32>
    %c0_44 = arith.constant 0 : index
    %c1_45 = arith.constant 1 : index
    %c0_46 = arith.constant 0 : index
    %102 = vector.load %arg7[%c0_44, %c1_45, %c0_46] : memref<8x8x128xf32, #tpu.memory_space<vmem>>, vector<8x1x128xf32>
    %103 = vector.shape_cast %102 : vector<8x1x128xf32> to vector<8x128xf32>
    %104 = vector.shape_cast %101 : vector<8x128xf32> to vector<8x1x128xf32>
    tpu.vector_store %arg7[%c0_44, %c1_45, %c0_46], %104 {strides = array<i32>} : memref<8x8x128xf32, #tpu.memory_space<vmem>>, vector<8x1x128xf32>,
    %cst_47 = arith.constant dense<0.000000e+00> : vector<8x512xf32>
    %105 = tpu.matmul %101, %1, %cst_47 {dimension_numbers = #tpu.dot_dimension_numbers<[1], [0], [0], [1], [0, 0, 1, 1], [], []>} : vector<8x128xf32>, vector<128x512xf32>, vector<8x512xf32> -> vector<8x512xf32>
    %106 = arith.addf %17, %105 : vector<8x512xf32>
    %107 = vector.extract_strided_slice %106 {offsets = [0, 0], sizes = [8, 128], strides = [1, 1]} : vector<8x512xf32> to vector<8x128xf32>
    %108 = arith.negf %107 : vector<8x128xf32>
    %109 = math.exp %108 : vector<8x128xf32>
    %cst_48 = arith.constant 1.000000e+00 : f32
    %110 = vector.broadcast %cst_48 : f32 to vector<8x128xf32>
    %111 = arith.addf %110, %109 : vector<8x128xf32>
    %112 = arith.divf %110, %111 : vector<8x128xf32>
    %113 = vector.extract_strided_slice %106 {offsets = [0, 128], sizes = [8, 128], strides = [1, 1]} : vector<8x512xf32> to vector<8x128xf32>
    %114 = arith.negf %113 : vector<8x128xf32>
    %115 = math.exp %114 : vector<8x128xf32>
    %cst_49 = arith.constant 1.000000e+00 : f32
    %116 = vector.broadcast %cst_49 : f32 to vector<8x128xf32>
    %117 = arith.addf %116, %115 : vector<8x128xf32>
    %118 = arith.divf %116, %117 : vector<8x128xf32>
    %119 = vector.extract_strided_slice %106 {offsets = [0, 256], sizes = [8, 128], strides = [1, 1]} : vector<8x512xf32> to vector<8x128xf32>
    %120 = math.tanh %119 : vector<8x128xf32>
    %121 = vector.extract_strided_slice %106 {offsets = [0, 384], sizes = [8, 128], strides = [1, 1]} : vector<8x512xf32> to vector<8x128xf32>
    %122 = arith.negf %121 : vector<8x128xf32>
    %123 = math.exp %122 : vector<8x128xf32>
    %cst_50 = arith.constant 1.000000e+00 : f32
    %124 = vector.broadcast %cst_50 : f32 to vector<8x128xf32>
    %125 = arith.addf %124, %123 : vector<8x128xf32>
    %126 = arith.divf %124, %125 : vector<8x128xf32>
    %127 = arith.mulf %118, %99 : vector<8x128xf32>
    %128 = arith.mulf %112, %120 : vector<8x128xf32>
    %129 = arith.addf %127, %128 : vector<8x128xf32>
    %130 = math.tanh %129 : vector<8x128xf32>
    %131 = arith.mulf %126, %130 : vector<8x128xf32>
    %c0_51 = arith.constant 0 : index
    %c2_52 = arith.constant 2 : index
    %c0_53 = arith.constant 0 : index
    %132 = vector.load %arg7[%c0_51, %c2_52, %c0_53] : memref<8x8x128xf32, #tpu.memory_space<vmem>>, vector<8x1x128xf32>
    %133 = vector.shape_cast %132 : vector<8x1x128xf32> to vector<8x128xf32>
    %134 = vector.shape_cast %131 : vector<8x128xf32> to vector<8x1x128xf32>
    tpu.vector_store %arg7[%c0_51, %c2_52, %c0_53], %134 {strides = array<i32>} : memref<8x8x128xf32, #tpu.memory_space<vmem>>, vector<8x1x128xf32>,
    %cst_54 = arith.constant dense<0.000000e+00> : vector<8x512xf32>
    %135 = tpu.matmul %131, %1, %cst_54 {dimension_numbers = #tpu.dot_dimension_numbers<[1], [0], [0], [1], [0, 0, 1, 1], [], []>} : vector<8x128xf32>, vector<128x512xf32>, vector<8x512xf32> -> vector<8x512xf32>
    %136 = arith.addf %22, %135 : vector<8x512xf32>
    %137 = vector.extract_strided_slice %136 {offsets = [0, 0], sizes = [8, 128], strides = [1, 1]} : vector<8x512xf32> to vector<8x128xf32>
    %138 = arith.negf %137 : vector<8x128xf32>
    %139 = math.exp %138 : vector<8x128xf32>
    %cst_55 = arith.constant 1.000000e+00 : f32
    %140 = vector.broadcast %cst_55 : f32 to vector<8x128xf32>
    %141 = arith.addf %140, %139 : vector<8x128xf32>
    %142 = arith.divf %140, %141 : vector<8x128xf32>
    %143 = vector.extract_strided_slice %136 {offsets = [0, 128], sizes = [8, 128], strides = [1, 1]} : vector<8x512xf32> to vector<8x128xf32>
    %144 = arith.negf %143 : vector<8x128xf32>
    %145 = math.exp %144 : vector<8x128xf32>
    %cst_56 = arith.constant 1.000000e+00 : f32
    %146 = vector.broadcast %cst_56 : f32 to vector<8x128xf32>
    %147 = arith.addf %146, %145 : vector<8x128xf32>
    %148 = arith.divf %146, %147 : vector<8x128xf32>
    %149 = vector.extract_strided_slice %136 {offsets = [0, 256], sizes = [8, 128], strides = [1, 1]} : vector<8x512xf32> to vector<8x128xf32>
    %150 = math.tanh %149 : vector<8x128xf32>
    %151 = vector.extract_strided_slice %136 {offsets = [0, 384], sizes = [8, 128], strides = [1, 1]} : vector<8x512xf32> to vector<8x128xf32>
    %152 = arith.negf %151 : vector<8x128xf32>
    %153 = math.exp %152 : vector<8x128xf32>
    %cst_57 = arith.constant 1.000000e+00 : f32
    %154 = vector.broadcast %cst_57 : f32 to vector<8x128xf32>
    %155 = arith.addf %154, %153 : vector<8x128xf32>
    %156 = arith.divf %154, %155 : vector<8x128xf32>
    %157 = arith.mulf %148, %129 : vector<8x128xf32>
    %158 = arith.mulf %142, %150 : vector<8x128xf32>
    %159 = arith.addf %157, %158 : vector<8x128xf32>
    %160 = math.tanh %159 : vector<8x128xf32>
    %161 = arith.mulf %156, %160 : vector<8x128xf32>
    %c0_58 = arith.constant 0 : index
    %c3_59 = arith.constant 3 : index
    %c0_60 = arith.constant 0 : index
    %162 = vector.load %arg7[%c0_58, %c3_59, %c0_60] : memref<8x8x128xf32, #tpu.memory_space<vmem>>, vector<8x1x128xf32>
    %163 = vector.shape_cast %162 : vector<8x1x128xf32> to vector<8x128xf32>
    %164 = vector.shape_cast %161 : vector<8x128xf32> to vector<8x1x128xf32>
    tpu.vector_store %arg7[%c0_58, %c3_59, %c0_60], %164 {strides = array<i32>} : memref<8x8x128xf32, #tpu.memory_space<vmem>>, vector<8x1x128xf32>,
    %cst_61 = arith.constant dense<0.000000e+00> : vector<8x512xf32>
    %165 = tpu.matmul %161, %1, %cst_61 {dimension_numbers = #tpu.dot_dimension_numbers<[1], [0], [0], [1], [0, 0, 1, 1], [], []>} : vector<8x128xf32>, vector<128x512xf32>, vector<8x512xf32> -> vector<8x512xf32>
    %166 = arith.addf %27, %165 : vector<8x512xf32>
    %167 = vector.extract_strided_slice %166 {offsets = [0, 0], sizes = [8, 128], strides = [1, 1]} : vector<8x512xf32> to vector<8x128xf32>
    %168 = arith.negf %167 : vector<8x128xf32>
    %169 = math.exp %168 : vector<8x128xf32>
    %cst_62 = arith.constant 1.000000e+00 : f32
    %170 = vector.broadcast %cst_62 : f32 to vector<8x128xf32>
    %171 = arith.addf %170, %169 : vector<8x128xf32>
    %172 = arith.divf %170, %171 : vector<8x128xf32>
    %173 = vector.extract_strided_slice %166 {offsets = [0, 128], sizes = [8, 128], strides = [1, 1]} : vector<8x512xf32> to vector<8x128xf32>
    %174 = arith.negf %173 : vector<8x128xf32>
    %175 = math.exp %174 : vector<8x128xf32>
    %cst_63 = arith.constant 1.000000e+00 : f32
    %176 = vector.broadcast %cst_63 : f32 to vector<8x128xf32>
    %177 = arith.addf %176, %175 : vector<8x128xf32>
    %178 = arith.divf %176, %177 : vector<8x128xf32>
    %179 = vector.extract_strided_slice %166 {offsets = [0, 256], sizes = [8, 128], strides = [1, 1]} : vector<8x512xf32> to vector<8x128xf32>
    %180 = math.tanh %179 : vector<8x128xf32>
    %181 = vector.extract_strided_slice %166 {offsets = [0, 384], sizes = [8, 128], strides = [1, 1]} : vector<8x512xf32> to vector<8x128xf32>
    %182 = arith.negf %181 : vector<8x128xf32>
    %183 = math.exp %182 : vector<8x128xf32>
    %cst_64 = arith.constant 1.000000e+00 : f32
    %184 = vector.broadcast %cst_64 : f32 to vector<8x128xf32>
    %185 = arith.addf %184, %183 : vector<8x128xf32>
    %186 = arith.divf %184, %185 : vector<8x128xf32>
    %187 = arith.mulf %178, %159 : vector<8x128xf32>
    %188 = arith.mulf %172, %180 : vector<8x128xf32>
    %189 = arith.addf %187, %188 : vector<8x128xf32>
    %190 = math.tanh %189 : vector<8x128xf32>
    %191 = arith.mulf %186, %190 : vector<8x128xf32>
    %c0_65 = arith.constant 0 : index
    %c4_66 = arith.constant 4 : index
    %c0_67 = arith.constant 0 : index
    %192 = vector.load %arg7[%c0_65, %c4_66, %c0_67] : memref<8x8x128xf32, #tpu.memory_space<vmem>>, vector<8x1x128xf32>
    %193 = vector.shape_cast %192 : vector<8x1x128xf32> to vector<8x128xf32>
    %194 = vector.shape_cast %191 : vector<8x128xf32> to vector<8x1x128xf32>
    tpu.vector_store %arg7[%c0_65, %c4_66, %c0_67], %194 {strides = array<i32>} : memref<8x8x128xf32, #tpu.memory_space<vmem>>, vector<8x1x128xf32>,
    %cst_68 = arith.constant dense<0.000000e+00> : vector<8x512xf32>
    %195 = tpu.matmul %191, %1, %cst_68 {dimension_numbers = #tpu.dot_dimension_numbers<[1], [0], [0], [1], [0, 0, 1, 1], [], []>} : vector<8x128xf32>, vector<128x512xf32>, vector<8x512xf32> -> vector<8x512xf32>
    %196 = arith.addf %32, %195 : vector<8x512xf32>
    %197 = vector.extract_strided_slice %196 {offsets = [0, 0], sizes = [8, 128], strides = [1, 1]} : vector<8x512xf32> to vector<8x128xf32>
    %198 = arith.negf %197 : vector<8x128xf32>
    %199 = math.exp %198 : vector<8x128xf32>
    %cst_69 = arith.constant 1.000000e+00 : f32
    %200 = vector.broadcast %cst_69 : f32 to vector<8x128xf32>
    %201 = arith.addf %200, %199 : vector<8x128xf32>
    %202 = arith.divf %200, %201 : vector<8x128xf32>
    %203 = vector.extract_strided_slice %196 {offsets = [0, 128], sizes = [8, 128], strides = [1, 1]} : vector<8x512xf32> to vector<8x128xf32>
    %204 = arith.negf %203 : vector<8x128xf32>
    %205 = math.exp %204 : vector<8x128xf32>
    %cst_70 = arith.constant 1.000000e+00 : f32
    %206 = vector.broadcast %cst_70 : f32 to vector<8x128xf32>
    %207 = arith.addf %206, %205 : vector<8x128xf32>
    %208 = arith.divf %206, %207 : vector<8x128xf32>
    %209 = vector.extract_strided_slice %196 {offsets = [0, 256], sizes = [8, 128], strides = [1, 1]} : vector<8x512xf32> to vector<8x128xf32>
    %210 = math.tanh %209 : vector<8x128xf32>
    %211 = vector.extract_strided_slice %196 {offsets = [0, 384], sizes = [8, 128], strides = [1, 1]} : vector<8x512xf32> to vector<8x128xf32>
    %212 = arith.negf %211 : vector<8x128xf32>
    %213 = math.exp %212 : vector<8x128xf32>
    %cst_71 = arith.constant 1.000000e+00 : f32
    %214 = vector.broadcast %cst_71 : f32 to vector<8x128xf32>
    %215 = arith.addf %214, %213 : vector<8x128xf32>
    %216 = arith.divf %214, %215 : vector<8x128xf32>
    %217 = arith.mulf %208, %189 : vector<8x128xf32>
    %218 = arith.mulf %202, %210 : vector<8x128xf32>
    %219 = arith.addf %217, %218 : vector<8x128xf32>
    %220 = math.tanh %219 : vector<8x128xf32>
    %221 = arith.mulf %216, %220 : vector<8x128xf32>
    %c0_72 = arith.constant 0 : index
    %c5_73 = arith.constant 5 : index
    %c0_74 = arith.constant 0 : index
    %222 = vector.load %arg7[%c0_72, %c5_73, %c0_74] : memref<8x8x128xf32, #tpu.memory_space<vmem>>, vector<8x1x128xf32>
    %223 = vector.shape_cast %222 : vector<8x1x128xf32> to vector<8x128xf32>
    %224 = vector.shape_cast %221 : vector<8x128xf32> to vector<8x1x128xf32>
    tpu.vector_store %arg7[%c0_72, %c5_73, %c0_74], %224 {strides = array<i32>} : memref<8x8x128xf32, #tpu.memory_space<vmem>>, vector<8x1x128xf32>,
    %cst_75 = arith.constant dense<0.000000e+00> : vector<8x512xf32>
    %225 = tpu.matmul %221, %1, %cst_75 {dimension_numbers = #tpu.dot_dimension_numbers<[1], [0], [0], [1], [0, 0, 1, 1], [], []>} : vector<8x128xf32>, vector<128x512xf32>, vector<8x512xf32> -> vector<8x512xf32>
    %226 = arith.addf %37, %225 : vector<8x512xf32>
    %227 = vector.extract_strided_slice %226 {offsets = [0, 0], sizes = [8, 128], strides = [1, 1]} : vector<8x512xf32> to vector<8x128xf32>
    %228 = arith.negf %227 : vector<8x128xf32>
    %229 = math.exp %228 : vector<8x128xf32>
    %cst_76 = arith.constant 1.000000e+00 : f32
    %230 = vector.broadcast %cst_76 : f32 to vector<8x128xf32>
    %231 = arith.addf %230, %229 : vector<8x128xf32>
    %232 = arith.divf %230, %231 : vector<8x128xf32>
    %233 = vector.extract_strided_slice %226 {offsets = [0, 128], sizes = [8, 128], strides = [1, 1]} : vector<8x512xf32> to vector<8x128xf32>
    %234 = arith.negf %233 : vector<8x128xf32>
    %235 = math.exp %234 : vector<8x128xf32>
    %cst_77 = arith.constant 1.000000e+00 : f32
    %236 = vector.broadcast %cst_77 : f32 to vector<8x128xf32>
    %237 = arith.addf %236, %235 : vector<8x128xf32>
    %238 = arith.divf %236, %237 : vector<8x128xf32>
    %239 = vector.extract_strided_slice %226 {offsets = [0, 256], sizes = [8, 128], strides = [1, 1]} : vector<8x512xf32> to vector<8x128xf32>
    %240 = math.tanh %239 : vector<8x128xf32>
    %241 = vector.extract_strided_slice %226 {offsets = [0, 384], sizes = [8, 128], strides = [1, 1]} : vector<8x512xf32> to vector<8x128xf32>
    %242 = arith.negf %241 : vector<8x128xf32>
    %243 = math.exp %242 : vector<8x128xf32>
    %cst_78 = arith.constant 1.000000e+00 : f32
    %244 = vector.broadcast %cst_78 : f32 to vector<8x128xf32>
    %245 = arith.addf %244, %243 : vector<8x128xf32>
    %246 = arith.divf %244, %245 : vector<8x128xf32>
    %247 = arith.mulf %238, %219 : vector<8x128xf32>
    %248 = arith.mulf %232, %240 : vector<8x128xf32>
    %249 = arith.addf %247, %248 : vector<8x128xf32>
    %250 = math.tanh %249 : vector<8x128xf32>
    %251 = arith.mulf %246, %250 : vector<8x128xf32>
    %c0_79 = arith.constant 0 : index
    %c6_80 = arith.constant 6 : index
    %c0_81 = arith.constant 0 : index
    %252 = vector.load %arg7[%c0_79, %c6_80, %c0_81] : memref<8x8x128xf32, #tpu.memory_space<vmem>>, vector<8x1x128xf32>
    %253 = vector.shape_cast %252 : vector<8x1x128xf32> to vector<8x128xf32>
    %254 = vector.shape_cast %251 : vector<8x128xf32> to vector<8x1x128xf32>
    tpu.vector_store %arg7[%c0_79, %c6_80, %c0_81], %254 {strides = array<i32>} : memref<8x8x128xf32, #tpu.memory_space<vmem>>, vector<8x1x128xf32>,
    %cst_82 = arith.constant dense<0.000000e+00> : vector<8x512xf32>
    %255 = tpu.matmul %251, %1, %cst_82 {dimension_numbers = #tpu.dot_dimension_numbers<[1], [0], [0], [1], [0, 0, 1, 1], [], []>} : vector<8x128xf32>, vector<128x512xf32>, vector<8x512xf32> -> vector<8x512xf32>
    %256 = arith.addf %42, %255 : vector<8x512xf32>
    %257 = vector.extract_strided_slice %256 {offsets = [0, 0], sizes = [8, 128], strides = [1, 1]} : vector<8x512xf32> to vector<8x128xf32>
    %258 = arith.negf %257 : vector<8x128xf32>
    %259 = math.exp %258 : vector<8x128xf32>
    %cst_83 = arith.constant 1.000000e+00 : f32
    %260 = vector.broadcast %cst_83 : f32 to vector<8x128xf32>
    %261 = arith.addf %260, %259 : vector<8x128xf32>
    %262 = arith.divf %260, %261 : vector<8x128xf32>
    %263 = vector.extract_strided_slice %256 {offsets = [0, 128], sizes = [8, 128], strides = [1, 1]} : vector<8x512xf32> to vector<8x128xf32>
    %264 = arith.negf %263 : vector<8x128xf32>
    %265 = math.exp %264 : vector<8x128xf32>
    %cst_84 = arith.constant 1.000000e+00 : f32
    %266 = vector.broadcast %cst_84 : f32 to vector<8x128xf32>
    %267 = arith.addf %266, %265 : vector<8x128xf32>
    %268 = arith.divf %266, %267 : vector<8x128xf32>
    %269 = vector.extract_strided_slice %256 {offsets = [0, 256], sizes = [8, 128], strides = [1, 1]} : vector<8x512xf32> to vector<8x128xf32>
    %270 = math.tanh %269 : vector<8x128xf32>
    %271 = vector.extract_strided_slice %256 {offsets = [0, 384], sizes = [8, 128], strides = [1, 1]} : vector<8x512xf32> to vector<8x128xf32>
    %272 = arith.negf %271 : vector<8x128xf32>
    %273 = math.exp %272 : vector<8x128xf32>
    %cst_85 = arith.constant 1.000000e+00 : f32
    %274 = vector.broadcast %cst_85 : f32 to vector<8x128xf32>
    %275 = arith.addf %274, %273 : vector<8x128xf32>
    %276 = arith.divf %274, %275 : vector<8x128xf32>
    %277 = arith.mulf %268, %249 : vector<8x128xf32>
    %278 = arith.mulf %262, %270 : vector<8x128xf32>
    %279 = arith.addf %277, %278 : vector<8x128xf32>
    %280 = math.tanh %279 : vector<8x128xf32>
    %281 = arith.mulf %276, %280 : vector<8x128xf32>
    %c0_86 = arith.constant 0 : index
    %c7_87 = arith.constant 7 : index
    %c0_88 = arith.constant 0 : index
    %282 = vector.load %arg7[%c0_86, %c7_87, %c0_88] : memref<8x8x128xf32, #tpu.memory_space<vmem>>, vector<8x1x128xf32>
    %283 = vector.shape_cast %282 : vector<8x1x128xf32> to vector<8x128xf32>
    %284 = vector.shape_cast %281 : vector<8x128xf32> to vector<8x1x128xf32>
    tpu.vector_store %arg7[%c0_86, %c7_87, %c0_88], %284 {strides = array<i32>} : memref<8x8x128xf32, #tpu.memory_space<vmem>>, vector<8x1x128xf32>,
    %c0_89 = arith.constant 0 : index
    %c0_90 = arith.constant 0 : index
    %285 = vector.load %arg8[%c0_89, %c0_90] : memref<8x128xf32, #tpu.memory_space<vmem>>, vector<8x128xf32>
    tpu.vector_store %arg8[%c0_89, %c0_90], %281 {strides = array<i32>} : memref<8x128xf32, #tpu.memory_space<vmem>>, vector<8x128xf32>,
    %c0_91 = arith.constant 0 : index
    %c0_92 = arith.constant 0 : index
    %286 = vector.load %arg9[%c0_91, %c0_92] : memref<8x128xf32, #tpu.memory_space<vmem>>, vector<8x128xf32>
    tpu.vector_store %arg9[%c0_91, %c0_92], %279 {strides = array<i32>} : memref<8x128xf32, #tpu.memory_space<vmem>>, vector<8x128xf32>,
    return
  }
  func.func @transform_0(%arg0: i32) -> (i32, i32, i32) {
    %c0_i32 = arith.constant 0 : i32
    %c0_i32_0 = arith.constant 0 : i32
    %c0_i32_1 = arith.constant 0 : i32
    return %arg0, %c0_i32, %c0_i32_0 : i32, i32, i32
  }
  func.func @transform_1(%arg0: i32) -> (i32, i32) {
    %c0_i32 = arith.constant 0 : i32
    %c0_i32_0 = arith.constant 0 : i32
    return %arg0, %c0_i32 : i32, i32
  }
  func.func @transform_2(%arg0: i32) -> (i32, i32) {
    %c0_i32 = arith.constant 0 : i32
    %c0_i32_0 = arith.constant 0 : i32
    return %arg0, %c0_i32 : i32, i32
  }
  func.func @transform_3(%arg0: i32) -> (i32, i32) {
    %c0_i32 = arith.constant 0 : i32
    %c0_i32_0 = arith.constant 0 : i32
    %c0_i32_1 = arith.constant 0 : i32
    return %c0_i32, %c0_i32_0 : i32, i32
  }
  func.func @transform_4(%arg0: i32) -> (i32, i32) {
    %c0_i32 = arith.constant 0 : i32
    %c0_i32_0 = arith.constant 0 : i32
    %c0_i32_1 = arith.constant 0 : i32
    return %c0_i32, %c0_i32_0 : i32, i32
  }
  func.func @transform_5(%arg0: i32) -> (i32, i32) {
    %c0_i32 = arith.constant 0 : i32
    %c0_i32_0 = arith.constant 0 : i32
    %c0_i32_1 = arith.constant 0 : i32
    return %c0_i32, %c0_i32_0 : i32, i32
  }
  func.func @transform_6(%arg0: i32) -> (i32, i32, i32) {
    %c0_i32 = arith.constant 0 : i32
    %c0_i32_0 = arith.constant 0 : i32
    %c0_i32_1 = arith.constant 0 : i32
    return %arg0, %c0_i32, %c0_i32_0 : i32, i32, i32
  }
  func.func @transform_7(%arg0: i32) -> (i32, i32) {
    %c0_i32 = arith.constant 0 : i32
    %c0_i32_0 = arith.constant 0 : i32
    return %arg0, %c0_i32 : i32, i32
  }
  func.func @transform_8(%arg0: i32) -> (i32, i32) {
    %c0_i32 = arith.constant 0 : i32
    %c0_i32_0 = arith.constant 0 : i32
    return %arg0, %c0_i32 : i32, i32
  }
}

</mosaic_0001>

<llo_original>
// kernel: stateful_model_forward.1
$region0: #{stateful_model_forward.1}
  #allocation0 [shape = 'u32[]', space=smem, size = 0x4, offset = 0x4, fixed_abs, tag = 'smem constant byte address 0x4 - core index']
  #allocation1 [shape = 'u32[144,128]{1,0:T(1,128)}', space=vmem, size = 0x12000, scoped, tag = 'internal scratch']
  %s0 = inlined_call_operand.vmem [shape: f32[8,8,10], index: 0, kind: input, shape index: {}]
  %s1 = inlined_call_operand.vmem [shape: f32[8,128], index: 1, kind: input, shape index: {}]
  %s2 = inlined_call_operand.vmem [shape: f32[8,128], index: 2, kind: input, shape index: {}]
  %s3 = inlined_call_operand.vmem [shape: f32[10,512], index: 3, kind: input, shape index: {}]
  %s4 = inlined_call_operand.vmem [shape: f32[128,512], index: 4, kind: input, shape index: {}]
  %s5 = inlined_call_operand.vmem [shape: f32[1,512], index: 5, kind: input, shape index: {}]
  %s6 = inlined_call_operand.vmem [shape: f32[8,8,128], index: 6, kind: output, shape index: {0}]
  %s7 = inlined_call_operand.vmem [shape: f32[8,128], index: 7, kind: output, shape index: {1}]
  %s8 = inlined_call_operand.vmem [shape: f32[8,128], index: 8, kind: output, shape index: {2}]
  %9 = xla_tuple %s6, %s7, %s8
  %s10 = sld [smem:[#allocation0]]
  $region50: #{stateful_model_forward.1} parent=0
    _
  %s12 = ssub.s32 1, %s10
  %s13 = scalar_select 0, %s12, %s10
  // Predicated region
  $region2: #{stateful_model_forward.1} parent=0 // pred_check
    _
  $region3: #{stateful_model_forward.1} parent=0 // pred_check_branch
    %15 = sbr.rel (0) target = $region5
  $region4: #{stateful_model_forward.1} parent=0 // pred_region
    _
  $region5: #{stateful_model_forward.1} parent=0 // pred_fallthru
    _
  // Predicated region
  $region6: #{stateful_model_forward.1} parent=0 // pred_check
    _
  $region7: #{stateful_model_forward.1} parent=0 // pred_check_branch
    %17 = sbr.rel (0) target = $region9
  $region8: #{stateful_model_forward.1} parent=0 // pred_region
    _
  $region9: #{stateful_model_forward.1} parent=0 // pred_fallthru
    _
  // Predicated region
  $region10: #{stateful_model_forward.1} parent=0 // pred_check
    _
  $region11: #{stateful_model_forward.1} parent=0 // pred_check_branch
    %19 = sbr.rel (0) target = $region13
  $region12: #{stateful_model_forward.1} parent=0 // pred_region
    _
  $region13: #{stateful_model_forward.1} parent=0 // pred_fallthru
    _
  // Predicated region
  $region14: #{stateful_model_forward.1} parent=0 // pred_check
    _
  $region15: #{stateful_model_forward.1} parent=0 // pred_check_branch
    %21 = sbr.rel (0) target = $region17
  $region16: #{stateful_model_forward.1} parent=0 // pred_region
    _
  $region17: #{stateful_model_forward.1} parent=0 // pred_fallthru
    _
  // Predicated region
  $region18: #{stateful_model_forward.1} parent=0 // pred_check
    _
  $region19: #{stateful_model_forward.1} parent=0 // pred_check_branch
    %23 = sbr.rel (0) target = $region21
  $region20: #{stateful_model_forward.1} parent=0 // pred_region
    _
  $region21: #{stateful_model_forward.1} parent=0 // pred_fallthru
    _
  // Predicated region
  $region22: #{stateful_model_forward.1} parent=0 // pred_check
    _
  $region23: #{stateful_model_forward.1} parent=0 // pred_check_branch
    %25 = sbr.rel (0) target = $region25
  $region24: #{stateful_model_forward.1} parent=0 // pred_region
    _
  $region25: #{stateful_model_forward.1} parent=0 // pred_fallthru
    _
  %v26 = vld [vmem:[%s3] sm:$0xff]
  %v27 = vld [vmem:[%s3 + $0x8] sm:$0xff]
  %v28 = vld [vmem:[%s3 + $0x10] sm:$0xff]
  %v29 = vld [vmem:[%s3 + $0x18] sm:$0xff]
  %v30 = vld [vmem:[%s3 + $0x20] sm:$0x3]
  %v31 = vld [vmem:[%s3 + $0x28] sm:$0x3]
  %v32 = vld [vmem:[%s3 + $0x30] sm:$0x3]
  %v33 = vld [vmem:[%s3 + $0x38] sm:$0x3]
  %v34 = vld [vmem:[%s4] sm:$0xff]
  %v35 = vld [vmem:[%s4 + $0x8] sm:$0xff]
  %v36 = vld [vmem:[%s4 + $0x10] sm:$0xff]
  %v37 = vld [vmem:[%s4 + $0x18] sm:$0xff]
  %v38 = vld [vmem:[%s4 + $0x20] sm:$0xff]
  %v39 = vld [vmem:[%s4 + $0x28] sm:$0xff]
  %v40 = vld [vmem:[%s4 + $0x30] sm:$0xff]
  %v41 = vld [vmem:[%s4 + $0x38] sm:$0xff]
  %v42 = vld [vmem:[%s4 + $0x40] sm:$0xff]
  %v43 = vld [vmem:[%s4 + $0x48] sm:$0xff]
  %v44 = vld [vmem:[%s4 + $0x50] sm:$0xff]
  %v45 = vld [vmem:[%s4 + $0x58] sm:$0xff]
  %v46 = vld [vmem:[%s4 + $0x60] sm:$0xff]
  %v47 = vld [vmem:[%s4 + $0x68] sm:$0xff]
  %v48 = vld [vmem:[%s4 + $0x70] sm:$0xff]
  %v49 = vld [vmem:[%s4 + $0x78] sm:$0xff]
  %v50 = vld [vmem:[%s4 + $0x80] sm:$0xff]
  %v51 = vld [vmem:[%s4 + $0x88] sm:$0xff]
  %v52 = vld [vmem:[%s4 + $0x90] sm:$0xff]
  %v53 = vld [vmem:[%s4 + $0x98] sm:$0xff]
  %v54 = vld [vmem:[%s4 + $0xa0] sm:$0xff]
  %v55 = vld [vmem:[%s4 + $0xa8] sm:$0xff]
  %v56 = vld [vmem:[%s4 + $0xb0] sm:$0xff]
  %v57 = vld [vmem:[%s4 + $0xb8] sm:$0xff]
  %v58 = vld [vmem:[%s4 + $0xc0] sm:$0xff]
  %v59 = vld [vmem:[%s4 + $0xc8] sm:$0xff]
  %v60 = vld [vmem:[%s4 + $0xd0] sm:$0xff]
  %v61 = vld [vmem:[%s4 + $0xd8] sm:$0xff]
  %v62 = vld [vmem:[%s4 + $0xe0] sm:$0xff]
  %v63 = vld [vmem:[%s4 + $0xe8] sm:$0xff]
  %v64 = vld [vmem:[%s4 + $0xf0] sm:$0xff]
  %v65 = vld [vmem:[%s4 + $0xf8] sm:$0xff]
  %v66 = vld [vmem:[%s4 + $0x100] sm:$0xff]
  %v67 = vld [vmem:[%s4 + $0x108] sm:$0xff]
  %v68 = vld [vmem:[%s4 + $0x110] sm:$0xff]
  %v69 = vld [vmem:[%s4 + $0x118] sm:$0xff]
  %v70 = vld [vmem:[%s4 + $0x120] sm:$0xff]
  %v71 = vld [vmem:[%s4 + $0x128] sm:$0xff]
  %v72 = vld [vmem:[%s4 + $0x130] sm:$0xff]
  %v73 = vld [vmem:[%s4 + $0x138] sm:$0xff]
  %v74 = vld [vmem:[%s4 + $0x140] sm:$0xff]
  %v75 = vld [vmem:[%s4 + $0x148] sm:$0xff]
  %v76 = vld [vmem:[%s4 + $0x150] sm:$0xff]
  %v77 = vld [vmem:[%s4 + $0x158] sm:$0xff]
  %v78 = vld [vmem:[%s4 + $0x160] sm:$0xff]
  %v79 = vld [vmem:[%s4 + $0x168] sm:$0xff]
  %v80 = vld [vmem:[%s4 + $0x170] sm:$0xff]
  %v81 = vld [vmem:[%s4 + $0x178] sm:$0xff]
  %v82 = vld [vmem:[%s4 + $0x180] sm:$0xff]
  %v83 = vld [vmem:[%s4 + $0x188] sm:$0xff]
  %v84 = vld [vmem:[%s4 + $0x190] sm:$0xff]
  %v85 = vld [vmem:[%s4 + $0x198] sm:$0xff]
  %v86 = vld [vmem:[%s4 + $0x1a0] sm:$0xff]
  %v87 = vld [vmem:[%s4 + $0x1a8] sm:$0xff]
  %v88 = vld [vmem:[%s4 + $0x1b0] sm:$0xff]
  %v89 = vld [vmem:[%s4 + $0x1b8] sm:$0xff]
  %v90 = vld [vmem:[%s4 + $0x1c0] sm:$0xff]
  %v91 = vld [vmem:[%s4 + $0x1c8] sm:$0xff]
  %v92 = vld [vmem:[%s4 + $0x1d0] sm:$0xff]
  %v93 = vld [vmem:[%s4 + $0x1d8] sm:$0xff]
  %v94 = vld [vmem:[%s4 + $0x1e0] sm:$0xff]
  %v95 = vld [vmem:[%s4 + $0x1e8] sm:$0xff]
  %v96 = vld [vmem:[%s4 + $0x1f0] sm:$0xff]
  %v97 = vld [vmem:[%s4 + $0x1f8] sm:$0xff]
  %v98 = vld [vmem:[%s5] sm:$0xf]
  %v99 = vld [vmem:[%s0] sm:$0x1]
  %v100 = vld [vmem:[%s0 + $0x8] sm:$0x1]
  %v101 = vld [vmem:[%s0 + $0x10] sm:$0x1]
  %v102 = vld [vmem:[%s0 + $0x18] sm:$0x1]
  %v103 = vld [vmem:[%s0 + $0x20] sm:$0x1]
  %v104 = vld [vmem:[%s0 + $0x28] sm:$0x1]
  %v105 = vld [vmem:[%s0 + $0x30] sm:$0x1]
  %v106 = vld [vmem:[%s0 + $0x38] sm:$0x1]
  %v108 = vlaneseq
  %v109 = vshrl.u32 %v108, 7
  %v110 = vsub.s32 0, %v109
  %v111 = vrot.slane %v98, %v110
  %v112 = vlaneseq
  %v113 = vshrl.u32 %v112, 7
  %v114 = vsub.s32 1, %v113
  %v115 = vrot.slane %v98, %v114
  %v116 = vlaneseq
  %v117 = vshrl.u32 %v116, 7
  %v118 = vsub.s32 2, %v117
  %v119 = vrot.slane %v98, %v118
  %v120 = vlaneseq
  %v121 = vshrl.u32 %v120, 7
  %v122 = vsub.s32 3, %v121
  %v123 = vrot.slane %v98, %v122
  %v136 = vrot.slane %v100, 7
  %vm137 = vcmask 1041409
  %v138 = vsel %vm137, %v136, %v99
  %v139 = vrot.slane %v101, 6
  %vm140 = vcmask 1042434
  %v141 = vsel %vm140, %v139, %v138
  %v142 = vrot.slane %v102, 5
  %vm143 = vcmask 1043459
  %v144 = vsel %vm143, %v142, %v141
  %v145 = vrot.slane %v103, 4
  %vm146 = vcmask 1044484
  %v147 = vsel %vm146, %v145, %v144
  %v148 = vrot.slane %v104, 3
  %vm149 = vcmask 1045509
  %v150 = vsel %vm149, %v148, %v147
  %v151 = vrot.slane %v105, 2
  %vm152 = vcmask 1046534
  %v153 = vsel %vm152, %v151, %v150
  %v154 = vrot.slane %v106, 1
  %vm155 = vcmask 1047559
  %v156 = vsel %vm155, %v154, %v153
  %vm157 = vcmask 80896
  %v158 = vsel %vm157, %v156, 0
  %vm160 = vcmask 1041408
  %v162 = vsel %vm160, %v30, 0
  %v165 = vsel %vm160, %v31, 0
  %v168 = vsel %vm160, %v32, 0
  %v171 = vsel %vm160, %v33, 0
  %173 = vmatprep.subr.mxu0 %v27
  %174 = vmatpush1.msra.mxu0 %v26
  %175 = vmatprep.subr.mxu0 %v165
  %176 = vmatpush1.msra.mxu0 %v162
  %177 = vmatprep.subr.mxu0 0.0
  %178 = vmatpush1.msra.mxu0 0.0
  %179 = vmatprep.subr.mxu0 0.0
  %180 = vmatpush1.msra.mxu0 0.0
  %181 = vmatprep.subr.mxu0 0.0
  %182 = vmatpush1.msra.mxu0 0.0
  %183 = vmatprep.subr.mxu0 0.0
  %184 = vmatpush1.msra.mxu0 0.0
  %185 = vmatprep.subr.mxu0 0.0
  %186 = vmatpush1.msra.mxu0 0.0
  %187 = vmatprep.subr.mxu0 0.0
  %188 = vmatpush1.msra.mxu0 0.0
  %189 = vmatprep.subr.mxu0 0.0
  %190 = vmatpush1.msra.mxu0 0.0
  %191 = vmatprep.subr.mxu0 0.0
  %192 = vmatpush1.msra.mxu0 0.0
  %193 = vmatprep.subr.mxu0 0.0
  %194 = vmatpush1.msra.mxu0 0.0
  %195 = vmatprep.subr.mxu0 0.0
  %196 = vmatpush1.msra.mxu0 0.0
  %197 = vmatprep.subr.mxu0 0.0
  %198 = vmatpush1.msra.mxu0 0.0
  %199 = vmatprep.subr.mxu0 0.0
  %200 = vmatpush1.msra.mxu0 0.0
  %201 = vmatprep.subr.mxu0 0.0
  %202 = vmatpush1.msra.mxu0 0.0
  %203 = vmatprep.subr.mxu0 0.0
  %204 = vmatpush1.msra.mxu0 0.0
  %205 = vmatprep.subr.mxu0 0.0
  %206 = vmatpush1.msra.mxu0 0.0
  %207 = vmatprep.subr.mxu0 0.0
  %208 = vmatpush1.msra.mxu0 0.0
  %209 = vmatprep.subr.mxu0 0.0
  %210 = vmatpush1.msra.mxu0 0.0
  %211 = vmatprep.subr.mxu0 0.0
  %212 = vmatpush1.msra.mxu0 0.0
  %213 = vmatprep.subr.mxu0 0.0
  %214 = vmatpush1.msra.mxu0 0.0
  %215 = vmatprep.subr.mxu0 0.0
  %216 = vmatpush1.msra.mxu0 0.0
  %217 = vmatprep.subr.mxu0 0.0
  %218 = vmatpush1.msra.mxu0 0.0
  %219 = vmatprep.subr.mxu0 0.0
  %220 = vmatpush1.msra.mxu0 0.0
  %221 = vmatprep.subr.mxu0 0.0
  %222 = vmatpush1.msra.mxu0 0.0
  %223 = vmatprep.subr.mxu0 0.0
  %224 = vmatpush1.msra.mxu0 0.0
  %225 = vmatprep.subr.mxu0 0.0
  %226 = vmatpush1.msra.mxu0 0.0
  %227 = vmatprep.subr.mxu0 0.0
  %228 = vmatpush1.msra.mxu0 0.0
  %229 = vmatprep.subr.mxu0 0.0
  %230 = vmatpush1.msra.mxu0 0.0
  %231 = vmatprep.subr.mxu0 0.0
  %232 = vmatpush1.msra.mxu0 0.0
  %233 = vmatprep.subr.mxu0 0.0
  %234 = vmatpush1.msra.mxu0 0.0
  %235 = vmatprep.subr.mxu0 0.0
  %236 = vmatpush1.msra.mxu0 0.0
  %237 = vmatprep.mubr.f32.mxu0 0.0
  %238 = vmatmul.mubr.f32.gmra.mrb[0].mxu0 %v158
  %v239 = vpop.f32.mrb[0].mxu0
  %v240 = vadd.f32 %v111, %v239
  %v241 = vpop.f32.mrb[0].mxu0
  %v242 = vadd.f32 %v115, %v241
  %243 = vdwg.mxu0
  %244 = vmatprep.subr.mxu0 %v29
  %245 = vmatpush1.msra.mxu0 %v28
  %246 = vmatprep.subr.mxu0 %v171
  %247 = vmatpush1.msra.mxu0 %v168
  %248 = vmatprep.subr.mxu0 0.0
  %249 = vmatpush1.msra.mxu0 0.0
  %250 = vmatprep.subr.mxu0 0.0
  %251 = vmatpush1.msra.mxu0 0.0
  %252 = vmatprep.subr.mxu0 0.0
  %253 = vmatpush1.msra.mxu0 0.0
  %254 = vmatprep.subr.mxu0 0.0
  %255 = vmatpush1.msra.mxu0 0.0
  %256 = vmatprep.subr.mxu0 0.0
  %257 = vmatpush1.msra.mxu0 0.0
  %258 = vmatprep.subr.mxu0 0.0
  %259 = vmatpush1.msra.mxu0 0.0
  %260 = vmatprep.subr.mxu0 0.0
  %261 = vmatpush1.msra.mxu0 0.0
  %262 = vmatprep.subr.mxu0 0.0
  %263 = vmatpush1.msra.mxu0 0.0
  %264 = vmatprep.subr.mxu0 0.0
  %265 = vmatpush1.msra.mxu0 0.0
  %266 = vmatprep.subr.mxu0 0.0
  %267 = vmatpush1.msra.mxu0 0.0
  %268 = vmatprep.subr.mxu0 0.0
  %269 = vmatpush1.msra.mxu0 0.0
  %270 = vmatprep.subr.mxu0 0.0
  %271 = vmatpush1.msra.mxu0 0.0
  %272 = vmatprep.subr.mxu0 0.0
  %273 = vmatpush1.msra.mxu0 0.0
  %274 = vmatprep.subr.mxu0 0.0
  %275 = vmatpush1.msra.mxu0 0.0
  %276 = vmatprep.subr.mxu0 0.0
  %277 = vmatpush1.msra.mxu0 0.0
  %278 = vmatprep.subr.mxu0 0.0
  %279 = vmatpush1.msra.mxu0 0.0
  %280 = vmatprep.subr.mxu0 0.0
  %281 = vmatpush1.msra.mxu0 0.0
  %282 = vmatprep.subr.mxu0 0.0
  %283 = vmatpush1.msra.mxu0 0.0
  %284 = vmatprep.subr.mxu0 0.0
  %285 = vmatpush1.msra.mxu0 0.0
  %286 = vmatprep.subr.mxu0 0.0
  %287 = vmatpush1.msra.mxu0 0.0
  %288 = vmatprep.subr.mxu0 0.0
  %289 = vmatpush1.msra.mxu0 0.0
  %290 = vmatprep.subr.mxu0 0.0
  %291 = vmatpush1.msra.mxu0 0.0
  %292 = vmatprep.subr.mxu0 0.0
  %293 = vmatpush1.msra.mxu0 0.0
  %294 = vmatprep.subr.mxu0 0.0
  %295 = vmatpush1.msra.mxu0 0.0
  %296 = vmatprep.subr.mxu0 0.0
  %297 = vmatpush1.msra.mxu0 0.0
  %298 = vmatprep.subr.mxu0 0.0
  %299 = vmatpush1.msra.mxu0 0.0
  %300 = vmatprep.subr.mxu0 0.0
  %301 = vmatpush1.msra.mxu0 0.0
  %302 = vmatprep.subr.mxu0 0.0
  %303 = vmatpush1.msra.mxu0 0.0
  %304 = vmatprep.subr.mxu0 0.0
  %305 = vmatpush1.msra.mxu0 0.0
  %306 = vmatprep.subr.mxu0 0.0
  %307 = vmatpush1.msra.mxu0 0.0
  %308 = vmatprep.mubr.f32.mxu0 0.0
  %309 = vmatmul.mubr.f32.gmra.mrb[0].mxu0 %v158
  %v310 = vpop.f32.mrb[0].mxu0
  %v311 = vadd.f32 %v119, %v310
  %v312 = vpop.f32.mrb[0].mxu0
  %v313 = vadd.f32 %v123, %v312
  %314 = vdwg.mxu0
  %v315 = vld [vmem:[%s0 + $0x1] sm:$0x1]
  %v316 = vld [vmem:[%s0 + $0x9] sm:$0x1]
  %v317 = vld [vmem:[%s0 + $0x11] sm:$0x1]
  %v318 = vld [vmem:[%s0 + $0x19] sm:$0x1]
  %v319 = vld [vmem:[%s0 + $0x21] sm:$0x1]
  %v320 = vld [vmem:[%s0 + $0x29] sm:$0x1]
  %v321 = vld [vmem:[%s0 + $0x31] sm:$0x1]
  %v322 = vld [vmem:[%s0 + $0x39] sm:$0x1]
  %v331 = vrot.slane %v316, 7
  %v332 = vsel %vm137, %v331, %v315
  %v333 = vrot.slane %v317, 6
  %v334 = vsel %vm140, %v333, %v332
  %v335 = vrot.slane %v318, 5
  %v336 = vsel %vm143, %v335, %v334
  %v337 = vrot.slane %v319, 4
  %v338 = vsel %vm146, %v337, %v336
  %v339 = vrot.slane %v320, 3
  %v340 = vsel %vm149, %v339, %v338
  %v341 = vrot.slane %v321, 2
  %v342 = vsel %vm152, %v341, %v340
  %v343 = vrot.slane %v322, 1
  %v344 = vsel %vm155, %v343, %v342
  %v345 = vsel %vm157, %v344, 0
  %347 = vmatprep.subr.mxu0 %v27
  %348 = vmatpush1.msra.mxu0 %v26
  %349 = vmatprep.subr.mxu0 %v165
  %350 = vmatpush1.msra.mxu0 %v162
  %351 = vmatprep.subr.mxu0 0.0
  %352 = vmatpush1.msra.mxu0 0.0
  %353 = vmatprep.subr.mxu0 0.0
  %354 = vmatpush1.msra.mxu0 0.0
  %355 = vmatprep.subr.mxu0 0.0
  %356 = vmatpush1.msra.mxu0 0.0
  %357 = vmatprep.subr.mxu0 0.0
  %358 = vmatpush1.msra.mxu0 0.0
  %359 = vmatprep.subr.mxu0 0.0
  %360 = vmatpush1.msra.mxu0 0.0
  %361 = vmatprep.subr.mxu0 0.0
  %362 = vmatpush1.msra.mxu0 0.0
  %363 = vmatprep.subr.mxu0 0.0
  %364 = vmatpush1.msra.mxu0 0.0
  %365 = vmatprep.subr.mxu0 0.0
  %366 = vmatpush1.msra.mxu0 0.0
  %367 = vmatprep.subr.mxu0 0.0
  %368 = vmatpush1.msra.mxu0 0.0
  %369 = vmatprep.subr.mxu0 0.0
  %370 = vmatpush1.msra.mxu0 0.0
  %371 = vmatprep.subr.mxu0 0.0
  %372 = vmatpush1.msra.mxu0 0.0
  %373 = vmatprep.subr.mxu0 0.0
  %374 = vmatpush1.msra.mxu0 0.0
  %375 = vmatprep.subr.mxu0 0.0
  %376 = vmatpush1.msra.mxu0 0.0
  %377 = vmatprep.subr.mxu0 0.0
  %378 = vmatpush1.msra.mxu0 0.0
  %379 = vmatprep.subr.mxu0 0.0
  %380 = vmatpush1.msra.mxu0 0.0
  %381 = vmatprep.subr.mxu0 0.0
  %382 = vmatpush1.msra.mxu0 0.0
  %383 = vmatprep.subr.mxu0 0.0
  %384 = vmatpush1.msra.mxu0 0.0
  %385 = vmatprep.subr.mxu0 0.0
  %386 = vmatpush1.msra.mxu0 0.0
  %387 = vmatprep.subr.mxu0 0.0
  %388 = vmatpush1.msra.mxu0 0.0
  %389 = vmatprep.subr.mxu0 0.0
  %390 = vmatpush1.msra.mxu0 0.0
  %391 = vmatprep.subr.mxu0 0.0
  %392 = vmatpush1.msra.mxu0 0.0
  %393 = vmatprep.subr.mxu0 0.0
  %394 = vmatpush1.msra.mxu0 0.0
  %395 = vmatprep.subr.mxu0 0.0
  %396 = vmatpush1.msra.mxu0 0.0
  %397 = vmatprep.subr.mxu0 0.0
  %398 = vmatpush1.msra.mxu0 0.0
  %399 = vmatprep.subr.mxu0 0.0
  %400 = vmatpush1.msra.mxu0 0.0
  %401 = vmatprep.subr.mxu0 0.0
  %402 = vmatpush1.msra.mxu0 0.0
  %403 = vmatprep.subr.mxu0 0.0
  %404 = vmatpush1.msra.mxu0 0.0
  %405 = vmatprep.subr.mxu0 0.0
  %406 = vmatpush1.msra.mxu0 0.0
  %407 = vmatprep.subr.mxu0 0.0
  %408 = vmatpush1.msra.mxu0 0.0
  %409 = vmatprep.subr.mxu0 0.0
  %410 = vmatpush1.msra.mxu0 0.0
  %411 = vmatprep.mubr.f32.mxu0 0.0
  %412 = vmatmul.mubr.f32.gmra.mrb[0].mxu0 %v345
  %v413 = vpop.f32.mrb[0].mxu0
  %v414 = vadd.f32 %v111, %v413
  %v415 = vpop.f32.mrb[0].mxu0
  %v416 = vadd.f32 %v115, %v415
  %417 = vdwg.mxu0
  %418 = vmatprep.subr.mxu0 %v29
  %419 = vmatpush1.msra.mxu0 %v28
  %420 = vmatprep.subr.mxu0 %v171
  %421 = vmatpush1.msra.mxu0 %v168
  %422 = vmatprep.subr.mxu0 0.0
  %423 = vmatpush1.msra.mxu0 0.0
  %424 = vmatprep.subr.mxu0 0.0
  %425 = vmatpush1.msra.mxu0 0.0
  %426 = vmatprep.subr.mxu0 0.0
  %427 = vmatpush1.msra.mxu0 0.0
  %428 = vmatprep.subr.mxu0 0.0
  %429 = vmatpush1.msra.mxu0 0.0
  %430 = vmatprep.subr.mxu0 0.0
  %431 = vmatpush1.msra.mxu0 0.0
  %432 = vmatprep.subr.mxu0 0.0
  %433 = vmatpush1.msra.mxu0 0.0
  %434 = vmatprep.subr.mxu0 0.0
  %435 = vmatpush1.msra.mxu0 0.0
  %436 = vmatprep.subr.mxu0 0.0
  %437 = vmatpush1.msra.mxu0 0.0
  %438 = vmatprep.subr.mxu0 0.0
  %439 = vmatpush1.msra.mxu0 0.0
  %440 = vmatprep.subr.mxu0 0.0
  %441 = vmatpush1.msra.mxu0 0.0
  %442 = vmatprep.subr.mxu0 0.0
  %443 = vmatpush1.msra.mxu0 0.0
  %444 = vmatprep.subr.mxu0 0.0
  %445 = vmatpush1.msra.mxu0 0.0
  %446 = vmatprep.subr.mxu0 0.0
  %447 = vmatpush1.msra.mxu0 0.0
  %448 = vmatprep.subr.mxu0 0.0
  %449 = vmatpush1.msra.mxu0 0.0
  %450 = vmatprep.subr.mxu0 0.0
  %451 = vmatpush1.msra.mxu0 0.0
  %452 = vmatprep.subr.mxu0 0.0
  %453 = vmatpush1.msra.mxu0 0.0
  %454 = vmatprep.subr.mxu0 0.0
  %455 = vmatpush1.msra.mxu0 0.0
  %456 = vmatprep.subr.mxu0 0.0
  %457 = vmatpush1.msra.mxu0 0.0
  %458 = vmatprep.subr.mxu0 0.0
  %459 = vmatpush1.msra.mxu0 0.0
  %460 = vmatprep.subr.mxu0 0.0
  %461 = vmatpush1.msra.mxu0 0.0
  %462 = vmatprep.subr.mxu0 0.0
  %463 = vmatpush1.msra.mxu0 0.0
  %464 = vmatprep.subr.mxu0 0.0
  %465 = vmatpush1.msra.mxu0 0.0
  %466 = vmatprep.subr.mxu0 0.0
  %467 = vmatpush1.msra.mxu0 0.0
  %468 = vmatprep.subr.mxu0 0.0
  %469 = vmatpush1.msra.mxu0 0.0
  %470 = vmatprep.subr.mxu0 0.0
  %471 = vmatpush1.msra.mxu0 0.0
  %472 = vmatprep.subr.mxu0 0.0
  %473 = vmatpush1.msra.mxu0 0.0
  %474 = vmatprep.subr.mxu0 0.0
  %475 = vmatpush1.msra.mxu0 0.0
  %476 = vmatprep.subr.mxu0 0.0
  %477 = vmatpush1.msra.mxu0 0.0
  %478 = vmatprep.subr.mxu0 0.0
  %479 = vmatpush1.msra.mxu0 0.0
  %480 = vmatprep.subr.mxu0 0.0
  %481 = vmatpush1.msra.mxu0 0.0
  %482 = vmatprep.mubr.f32.mxu0 0.0
  %483 = vmatmul.mubr.f32.gmra.mrb[0].mxu0 %v345
  %v484 = vpop.f32.mrb[0].mxu0
  %v485 = vadd.f32 %v119, %v484
  %v486 = vpop.f32.mrb[0].mxu0
  %v487 = vadd.f32 %v123, %v486
  %488 = vdwg.mxu0
  %v489 = vld [vmem:[%s0 + $0x2] sm:$0x1]
  %v490 = vld [vmem:[%s0 + $0xa] sm:$0x1]
  %v491 = vld [vmem:[%s0 + $0x12] sm:$0x1]
  %v492 = vld [vmem:[%s0 + $0x1a] sm:$0x1]
  %v493 = vld [vmem:[%s0 + $0x22] sm:$0x1]
  %v494 = vld [vmem:[%s0 + $0x2a] sm:$0x1]
  %v495 = vld [vmem:[%s0 + $0x32] sm:$0x1]
  %v496 = vld [vmem:[%s0 + $0x3a] sm:$0x1]
  %v505 = vrot.slane %v490, 7
  %v506 = vsel %vm137, %v505, %v489
  %v507 = vrot.slane %v491, 6
  %v508 = vsel %vm140, %v507, %v506
  %v509 = vrot.slane %v492, 5
  %v510 = vsel %vm143, %v509, %v508
  %v511 = vrot.slane %v493, 4
  %v512 = vsel %vm146, %v511, %v510
  %v513 = vrot.slane %v494, 3
  %v514 = vsel %vm149, %v513, %v512
  %v515 = vrot.slane %v495, 2
  %v516 = vsel %vm152, %v515, %v514
  %v517 = vrot.slane %v496, 1
  %v518 = vsel %vm155, %v517, %v516
  %v519 = vsel %vm157, %v518, 0
  %521 = vmatprep.subr.mxu0 %v27
  %522 = vmatpush1.msra.mxu0 %v26
  %523 = vmatprep.subr.mxu0 %v165
  %524 = vmatpush1.msra.mxu0 %v162
  %525 = vmatprep.subr.mxu0 0.0
  %526 = vmatpush1.msra.mxu0 0.0
  %527 = vmatprep.subr.mxu0 0.0
  %528 = vmatpush1.msra.mxu0 0.0
  %529 = vmatprep.subr.mxu0 0.0
  %530 = vmatpush1.msra.mxu0 0.0
  %531 = vmatprep.subr.mxu0 0.0
  %532 = vmatpush1.msra.mxu0 0.0
  %533 = vmatprep.subr.mxu0 0.0
  %534 = vmatpush1.msra.mxu0 0.0
  %535 = vmatprep.subr.mxu0 0.0
  %536 = vmatpush1.msra.mxu0 0.0
  %537 = vmatprep.subr.mxu0 0.0
  %538 = vmatpush1.msra.mxu0 0.0
  %539 = vmatprep.subr.mxu0 0.0
  %540 = vmatpush1.msra.mxu0 0.0
  %541 = vmatprep.subr.mxu0 0.0
  %542 = vmatpush1.msra.mxu0 0.0
  %543 = vmatprep.subr.mxu0 0.0
  %544 = vmatpush1.msra.mxu0 0.0
  %545 = vmatprep.subr.mxu0 0.0
  %546 = vmatpush1.msra.mxu0 0.0
  %547 = vmatprep.subr.mxu0 0.0
  %548 = vmatpush1.msra.mxu0 0.0
  %549 = vmatprep.subr.mxu0 0.0
  %550 = vmatpush1.msra.mxu0 0.0
  %551 = vmatprep.subr.mxu0 0.0
  %552 = vmatpush1.msra.mxu0 0.0
  %553 = vmatprep.subr.mxu0 0.0
  %554 = vmatpush1.msra.mxu0 0.0
  %555 = vmatprep.subr.mxu0 0.0
  %556 = vmatpush1.msra.mxu0 0.0
  %557 = vmatprep.subr.mxu0 0.0
  %558 = vmatpush1.msra.mxu0 0.0
  %559 = vmatprep.subr.mxu0 0.0
  %560 = vmatpush1.msra.mxu0 0.0
  %561 = vmatprep.subr.mxu0 0.0
  %562 = vmatpush1.msra.mxu0 0.0
  %563 = vmatprep.subr.mxu0 0.0
  %564 = vmatpush1.msra.mxu0 0.0
  %565 = vmatprep.subr.mxu0 0.0
  %566 = vmatpush1.msra.mxu0 0.0
  %567 = vmatprep.subr.mxu0 0.0
  %568 = vmatpush1.msra.mxu0 0.0
  %569 = vmatprep.subr.mxu0 0.0
  %570 = vmatpush1.msra.mxu0 0.0
  %571 = vmatprep.subr.mxu0 0.0
  %572 = vmatpush1.msra.mxu0 0.0
  %573 = vmatprep.subr.mxu0 0.0
  %574 = vmatpush1.msra.mxu0 0.0
  %575 = vmatprep.subr.mxu0 0.0
  %576 = vmatpush1.msra.mxu0 0.0
  %577 = vmatprep.subr.mxu0 0.0
  %578 = vmatpush1.msra.mxu0 0.0
  %579 = vmatprep.subr.mxu0 0.0
  %580 = vmatpush1.msra.mxu0 0.0
  %581 = vmatprep.subr.mxu0 0.0
  %582 = vmatpush1.msra.mxu0 0.0
  %583 = vmatprep.subr.mxu0 0.0
  %584 = vmatpush1.msra.mxu0 0.0
  %585 = vmatprep.mubr.f32.mxu0 0.0
  %586 = vmatmul.mubr.f32.gmra.mrb[0].mxu0 %v519
  %v587 = vpop.f32.mrb[0].mxu0
  %v588 = vadd.f32 %v111, %v587
  %v589 = vpop.f32.mrb[0].mxu0
  %v590 = vadd.f32 %v115, %v589
  %591 = vdwg.mxu0
  %592 = vmatprep.subr.mxu0 %v29
  %593 = vmatpush1.msra.mxu0 %v28
  %594 = vmatprep.subr.mxu0 %v171
  %595 = vmatpush1.msra.mxu0 %v168
  %596 = vmatprep.subr.mxu0 0.0
  %597 = vmatpush1.msra.mxu0 0.0
  %598 = vmatprep.subr.mxu0 0.0
  %599 = vmatpush1.msra.mxu0 0.0
  %600 = vmatprep.subr.mxu0 0.0
  %601 = vmatpush1.msra.mxu0 0.0
  %602 = vmatprep.subr.mxu0 0.0
  %603 = vmatpush1.msra.mxu0 0.0
  %604 = vmatprep.subr.mxu0 0.0
  %605 = vmatpush1.msra.mxu0 0.0
  %606 = vmatprep.subr.mxu0 0.0
  %607 = vmatpush1.msra.mxu0 0.0
  %608 = vmatprep.subr.mxu0 0.0
  %609 = vmatpush1.msra.mxu0 0.0
  %610 = vmatprep.subr.mxu0 0.0
  %611 = vmatpush1.msra.mxu0 0.0
  %612 = vmatprep.subr.mxu0 0.0
  %613 = vmatpush1.msra.mxu0 0.0
  %614 = vmatprep.subr.mxu0 0.0
  %615 = vmatpush1.msra.mxu0 0.0
  %616 = vmatprep.subr.mxu0 0.0
  %617 = vmatpush1.msra.mxu0 0.0
  %618 = vmatprep.subr.mxu0 0.0
  %619 = vmatpush1.msra.mxu0 0.0
  %620 = vmatprep.subr.mxu0 0.0
  %621 = vmatpush1.msra.mxu0 0.0
  %622 = vmatprep.subr.mxu0 0.0
  %623 = vmatpush1.msra.mxu0 0.0
  %624 = vmatprep.subr.mxu0 0.0
  %625 = vmatpush1.msra.mxu0 0.0
  %626 = vmatprep.subr.mxu0 0.0
  %627 = vmatpush1.msra.mxu0 0.0
  %628 = vmatprep.subr.mxu0 0.0
  %629 = vmatpush1.msra.mxu0 0.0
  %630 = vmatprep.subr.mxu0 0.0
  %631 = vmatpush1.msra.mxu0 0.0
  %632 = vmatprep.subr.mxu0 0.0
  %633 = vmatpush1.msra.mxu0 0.0
  %634 = vmatprep.subr.mxu0 0.0
  %635 = vmatpush1.msra.mxu0 0.0
  %636 = vmatprep.subr.mxu0 0.0
  %637 = vmatpush1.msra.mxu0 0.0
  %638 = vmatprep.subr.mxu0 0.0
  %639 = vmatpush1.msra.mxu0 0.0
  %640 = vmatprep.subr.mxu0 0.0
  %641 = vmatpush1.msra.mxu0 0.0
  %642 = vmatprep.subr.mxu0 0.0
  %643 = vmatpush1.msra.mxu0 0.0
  %644 = vmatprep.subr.mxu0 0.0
  %645 = vmatpush1.msra.mxu0 0.0
  %646 = vmatprep.subr.mxu0 0.0
  %647 = vmatpush1.msra.mxu0 0.0
  %648 = vmatprep.subr.mxu0 0.0
  %649 = vmatpush1.msra.mxu0 0.0
  %650 = vmatprep.subr.mxu0 0.0
  %651 = vmatpush1.msra.mxu0 0.0
  %652 = vmatprep.subr.mxu0 0.0
  %653 = vmatpush1.msra.mxu0 0.0
  %654 = vmatprep.subr.mxu0 0.0
  %655 = vmatpush1.msra.mxu0 0.0
  %656 = vmatprep.mubr.f32.mxu0 0.0
  %657 = vmatmul.mubr.f32.gmra.mrb[0].mxu0 %v519
  %v658 = vpop.f32.mrb[0].mxu0
  %v659 = vadd.f32 %v119, %v658
  %v660 = vpop.f32.mrb[0].mxu0
  %v661 = vadd.f32 %v123, %v660
  %662 = vdwg.mxu0
  %v663 = vld [vmem:[%s0 + $0x3] sm:$0x1]
  %v664 = vld [vmem:[%s0 + $0xb] sm:$0x1]
  %v665 = vld [vmem:[%s0 + $0x13] sm:$0x1]
  %v666 = vld [vmem:[%s0 + $0x1b] sm:$0x1]
  %v667 = vld [vmem:[%s0 + $0x23] sm:$0x1]
  %v668 = vld [vmem:[%s0 + $0x2b] sm:$0x1]
  %v669 = vld [vmem:[%s0 + $0x33] sm:$0x1]
  %v670 = vld [vmem:[%s0 + $0x3b] sm:$0x1]
  %v679 = vrot.slane %v664, 7
  %v680 = vsel %vm137, %v679, %v663
  %v681 = vrot.slane %v665, 6
  %v682 = vsel %vm140, %v681, %v680
  %v683 = vrot.slane %v666, 5
  %v684 = vsel %vm143, %v683, %v682
  %v685 = vrot.slane %v667, 4
  %v686 = vsel %vm146, %v685, %v684
  %v687 = vrot.slane %v668, 3
  %v688 = vsel %vm149, %v687, %v686
  %v689 = vrot.slane %v669, 2
  %v690 = vsel %vm152, %v689, %v688
  %v691 = vrot.slane %v670, 1
  %v692 = vsel %vm155, %v691, %v690
  %v693 = vsel %vm157, %v692, 0
  %695 = vmatprep.subr.mxu0 %v27
  %696 = vmatpush1.msra.mxu0 %v26
  %697 = vmatprep.subr.mxu0 %v165
  %698 = vmatpush1.msra.mxu0 %v162
  %699 = vmatprep.subr.mxu0 0.0
  %700 = vmatpush1.msra.mxu0 0.0
  %701 = vmatprep.subr.mxu0 0.0
  %702 = vmatpush1.msra.mxu0 0.0
  %703 = vmatprep.subr.mxu0 0.0
  %704 = vmatpush1.msra.mxu0 0.0
  %705 = vmatprep.subr.mxu0 0.0
  %706 = vmatpush1.msra.mxu0 0.0
  %707 = vmatprep.subr.mxu0 0.0
  %708 = vmatpush1.msra.mxu0 0.0
  %709 = vmatprep.subr.mxu0 0.0
  %710 = vmatpush1.msra.mxu0 0.0
  %711 = vmatprep.subr.mxu0 0.0
  %712 = vmatpush1.msra.mxu0 0.0
  %713 = vmatprep.subr.mxu0 0.0
  %714 = vmatpush1.msra.mxu0 0.0
  %715 = vmatprep.subr.mxu0 0.0
  %716 = vmatpush1.msra.mxu0 0.0
  %717 = vmatprep.subr.mxu0 0.0
  %718 = vmatpush1.msra.mxu0 0.0
  %719 = vmatprep.subr.mxu0 0.0
  %720 = vmatpush1.msra.mxu0 0.0
  %721 = vmatprep.subr.mxu0 0.0
  %722 = vmatpush1.msra.mxu0 0.0
  %723 = vmatprep.subr.mxu0 0.0
  %724 = vmatpush1.msra.mxu0 0.0
  %725 = vmatprep.subr.mxu0 0.0
  %726 = vmatpush1.msra.mxu0 0.0
  %727 = vmatprep.subr.mxu0 0.0
  %728 = vmatpush1.msra.mxu0 0.0
  %729 = vmatprep.subr.mxu0 0.0
  %730 = vmatpush1.msra.mxu0 0.0
  %731 = vmatprep.subr.mxu0 0.0
  %732 = vmatpush1.msra.mxu0 0.0
  %733 = vmatprep.subr.mxu0 0.0
  %734 = vmatpush1.msra.mxu0 0.0
  %735 = vmatprep.subr.mxu0 0.0
  %736 = vmatpush1.msra.mxu0 0.0
  %737 = vmatprep.subr.mxu0 0.0
  %738 = vmatpush1.msra.mxu0 0.0
  %739 = vmatprep.subr.mxu0 0.0
  %740 = vmatpush1.msra.mxu0 0.0
  %741 = vmatprep.subr.mxu0 0.0
  %742 = vmatpush1.msra.mxu0 0.0
  %743 = vmatprep.subr.mxu0 0.0
  %744 = vmatpush1.msra.mxu0 0.0
  %745 = vmatprep.subr.mxu0 0.0
  %746 = vmatpush1.msra.mxu0 0.0
  %747 = vmatprep.subr.mxu0 0.0
  %748 = vmatpush1.msra.mxu0 0.0
  %749 = vmatprep.subr.mxu0 0.0
  %750 = vmatpush1.msra.mxu0 0.0
  %751 = vmatprep.subr.mxu0 0.0
  %752 = vmatpush1.msra.mxu0 0.0
  %753 = vmatprep.subr.mxu0 0.0
  %754 = vmatpush1.msra.mxu0 0.0
  %755 = vmatprep.subr.mxu0 0.0
  %756 = vmatpush1.msra.mxu0 0.0
  %757 = vmatprep.subr.mxu0 0.0
  %758 = vmatpush1.msra.mxu0 0.0
  %759 = vmatprep.mubr.f32.mxu0 0.0
  %760 = vmatmul.mubr.f32.gmra.mrb[0].mxu0 %v693
  %v761 = vpop.f32.mrb[0].mxu0
  %v762 = vadd.f32 %v111, %v761
  %v763 = vpop.f32.mrb[0].mxu0
  %v764 = vadd.f32 %v115, %v763
  %765 = vdwg.mxu0
  %766 = vmatprep.subr.mxu0 %v29
  %767 = vmatpush1.msra.mxu0 %v28
  %768 = vmatprep.subr.mxu0 %v171
  %769 = vmatpush1.msra.mxu0 %v168
  %770 = vmatprep.subr.mxu0 0.0
  %771 = vmatpush1.msra.mxu0 0.0
  %772 = vmatprep.subr.mxu0 0.0
  %773 = vmatpush1.msra.mxu0 0.0
  %774 = vmatprep.subr.mxu0 0.0
  %775 = vmatpush1.msra.mxu0 0.0
  %776 = vmatprep.subr.mxu0 0.0
  %777 = vmatpush1.msra.mxu0 0.0
  %778 = vmatprep.subr.mxu0 0.0
  %779 = vmatpush1.msra.mxu0 0.0
  %780 = vmatprep.subr.mxu0 0.0
  %781 = vmatpush1.msra.mxu0 0.0
  %782 = vmatprep.subr.mxu0 0.0
  %783 = vmatpush1.msra.mxu0 0.0
  %784 = vmatprep.subr.mxu0 0.0
  %785 = vmatpush1.msra.mxu0 0.0
  %786 = vmatprep.subr.mxu0 0.0
  %787 = vmatpush1.msra.mxu0 0.0
  %788 = vmatprep.subr.mxu0 0.0
  %789 = vmatpush1.msra.mxu0 0.0
  %790 = vmatprep.subr.mxu0 0.0
  %791 = vmatpush1.msra.mxu0 0.0
  %792 = vmatprep.subr.mxu0 0.0
  %793 = vmatpush1.msra.mxu0 0.0
  %794 = vmatprep.subr.mxu0 0.0
  %795 = vmatpush1.msra.mxu0 0.0
  %796 = vmatprep.subr.mxu0 0.0
  %797 = vmatpush1.msra.mxu0 0.0
  %798 = vmatprep.subr.mxu0 0.0
  %799 = vmatpush1.msra.mxu0 0.0
  %800 = vmatprep.subr.mxu0 0.0
  %801 = vmatpush1.msra.mxu0 0.0
  %802 = vmatprep.subr.mxu0 0.0
  %803 = vmatpush1.msra.mxu0 0.0
  %804 = vmatprep.subr.mxu0 0.0
  %805 = vmatpush1.msra.mxu0 0.0
  %806 = vmatprep.subr.mxu0 0.0
  %807 = vmatpush1.msra.mxu0 0.0
  %808 = vmatprep.subr.mxu0 0.0
  %809 = vmatpush1.msra.mxu0 0.0
  %810 = vmatprep.subr.mxu0 0.0
  %811 = vmatpush1.msra.mxu0 0.0
  %812 = vmatprep.subr.mxu0 0.0
  %813 = vmatpush1.msra.mxu0 0.0
  %814 = vmatprep.subr.mxu0 0.0
  %815 = vmatpush1.msra.mxu0 0.0
  %816 = vmatprep.subr.mxu0 0.0
  %817 = vmatpush1.msra.mxu0 0.0
  %818 = vmatprep.subr.mxu0 0.0
  %819 = vmatpush1.msra.mxu0 0.0
  %820 = vmatprep.subr.mxu0 0.0
  %821 = vmatpush1.msra.mxu0 0.0
  %822 = vmatprep.subr.mxu0 0.0
  %823 = vmatpush1.msra.mxu0 0.0
  %824 = vmatprep.subr.mxu0 0.0
  %825 = vmatpush1.msra.mxu0 0.0
  %826 = vmatprep.subr.mxu0 0.0
  %827 = vmatpush1.msra.mxu0 0.0
  %828 = vmatprep.subr.mxu0 0.0
  %829 = vmatpush1.msra.mxu0 0.0
  %830 = vmatprep.mubr.f32.mxu0 0.0
  %831 = vmatmul.mubr.f32.gmra.mrb[0].mxu0 %v693
  %v832 = vpop.f32.mrb[0].mxu0
  %v833 = vadd.f32 %v119, %v832
  %v834 = vpop.f32.mrb[0].mxu0
  %v835 = vadd.f32 %v123, %v834
  %836 = vdwg.mxu0
  %v837 = vld [vmem:[%s0 + $0x4] sm:$0x1]
  %v838 = vld [vmem:[%s0 + $0xc] sm:$0x1]
  %v839 = vld [vmem:[%s0 + $0x14] sm:$0x1]
  %v840 = vld [vmem:[%s0 + $0x1c] sm:$0x1]
  %v841 = vld [vmem:[%s0 + $0x24] sm:$0x1]
  %v842 = vld [vmem:[%s0 + $0x2c] sm:$0x1]
  %v843 = vld [vmem:[%s0 + $0x34] sm:$0x1]
  %v844 = vld [vmem:[%s0 + $0x3c] sm:$0x1]
  %v853 = vrot.slane %v838, 7
  %v854 = vsel %vm137, %v853, %v837
  %v855 = vrot.slane %v839, 6
  %v856 = vsel %vm140, %v855, %v854
  %v857 = vrot.slane %v840, 5
  %v858 = vsel %vm143, %v857, %v856
  %v859 = vrot.slane %v841, 4
  %v860 = vsel %vm146, %v859, %v858
  %v861 = vrot.slane %v842, 3
  %v862 = vsel %vm149, %v861, %v860
  %v863 = vrot.slane %v843, 2
  %v864 = vsel %vm152, %v863, %v862
  %v865 = vrot.slane %v844, 1
  %v866 = vsel %vm155, %v865, %v864
  %v867 = vsel %vm157, %v866, 0
  %869 = vmatprep.subr.mxu0 %v27
  %870 = vmatpush1.msra.mxu0 %v26
  %871 = vmatprep.subr.mxu0 %v165
  %872 = vmatpush1.msra.mxu0 %v162
  %873 = vmatprep.subr.mxu0 0.0
  %874 = vmatpush1.msra.mxu0 0.0
  %875 = vmatprep.subr.mxu0 0.0
  %876 = vmatpush1.msra.mxu0 0.0
  %877 = vmatprep.subr.mxu0 0.0
  %878 = vmatpush1.msra.mxu0 0.0
  %879 = vmatprep.subr.mxu0 0.0
  %880 = vmatpush1.msra.mxu0 0.0
  %881 = vmatprep.subr.mxu0 0.0
  %882 = vmatpush1.msra.mxu0 0.0
  %883 = vmatprep.subr.mxu0 0.0
  %884 = vmatpush1.msra.mxu0 0.0
  %885 = vmatprep.subr.mxu0 0.0
  %886 = vmatpush1.msra.mxu0 0.0
  %887 = vmatprep.subr.mxu0 0.0
  %888 = vmatpush1.msra.mxu0 0.0
  %889 = vmatprep.subr.mxu0 0.0
  %890 = vmatpush1.msra.mxu0 0.0
  %891 = vmatprep.subr.mxu0 0.0
  %892 = vmatpush1.msra.mxu0 0.0
  %893 = vmatprep.subr.mxu0 0.0
  %894 = vmatpush1.msra.mxu0 0.0
  %895 = vmatprep.subr.mxu0 0.0
  %896 = vmatpush1.msra.mxu0 0.0
  %897 = vmatprep.subr.mxu0 0.0
  %898 = vmatpush1.msra.mxu0 0.0
  %899 = vmatprep.subr.mxu0 0.0
  %900 = vmatpush1.msra.mxu0 0.0
  %901 = vmatprep.subr.mxu0 0.0
  %902 = vmatpush1.msra.mxu0 0.0
  %903 = vmatprep.subr.mxu0 0.0
  %904 = vmatpush1.msra.mxu0 0.0
  %905 = vmatprep.subr.mxu0 0.0
  %906 = vmatpush1.msra.mxu0 0.0
  %907 = vmatprep.subr.mxu0 0.0
  %908 = vmatpush1.msra.mxu0 0.0
  %909 = vmatprep.subr.mxu0 0.0
  %910 = vmatpush1.msra.mxu0 0.0
  %911 = vmatprep.subr.mxu0 0.0
  %912 = vmatpush1.msra.mxu0 0.0
  %913 = vmatprep.subr.mxu0 0.0
  %914 = vmatpush1.msra.mxu0 0.0
  %915 = vmatprep.subr.mxu0 0.0
  %916 = vmatpush1.msra.mxu0 0.0
  %917 = vmatprep.subr.mxu0 0.0
  %918 = vmatpush1.msra.mxu0 0.0
  %919 = vmatprep.subr.mxu0 0.0
  %920 = vmatpush1.msra.mxu0 0.0
  %921 = vmatprep.subr.mxu0 0.0
  %922 = vmatpush1.msra.mxu0 0.0
  %923 = vmatprep.subr.mxu0 0.0
  %924 = vmatpush1.msra.mxu0 0.0
  %925 = vmatprep.subr.mxu0 0.0
  %926 = vmatpush1.msra.mxu0 0.0
  %927 = vmatprep.subr.mxu0 0.0
  %928 = vmatpush1.msra.mxu0 0.0
  %929 = vmatprep.subr.mxu0 0.0
  %930 = vmatpush1.msra.mxu0 0.0
  %931 = vmatprep.subr.mxu0 0.0
  %932 = vmatpush1.msra.mxu0 0.0
  %933 = vmatprep.mubr.f32.mxu0 0.0
  %934 = vmatmul.mubr.f32.gmra.mrb[0].mxu0 %v867
  %v935 = vpop.f32.mrb[0].mxu0
  %v936 = vadd.f32 %v111, %v935
  %v937 = vpop.f32.mrb[0].mxu0
  %v938 = vadd.f32 %v115, %v937
  %939 = vdwg.mxu0
  %940 = vmatprep.subr.mxu0 %v29
  %941 = vmatpush1.msra.mxu0 %v28
  %942 = vmatprep.subr.mxu0 %v171
  %943 = vmatpush1.msra.mxu0 %v168
  %944 = vmatprep.subr.mxu0 0.0
  %945 = vmatpush1.msra.mxu0 0.0
  %946 = vmatprep.subr.mxu0 0.0
  %947 = vmatpush1.msra.mxu0 0.0
  %948 = vmatprep.subr.mxu0 0.0
  %949 = vmatpush1.msra.mxu0 0.0
  %950 = vmatprep.subr.mxu0 0.0
  %951 = vmatpush1.msra.mxu0 0.0
  %952 = vmatprep.subr.mxu0 0.0
  %953 = vmatpush1.msra.mxu0 0.0
  %954 = vmatprep.subr.mxu0 0.0
  %955 = vmatpush1.msra.mxu0 0.0
  %956 = vmatprep.subr.mxu0 0.0
  %957 = vmatpush1.msra.mxu0 0.0
  %958 = vmatprep.subr.mxu0 0.0
  %959 = vmatpush1.msra.mxu0 0.0
  %960 = vmatprep.subr.mxu0 0.0
  %961 = vmatpush1.msra.mxu0 0.0
  %962 = vmatprep.subr.mxu0 0.0
  %963 = vmatpush1.msra.mxu0 0.0
  %964 = vmatprep.subr.mxu0 0.0
  %965 = vmatpush1.msra.mxu0 0.0
  %966 = vmatprep.subr.mxu0 0.0
  %967 = vmatpush1.msra.mxu0 0.0
  %968 = vmatprep.subr.mxu0 0.0
  %969 = vmatpush1.msra.mxu0 0.0
  %970 = vmatprep.subr.mxu0 0.0
  %971 = vmatpush1.msra.mxu0 0.0
  %972 = vmatprep.subr.mxu0 0.0
  %973 = vmatpush1.msra.mxu0 0.0
  %974 = vmatprep.subr.mxu0 0.0
  %975 = vmatpush1.msra.mxu0 0.0
  %976 = vmatprep.subr.mxu0 0.0
  %977 = vmatpush1.msra.mxu0 0.0
  %978 = vmatprep.subr.mxu0 0.0
  %979 = vmatpush1.msra.mxu0 0.0
  %980 = vmatprep.subr.mxu0 0.0
  %981 = vmatpush1.msra.mxu0 0.0
  %982 = vmatprep.subr.mxu0 0.0
  %983 = vmatpush1.msra.mxu0 0.0
  %984 = vmatprep.subr.mxu0 0.0
  %985 = vmatpush1.msra.mxu0 0.0
  %986 = vmatprep.subr.mxu0 0.0
  %987 = vmatpush1.msra.mxu0 0.0
  %988 = vmatprep.subr.mxu0 0.0
  %989 = vmatpush1.msra.mxu0 0.0
  %990 = vmatprep.subr.mxu0 0.0
  %991 = vmatpush1.msra.mxu0 0.0
  %992 = vmatprep.subr.mxu0 0.0
  %993 = vmatpush1.msra.mxu0 0.0
  %994 = vmatprep.subr.mxu0 0.0
  %995 = vmatpush1.msra.mxu0 0.0
  %996 = vmatprep.subr.mxu0 0.0
  %997 = vmatpush1.msra.mxu0 0.0
  %998 = vmatprep.subr.mxu0 0.0
  %999 = vmatpush1.msra.mxu0 0.0
  %1000 = vmatprep.subr.mxu0 0.0
  %1001 = vmatpush1.msra.mxu0 0.0
  %1002 = vmatprep.subr.mxu0 0.0
  %1003 = vmatpush1.msra.mxu0 0.0
  %1004 = vmatprep.mubr.f32.mxu0 0.0
  %1005 = vmatmul.mubr.f32.gmra.mrb[0].mxu0 %v867
  %v1006 = vpop.f32.mrb[0].mxu0
  %v1007 = vadd.f32 %v119, %v1006
  %v1008 = vpop.f32.mrb[0].mxu0
  %v1009 = vadd.f32 %v123, %v1008
  %1010 = vdwg.mxu0
  %v1011 = vld [vmem:[%s0 + $0x5] sm:$0x1]
  %v1012 = vld [vmem:[%s0 + $0xd] sm:$0x1]
  %v1013 = vld [vmem:[%s0 + $0x15] sm:$0x1]
  %v1014 = vld [vmem:[%s0 + $0x1d] sm:$0x1]
  %v1015 = vld [vmem:[%s0 + $0x25] sm:$0x1]
  %v1016 = vld [vmem:[%s0 + $0x2d] sm:$0x1]
  %v1017 = vld [vmem:[%s0 + $0x35] sm:$0x1]
  %v1018 = vld [vmem:[%s0 + $0x3d] sm:$0x1]
  %v1027 = vrot.slane %v1012, 7
  %v1028 = vsel %vm137, %v1027, %v1011
  %v1029 = vrot.slane %v1013, 6
  %v1030 = vsel %vm140, %v1029, %v1028
  %v1031 = vrot.slane %v1014, 5
  %v1032 = vsel %vm143, %v1031, %v1030
  %v1033 = vrot.slane %v1015, 4
  %v1034 = vsel %vm146, %v1033, %v1032
  %v1035 = vrot.slane %v1016, 3
  %v1036 = vsel %vm149, %v1035, %v1034
  %v1037 = vrot.slane %v1017, 2
  %v1038 = vsel %vm152, %v1037, %v1036
  %v1039 = vrot.slane %v1018, 1
  %v1040 = vsel %vm155, %v1039, %v1038
  %v1041 = vsel %vm157, %v1040, 0
  %1043 = vmatprep.subr.mxu0 %v27
  %1044 = vmatpush1.msra.mxu0 %v26
  %1045 = vmatprep.subr.mxu0 %v165
  %1046 = vmatpush1.msra.mxu0 %v162
  %1047 = vmatprep.subr.mxu0 0.0
  %1048 = vmatpush1.msra.mxu0 0.0
  %1049 = vmatprep.subr.mxu0 0.0
  %1050 = vmatpush1.msra.mxu0 0.0
  %1051 = vmatprep.subr.mxu0 0.0
  %1052 = vmatpush1.msra.mxu0 0.0
  %1053 = vmatprep.subr.mxu0 0.0
  %1054 = vmatpush1.msra.mxu0 0.0
  %1055 = vmatprep.subr.mxu0 0.0
  %1056 = vmatpush1.msra.mxu0 0.0
  %1057 = vmatprep.subr.mxu0 0.0
  %1058 = vmatpush1.msra.mxu0 0.0
  %1059 = vmatprep.subr.mxu0 0.0
  %1060 = vmatpush1.msra.mxu0 0.0
  %1061 = vmatprep.subr.mxu0 0.0
  %1062 = vmatpush1.msra.mxu0 0.0
  %1063 = vmatprep.subr.mxu0 0.0
  %1064 = vmatpush1.msra.mxu0 0.0
  %1065 = vmatprep.subr.mxu0 0.0
  %1066 = vmatpush1.msra.mxu0 0.0
  %1067 = vmatprep.subr.mxu0 0.0
  %1068 = vmatpush1.msra.mxu0 0.0
  %1069 = vmatprep.subr.mxu0 0.0
  %1070 = vmatpush1.msra.mxu0 0.0
  %1071 = vmatprep.subr.mxu0 0.0
  %1072 = vmatpush1.msra.mxu0 0.0
  %1073 = vmatprep.subr.mxu0 0.0
  %1074 = vmatpush1.msra.mxu0 0.0
  %1075 = vmatprep.subr.mxu0 0.0
  %1076 = vmatpush1.msra.mxu0 0.0
  %1077 = vmatprep.subr.mxu0 0.0
  %1078 = vmatpush1.msra.mxu0 0.0
  %1079 = vmatprep.subr.mxu0 0.0
  %1080 = vmatpush1.msra.mxu0 0.0
  %1081 = vmatprep.subr.mxu0 0.0
  %1082 = vmatpush1.msra.mxu0 0.0
  %1083 = vmatprep.subr.mxu0 0.0
  %1084 = vmatpush1.msra.mxu0 0.0
  %1085 = vmatprep.subr.mxu0 0.0
  %1086 = vmatpush1.msra.mxu0 0.0
  %1087 = vmatprep.subr.mxu0 0.0
  %1088 = vmatpush1.msra.mxu0 0.0
  %1089 = vmatprep.subr.mxu0 0.0
  %1090 = vmatpush1.msra.mxu0 0.0
  %1091 = vmatprep.subr.mxu0 0.0
  %1092 = vmatpush1.msra.mxu0 0.0
  %1093 = vmatprep.subr.mxu0 0.0
  %1094 = vmatpush1.msra.mxu0 0.0
  %1095 = vmatprep.subr.mxu0 0.0
  %1096 = vmatpush1.msra.mxu0 0.0
  %1097 = vmatprep.subr.mxu0 0.0
  %1098 = vmatpush1.msra.mxu0 0.0
  %1099 = vmatprep.subr.mxu0 0.0
  %1100 = vmatpush1.msra.mxu0 0.0
  %1101 = vmatprep.subr.mxu0 0.0
  %1102 = vmatpush1.msra.mxu0 0.0
  %1103 = vmatprep.subr.mxu0 0.0
  %1104 = vmatpush1.msra.mxu0 0.0
  %1105 = vmatprep.subr.mxu0 0.0
  %1106 = vmatpush1.msra.mxu0 0.0
  %1107 = vmatprep.mubr.f32.mxu0 0.0
  %1108 = vmatmul.mubr.f32.gmra.mrb[0].mxu0 %v1041
  %v1109 = vpop.f32.mrb[0].mxu0
  %v1110 = vadd.f32 %v111, %v1109
  %v1111 = vpop.f32.mrb[0].mxu0
  %v1112 = vadd.f32 %v115, %v1111
  %1113 = vdwg.mxu0
  %1114 = vmatprep.subr.mxu0 %v29
  %1115 = vmatpush1.msra.mxu0 %v28
  %1116 = vmatprep.subr.mxu0 %v171
  %1117 = vmatpush1.msra.mxu0 %v168
  %1118 = vmatprep.subr.mxu0 0.0
  %1119 = vmatpush1.msra.mxu0 0.0
  %1120 = vmatprep.subr.mxu0 0.0
  %1121 = vmatpush1.msra.mxu0 0.0
  %1122 = vmatprep.subr.mxu0 0.0
  %1123 = vmatpush1.msra.mxu0 0.0
  %1124 = vmatprep.subr.mxu0 0.0
  %1125 = vmatpush1.msra.mxu0 0.0
  %1126 = vmatprep.subr.mxu0 0.0
  %1127 = vmatpush1.msra.mxu0 0.0
  %1128 = vmatprep.subr.mxu0 0.0
  %1129 = vmatpush1.msra.mxu0 0.0
  %1130 = vmatprep.subr.mxu0 0.0
  %1131 = vmatpush1.msra.mxu0 0.0
  %1132 = vmatprep.subr.mxu0 0.0
  %1133 = vmatpush1.msra.mxu0 0.0
  %1134 = vmatprep.subr.mxu0 0.0
  %1135 = vmatpush1.msra.mxu0 0.0
  %1136 = vmatprep.subr.mxu0 0.0
  %1137 = vmatpush1.msra.mxu0 0.0
  %1138 = vmatprep.subr.mxu0 0.0
  %1139 = vmatpush1.msra.mxu0 0.0
  %1140 = vmatprep.subr.mxu0 0.0
  %1141 = vmatpush1.msra.mxu0 0.0
  %1142 = vmatprep.subr.mxu0 0.0
  %1143 = vmatpush1.msra.mxu0 0.0
  %1144 = vmatprep.subr.mxu0 0.0
  %1145 = vmatpush1.msra.mxu0 0.0
  %1146 = vmatprep.subr.mxu0 0.0
  %1147 = vmatpush1.msra.mxu0 0.0
  %1148 = vmatprep.subr.mxu0 0.0
  %1149 = vmatpush1.msra.mxu0 0.0
  %1150 = vmatprep.subr.mxu0 0.0
  %1151 = vmatpush1.msra.mxu0 0.0
  %1152 = vmatprep.subr.mxu0 0.0
  %1153 = vmatpush1.msra.mxu0 0.0
  %1154 = vmatprep.subr.mxu0 0.0
  %1155 = vmatpush1.msra.mxu0 0.0
  %1156 = vmatprep.subr.mxu0 0.0
  %1157 = vmatpush1.msra.mxu0 0.0
  %1158 = vmatprep.subr.mxu0 0.0
  %1159 = vmatpush1.msra.mxu0 0.0
  %1160 = vmatprep.subr.mxu0 0.0
  %1161 = vmatpush1.msra.mxu0 0.0
  %1162 = vmatprep.subr.mxu0 0.0
  %1163 = vmatpush1.msra.mxu0 0.0
  %1164 = vmatprep.subr.mxu0 0.0
  %1165 = vmatpush1.msra.mxu0 0.0
  %1166 = vmatprep.subr.mxu0 0.0
  %1167 = vmatpush1.msra.mxu0 0.0
  %1168 = vmatprep.subr.mxu0 0.0
  %1169 = vmatpush1.msra.mxu0 0.0
  %1170 = vmatprep.subr.mxu0 0.0
  %1171 = vmatpush1.msra.mxu0 0.0
  %1172 = vmatprep.subr.mxu0 0.0
  %1173 = vmatpush1.msra.mxu0 0.0
  %1174 = vmatprep.subr.mxu0 0.0
  %1175 = vmatpush1.msra.mxu0 0.0
  %1176 = vmatprep.subr.mxu0 0.0
  %1177 = vmatpush1.msra.mxu0 0.0
  %1178 = vmatprep.mubr.f32.mxu0 0.0
  %1179 = vmatmul.mubr.f32.gmra.mrb[0].mxu0 %v1041
  %v1180 = vpop.f32.mrb[0].mxu0
  %v1181 = vadd.f32 %v119, %v1180
  %v1182 = vpop.f32.mrb[0].mxu0
  %v1183 = vadd.f32 %v123, %v1182
  %1184 = vdwg.mxu0
  %v1185 = vld [vmem:[%s0 + $0x6] sm:$0x1]
  %v1186 = vld [vmem:[%s0 + $0xe] sm:$0x1]
  %v1187 = vld [vmem:[%s0 + $0x16] sm:$0x1]
  %v1188 = vld [vmem:[%s0 + $0x1e] sm:$0x1]
  %v1189 = vld [vmem:[%s0 + $0x26] sm:$0x1]
  %v1190 = vld [vmem:[%s0 + $0x2e] sm:$0x1]
  %v1191 = vld [vmem:[%s0 + $0x36] sm:$0x1]
  %v1192 = vld [vmem:[%s0 + $0x3e] sm:$0x1]
  %v1201 = vrot.slane %v1186, 7
  %v1202 = vsel %vm137, %v1201, %v1185
  %v1203 = vrot.slane %v1187, 6
  %v1204 = vsel %vm140, %v1203, %v1202
  %v1205 = vrot.slane %v1188, 5
  %v1206 = vsel %vm143, %v1205, %v1204
  %v1207 = vrot.slane %v1189, 4
  %v1208 = vsel %vm146, %v1207, %v1206
  %v1209 = vrot.slane %v1190, 3
  %v1210 = vsel %vm149, %v1209, %v1208
  %v1211 = vrot.slane %v1191, 2
  %v1212 = vsel %vm152, %v1211, %v1210
  %v1213 = vrot.slane %v1192, 1
  %v1214 = vsel %vm155, %v1213, %v1212
  %v1215 = vsel %vm157, %v1214, 0
  %1217 = vmatprep.subr.mxu0 %v27
  %1218 = vmatpush1.msra.mxu0 %v26
  %1219 = vmatprep.subr.mxu0 %v165
  %1220 = vmatpush1.msra.mxu0 %v162
  %1221 = vmatprep.subr.mxu0 0.0
  %1222 = vmatpush1.msra.mxu0 0.0
  %1223 = vmatprep.subr.mxu0 0.0
  %1224 = vmatpush1.msra.mxu0 0.0
  %1225 = vmatprep.subr.mxu0 0.0
  %1226 = vmatpush1.msra.mxu0 0.0
  %1227 = vmatprep.subr.mxu0 0.0
  %1228 = vmatpush1.msra.mxu0 0.0
  %1229 = vmatprep.subr.mxu0 0.0
  %1230 = vmatpush1.msra.mxu0 0.0
  %1231 = vmatprep.subr.mxu0 0.0
  %1232 = vmatpush1.msra.mxu0 0.0
  %1233 = vmatprep.subr.mxu0 0.0
  %1234 = vmatpush1.msra.mxu0 0.0
  %1235 = vmatprep.subr.mxu0 0.0
  %1236 = vmatpush1.msra.mxu0 0.0
  %1237 = vmatprep.subr.mxu0 0.0
  %1238 = vmatpush1.msra.mxu0 0.0
  %1239 = vmatprep.subr.mxu0 0.0
  %1240 = vmatpush1.msra.mxu0 0.0
  %1241 = vmatprep.subr.mxu0 0.0
  %1242 = vmatpush1.msra.mxu0 0.0
  %1243 = vmatprep.subr.mxu0 0.0
  %1244 = vmatpush1.msra.mxu0 0.0
  %1245 = vmatprep.subr.mxu0 0.0
  %1246 = vmatpush1.msra.mxu0 0.0
  %1247 = vmatprep.subr.mxu0 0.0
  %1248 = vmatpush1.msra.mxu0 0.0
  %1249 = vmatprep.subr.mxu0 0.0
  %1250 = vmatpush1.msra.mxu0 0.0
  %1251 = vmatprep.subr.mxu0 0.0
  %1252 = vmatpush1.msra.mxu0 0.0
  %1253 = vmatprep.subr.mxu0 0.0
  %1254 = vmatpush1.msra.mxu0 0.0
  %1255 = vmatprep.subr.mxu0 0.0
  %1256 = vmatpush1.msra.mxu0 0.0
  %1257 = vmatprep.subr.mxu0 0.0
  %1258 = vmatpush1.msra.mxu0 0.0
  %1259 = vmatprep.subr.mxu0 0.0
  %1260 = vmatpush1.msra.mxu0 0.0
  %1261 = vmatprep.subr.mxu0 0.0
  %1262 = vmatpush1.msra.mxu0 0.0
  %1263 = vmatprep.subr.mxu0 0.0
  %1264 = vmatpush1.msra.mxu0 0.0
  %1265 = vmatprep.subr.mxu0 0.0
  %1266 = vmatpush1.msra.mxu0 0.0
  %1267 = vmatprep.subr.mxu0 0.0
  %1268 = vmatpush1.msra.mxu0 0.0
  %1269 = vmatprep.subr.mxu0 0.0
  %1270 = vmatpush1.msra.mxu0 0.0
  %1271 = vmatprep.subr.mxu0 0.0
  %1272 = vmatpush1.msra.mxu0 0.0
  %1273 = vmatprep.subr.mxu0 0.0
  %1274 = vmatpush1.msra.mxu0 0.0
  %1275 = vmatprep.subr.mxu0 0.0
  %1276 = vmatpush1.msra.mxu0 0.0
  %1277 = vmatprep.subr.mxu0 0.0
  %1278 = vmatpush1.msra.mxu0 0.0
  %1279 = vmatprep.subr.mxu0 0.0
  %1280 = vmatpush1.msra.mxu0 0.0
  %1281 = vmatprep.mubr.f32.mxu0 0.0
  %1282 = vmatmul.mubr.f32.gmra.mrb[0].mxu0 %v1215
  %v1283 = vpop.f32.mrb[0].mxu0
  %v1284 = vadd.f32 %v111, %v1283
  %v1285 = vpop.f32.mrb[0].mxu0
  %v1286 = vadd.f32 %v115, %v1285
  %1287 = vdwg.mxu0
  %1288 = vmatprep.subr.mxu0 %v29
  %1289 = vmatpush1.msra.mxu0 %v28
  %1290 = vmatprep.subr.mxu0 %v171
  %1291 = vmatpush1.msra.mxu0 %v168
  %1292 = vmatprep.subr.mxu0 0.0
  %1293 = vmatpush1.msra.mxu0 0.0
  %1294 = vmatprep.subr.mxu0 0.0
  %1295 = vmatpush1.msra.mxu0 0.0
  %1296 = vmatprep.subr.mxu0 0.0
  %1297 = vmatpush1.msra.mxu0 0.0
  %1298 = vmatprep.subr.mxu0 0.0
  %1299 = vmatpush1.msra.mxu0 0.0
  %1300 = vmatprep.subr.mxu0 0.0
  %1301 = vmatpush1.msra.mxu0 0.0
  %1302 = vmatprep.subr.mxu0 0.0
  %1303 = vmatpush1.msra.mxu0 0.0
  %1304 = vmatprep.subr.mxu0 0.0
  %1305 = vmatpush1.msra.mxu0 0.0
  %1306 = vmatprep.subr.mxu0 0.0
  %1307 = vmatpush1.msra.mxu0 0.0
  %1308 = vmatprep.subr.mxu0 0.0
  %1309 = vmatpush1.msra.mxu0 0.0
  %1310 = vmatprep.subr.mxu0 0.0
  %1311 = vmatpush1.msra.mxu0 0.0
  %1312 = vmatprep.subr.mxu0 0.0
  %1313 = vmatpush1.msra.mxu0 0.0
  %1314 = vmatprep.subr.mxu0 0.0
  %1315 = vmatpush1.msra.mxu0 0.0
  %1316 = vmatprep.subr.mxu0 0.0
  %1317 = vmatpush1.msra.mxu0 0.0
  %1318 = vmatprep.subr.mxu0 0.0
  %1319 = vmatpush1.msra.mxu0 0.0
  %1320 = vmatprep.subr.mxu0 0.0
  %1321 = vmatpush1.msra.mxu0 0.0
  %1322 = vmatprep.subr.mxu0 0.0
  %1323 = vmatpush1.msra.mxu0 0.0
  %1324 = vmatprep.subr.mxu0 0.0
  %1325 = vmatpush1.msra.mxu0 0.0
  %1326 = vmatprep.subr.mxu0 0.0
  %1327 = vmatpush1.msra.mxu0 0.0
  %1328 = vmatprep.subr.mxu0 0.0
  %1329 = vmatpush1.msra.mxu0 0.0
  %1330 = vmatprep.subr.mxu0 0.0
  %1331 = vmatpush1.msra.mxu0 0.0
  %1332 = vmatprep.subr.mxu0 0.0
  %1333 = vmatpush1.msra.mxu0 0.0
  %1334 = vmatprep.subr.mxu0 0.0
  %1335 = vmatpush1.msra.mxu0 0.0
  %1336 = vmatprep.subr.mxu0 0.0
  %1337 = vmatpush1.msra.mxu0 0.0
  %1338 = vmatprep.subr.mxu0 0.0
  %1339 = vmatpush1.msra.mxu0 0.0
  %1340 = vmatprep.subr.mxu0 0.0
  %1341 = vmatpush1.msra.mxu0 0.0
  %1342 = vmatprep.subr.mxu0 0.0
  %1343 = vmatpush1.msra.mxu0 0.0
  %1344 = vmatprep.subr.mxu0 0.0
  %1345 = vmatpush1.msra.mxu0 0.0
  %1346 = vmatprep.subr.mxu0 0.0
  %1347 = vmatpush1.msra.mxu0 0.0
  %1348 = vmatprep.subr.mxu0 0.0
  %1349 = vmatpush1.msra.mxu0 0.0
  %1350 = vmatprep.subr.mxu0 0.0
  %1351 = vmatpush1.msra.mxu0 0.0
  %1352 = vmatprep.mubr.f32.mxu0 0.0
  %1353 = vmatmul.mubr.f32.gmra.mrb[0].mxu0 %v1215
  %v1354 = vpop.f32.mrb[0].mxu0
  %v1355 = vadd.f32 %v119, %v1354
  %v1356 = vpop.f32.mrb[0].mxu0
  %v1357 = vadd.f32 %v123, %v1356
  %1358 = vdwg.mxu0
  %v1359 = vld [vmem:[%s0 + $0x7] sm:$0x1]
  %v1360 = vld [vmem:[%s0 + $0xf] sm:$0x1]
  %v1361 = vld [vmem:[%s0 + $0x17] sm:$0x1]
  %v1362 = vld [vmem:[%s0 + $0x1f] sm:$0x1]
  %v1363 = vld [vmem:[%s0 + $0x27] sm:$0x1]
  %v1364 = vld [vmem:[%s0 + $0x2f] sm:$0x1]
  %v1365 = vld [vmem:[%s0 + $0x37] sm:$0x1]
  %v1366 = vld [vmem:[%s0 + $0x3f] sm:$0x1]
  %v1375 = vrot.slane %v1360, 7
  %v1376 = vsel %vm137, %v1375, %v1359
  %v1377 = vrot.slane %v1361, 6
  %v1378 = vsel %vm140, %v1377, %v1376
  %v1379 = vrot.slane %v1362, 5
  %v1380 = vsel %vm143, %v1379, %v1378
  %v1381 = vrot.slane %v1363, 4
  %v1382 = vsel %vm146, %v1381, %v1380
  %v1383 = vrot.slane %v1364, 3
  %v1384 = vsel %vm149, %v1383, %v1382
  %v1385 = vrot.slane %v1365, 2
  %v1386 = vsel %vm152, %v1385, %v1384
  %v1387 = vrot.slane %v1366, 1
  %v1388 = vsel %vm155, %v1387, %v1386
  %v1389 = vsel %vm157, %v1388, 0
  %1391 = vmatprep.subr.mxu0 %v27
  %1392 = vmatpush1.msra.mxu0 %v26
  %1393 = vmatprep.subr.mxu0 %v165
  %1394 = vmatpush1.msra.mxu0 %v162
  %1395 = vmatprep.subr.mxu0 0.0
  %1396 = vmatpush1.msra.mxu0 0.0
  %1397 = vmatprep.subr.mxu0 0.0
  %1398 = vmatpush1.msra.mxu0 0.0
  %1399 = vmatprep.subr.mxu0 0.0
  %1400 = vmatpush1.msra.mxu0 0.0
  %1401 = vmatprep.subr.mxu0 0.0
  %1402 = vmatpush1.msra.mxu0 0.0
  %1403 = vmatprep.subr.mxu0 0.0
  %1404 = vmatpush1.msra.mxu0 0.0
  %1405 = vmatprep.subr.mxu0 0.0
  %1406 = vmatpush1.msra.mxu0 0.0
  %1407 = vmatprep.subr.mxu0 0.0
  %1408 = vmatpush1.msra.mxu0 0.0
  %1409 = vmatprep.subr.mxu0 0.0
  %1410 = vmatpush1.msra.mxu0 0.0
  %1411 = vmatprep.subr.mxu0 0.0
  %1412 = vmatpush1.msra.mxu0 0.0
  %1413 = vmatprep.subr.mxu0 0.0
  %1414 = vmatpush1.msra.mxu0 0.0
  %1415 = vmatprep.subr.mxu0 0.0
  %1416 = vmatpush1.msra.mxu0 0.0
  %1417 = vmatprep.subr.mxu0 0.0
  %1418 = vmatpush1.msra.mxu0 0.0
  %1419 = vmatprep.subr.mxu0 0.0
  %1420 = vmatpush1.msra.mxu0 0.0
  %1421 = vmatprep.subr.mxu0 0.0
  %1422 = vmatpush1.msra.mxu0 0.0
  %1423 = vmatprep.subr.mxu0 0.0
  %1424 = vmatpush1.msra.mxu0 0.0
  %1425 = vmatprep.subr.mxu0 0.0
  %1426 = vmatpush1.msra.mxu0 0.0
  %1427 = vmatprep.subr.mxu0 0.0
  %1428 = vmatpush1.msra.mxu0 0.0
  %1429 = vmatprep.subr.mxu0 0.0
  %1430 = vmatpush1.msra.mxu0 0.0
  %1431 = vmatprep.subr.mxu0 0.0
  %1432 = vmatpush1.msra.mxu0 0.0
  %1433 = vmatprep.subr.mxu0 0.0
  %1434 = vmatpush1.msra.mxu0 0.0
  %1435 = vmatprep.subr.mxu0 0.0
  %1436 = vmatpush1.msra.mxu0 0.0
  %1437 = vmatprep.subr.mxu0 0.0
  %1438 = vmatpush1.msra.mxu0 0.0
  %1439 = vmatprep.subr.mxu0 0.0
  %1440 = vmatpush1.msra.mxu0 0.0
  %1441 = vmatprep.subr.mxu0 0.0
  %1442 = vmatpush1.msra.mxu0 0.0
  %1443 = vmatprep.subr.mxu0 0.0
  %1444 = vmatpush1.msra.mxu0 0.0
  %1445 = vmatprep.subr.mxu0 0.0
  %1446 = vmatpush1.msra.mxu0 0.0
  %1447 = vmatprep.subr.mxu0 0.0
  %1448 = vmatpush1.msra.mxu0 0.0
  %1449 = vmatprep.subr.mxu0 0.0
  %1450 = vmatpush1.msra.mxu0 0.0
  %1451 = vmatprep.subr.mxu0 0.0
  %1452 = vmatpush1.msra.mxu0 0.0
  %1453 = vmatprep.subr.mxu0 0.0
  %1454 = vmatpush1.msra.mxu0 0.0
  %1455 = vmatprep.mubr.f32.mxu0 0.0
  %1456 = vmatmul.mubr.f32.gmra.mrb[0].mxu0 %v1389
  %v1457 = vpop.f32.mrb[0].mxu0
  %v1458 = vadd.f32 %v111, %v1457
  %v1459 = vpop.f32.mrb[0].mxu0
  %v1460 = vadd.f32 %v115, %v1459
  %1461 = vdwg.mxu0
  %1462 = vmatprep.subr.mxu0 %v29
  %1463 = vmatpush1.msra.mxu0 %v28
  %1464 = vmatprep.subr.mxu0 %v171
  %1465 = vmatpush1.msra.mxu0 %v168
  %1466 = vmatprep.subr.mxu0 0.0
  %1467 = vmatpush1.msra.mxu0 0.0
  %1468 = vmatprep.subr.mxu0 0.0
  %1469 = vmatpush1.msra.mxu0 0.0
  %1470 = vmatprep.subr.mxu0 0.0
  %1471 = vmatpush1.msra.mxu0 0.0
  %1472 = vmatprep.subr.mxu0 0.0
  %1473 = vmatpush1.msra.mxu0 0.0
  %1474 = vmatprep.subr.mxu0 0.0
  %1475 = vmatpush1.msra.mxu0 0.0
  %1476 = vmatprep.subr.mxu0 0.0
  %1477 = vmatpush1.msra.mxu0 0.0
  %1478 = vmatprep.subr.mxu0 0.0
  %1479 = vmatpush1.msra.mxu0 0.0
  %1480 = vmatprep.subr.mxu0 0.0
  %1481 = vmatpush1.msra.mxu0 0.0
  %1482 = vmatprep.subr.mxu0 0.0
  %1483 = vmatpush1.msra.mxu0 0.0
  %1484 = vmatprep.subr.mxu0 0.0
  %1485 = vmatpush1.msra.mxu0 0.0
  %1486 = vmatprep.subr.mxu0 0.0
  %1487 = vmatpush1.msra.mxu0 0.0
  %1488 = vmatprep.subr.mxu0 0.0
  %1489 = vmatpush1.msra.mxu0 0.0
  %1490 = vmatprep.subr.mxu0 0.0
  %1491 = vmatpush1.msra.mxu0 0.0
  %1492 = vmatprep.subr.mxu0 0.0
  %1493 = vmatpush1.msra.mxu0 0.0
  %1494 = vmatprep.subr.mxu0 0.0
  %1495 = vmatpush1.msra.mxu0 0.0
  %1496 = vmatprep.subr.mxu0 0.0
  %1497 = vmatpush1.msra.mxu0 0.0
  %1498 = vmatprep.subr.mxu0 0.0
  %1499 = vmatpush1.msra.mxu0 0.0
  %1500 = vmatprep.subr.mxu0 0.0
  %1501 = vmatpush1.msra.mxu0 0.0
  %1502 = vmatprep.subr.mxu0 0.0
  %1503 = vmatpush1.msra.mxu0 0.0
  %1504 = vmatprep.subr.mxu0 0.0
  %1505 = vmatpush1.msra.mxu0 0.0
  %1506 = vmatprep.subr.mxu0 0.0
  %1507 = vmatpush1.msra.mxu0 0.0
  %1508 = vmatprep.subr.mxu0 0.0
  %1509 = vmatpush1.msra.mxu0 0.0
  %1510 = vmatprep.subr.mxu0 0.0
  %1511 = vmatpush1.msra.mxu0 0.0
  %1512 = vmatprep.subr.mxu0 0.0
  %1513 = vmatpush1.msra.mxu0 0.0
  %1514 = vmatprep.subr.mxu0 0.0
  %1515 = vmatpush1.msra.mxu0 0.0
  %1516 = vmatprep.subr.mxu0 0.0
  %1517 = vmatpush1.msra.mxu0 0.0
  %1518 = vmatprep.subr.mxu0 0.0
  %1519 = vmatpush1.msra.mxu0 0.0
  %1520 = vmatprep.subr.mxu0 0.0
  %1521 = vmatpush1.msra.mxu0 0.0
  %1522 = vmatprep.subr.mxu0 0.0
  %1523 = vmatpush1.msra.mxu0 0.0
  %1524 = vmatprep.subr.mxu0 0.0
  %1525 = vmatpush1.msra.mxu0 0.0
  %1526 = vmatprep.mubr.f32.mxu0 0.0
  %1527 = vmatmul.mubr.f32.gmra.mrb[0].mxu0 %v1389
  %v1528 = vpop.f32.mrb[0].mxu0
  %v1529 = vadd.f32 %v119, %v1528
  %v1530 = vpop.f32.mrb[0].mxu0
  %v1531 = vadd.f32 %v123, %v1530
  %1532 = vdwg.mxu0
  %v1533 = vld [vmem:[%s1] sm:$0xff]
  %v1534 = vld [vmem:[%s2] sm:$0xff]
  %1535 = vmatprep.subr.mxu0 %v35
  %1536 = vmatpush1.msra.mxu0 %v34
  %1537 = vmatprep.subr.mxu0 %v39
  %1538 = vmatpush1.msra.mxu0 %v38
  %1539 = vmatprep.subr.mxu0 %v43
  %1540 = vmatpush1.msra.mxu0 %v42
  %1541 = vmatprep.subr.mxu0 %v47
  %1542 = vmatpush1.msra.mxu0 %v46
  %1543 = vmatprep.subr.mxu0 %v51
  %1544 = vmatpush1.msra.mxu0 %v50
  %1545 = vmatprep.subr.mxu0 %v55
  %1546 = vmatpush1.msra.mxu0 %v54
  %1547 = vmatprep.subr.mxu0 %v59
  %1548 = vmatpush1.msra.mxu0 %v58
  %1549 = vmatprep.subr.mxu0 %v63
  %1550 = vmatpush1.msra.mxu0 %v62
  %1551 = vmatprep.subr.mxu0 %v67
  %1552 = vmatpush1.msra.mxu0 %v66
  %1553 = vmatprep.subr.mxu0 %v71
  %1554 = vmatpush1.msra.mxu0 %v70
  %1555 = vmatprep.subr.mxu0 %v75
  %1556 = vmatpush1.msra.mxu0 %v74
  %1557 = vmatprep.subr.mxu0 %v79
  %1558 = vmatpush1.msra.mxu0 %v78
  %1559 = vmatprep.subr.mxu0 %v83
  %1560 = vmatpush1.msra.mxu0 %v82
  %1561 = vmatprep.subr.mxu0 %v87
  %1562 = vmatpush1.msra.mxu0 %v86
  %1563 = vmatprep.subr.mxu0 %v91
  %1564 = vmatpush1.msra.mxu0 %v90
  %1565 = vmatprep.subr.mxu0 %v95
  %1566 = vmatpush1.msra.mxu0 %v94
  %1567 = vmatprep.subr.mxu0 0.0
  %1568 = vmatpush1.msra.mxu0 0.0
  %1569 = vmatprep.subr.mxu0 0.0
  %1570 = vmatpush1.msra.mxu0 0.0
  %1571 = vmatprep.subr.mxu0 0.0
  %1572 = vmatpush1.msra.mxu0 0.0
  %1573 = vmatprep.subr.mxu0 0.0
  %1574 = vmatpush1.msra.mxu0 0.0
  %1575 = vmatprep.subr.mxu0 0.0
  %1576 = vmatpush1.msra.mxu0 0.0
  %1577 = vmatprep.subr.mxu0 0.0
  %1578 = vmatpush1.msra.mxu0 0.0
  %1579 = vmatprep.subr.mxu0 0.0
  %1580 = vmatpush1.msra.mxu0 0.0
  %1581 = vmatprep.subr.mxu0 0.0
  %1582 = vmatpush1.msra.mxu0 0.0
  %1583 = vmatprep.subr.mxu0 0.0
  %1584 = vmatpush1.msra.mxu0 0.0
  %1585 = vmatprep.subr.mxu0 0.0
  %1586 = vmatpush1.msra.mxu0 0.0
  %1587 = vmatprep.subr.mxu0 0.0
  %1588 = vmatpush1.msra.mxu0 0.0
  %1589 = vmatprep.subr.mxu0 0.0
  %1590 = vmatpush1.msra.mxu0 0.0
  %1591 = vmatprep.subr.mxu0 0.0
  %1592 = vmatpush1.msra.mxu0 0.0
  %1593 = vmatprep.subr.mxu0 0.0
  %1594 = vmatpush1.msra.mxu0 0.0
  %1595 = vmatprep.subr.mxu0 0.0
  %1596 = vmatpush1.msra.mxu0 0.0
  %1597 = vmatprep.subr.mxu0 0.0
  %1598 = vmatpush1.msra.mxu0 0.0
  %1599 = vmatprep.mubr.f32.mxu0 0.0
  %1600 = vmatmul.mubr.f32.gmra.mrb[0].mxu0 %v1533
  %v1601 = vpop.f32.mrb[0].mxu0
  %v1602 = vadd.f32 0.0, %v1601
  %v1603 = vpop.f32.mrb[0].mxu0
  %v1604 = vadd.f32 0.0, %v1603
  %1605 = vdwg.mxu0
  %1606 = vmatprep.subr.mxu0 %v37
  %1607 = vmatpush1.msra.mxu0 %v36
  %1608 = vmatprep.subr.mxu0 %v41
  %1609 = vmatpush1.msra.mxu0 %v40
  %1610 = vmatprep.subr.mxu0 %v45
  %1611 = vmatpush1.msra.mxu0 %v44
  %1612 = vmatprep.subr.mxu0 %v49
  %1613 = vmatpush1.msra.mxu0 %v48
  %1614 = vmatprep.subr.mxu0 %v53
  %1615 = vmatpush1.msra.mxu0 %v52
  %1616 = vmatprep.subr.mxu0 %v57
  %1617 = vmatpush1.msra.mxu0 %v56
  %1618 = vmatprep.subr.mxu0 %v61
  %1619 = vmatpush1.msra.mxu0 %v60
  %1620 = vmatprep.subr.mxu0 %v65
  %1621 = vmatpush1.msra.mxu0 %v64
  %1622 = vmatprep.subr.mxu0 %v69
  %1623 = vmatpush1.msra.mxu0 %v68
  %1624 = vmatprep.subr.mxu0 %v73
  %1625 = vmatpush1.msra.mxu0 %v72
  %1626 = vmatprep.subr.mxu0 %v77
  %1627 = vmatpush1.msra.mxu0 %v76
  %1628 = vmatprep.subr.mxu0 %v81
  %1629 = vmatpush1.msra.mxu0 %v80
  %1630 = vmatprep.subr.mxu0 %v85
  %1631 = vmatpush1.msra.mxu0 %v84
  %1632 = vmatprep.subr.mxu0 %v89
  %1633 = vmatpush1.msra.mxu0 %v88
  %1634 = vmatprep.subr.mxu0 %v93
  %1635 = vmatpush1.msra.mxu0 %v92
  %1636 = vmatprep.subr.mxu0 %v97
  %1637 = vmatpush1.msra.mxu0 %v96
  %1638 = vmatprep.subr.mxu0 0.0
  %1639 = vmatpush1.msra.mxu0 0.0
  %1640 = vmatprep.subr.mxu0 0.0
  %1641 = vmatpush1.msra.mxu0 0.0
  %1642 = vmatprep.subr.mxu0 0.0
  %1643 = vmatpush1.msra.mxu0 0.0
  %1644 = vmatprep.subr.mxu0 0.0
  %1645 = vmatpush1.msra.mxu0 0.0
  %1646 = vmatprep.subr.mxu0 0.0
  %1647 = vmatpush1.msra.mxu0 0.0
  %1648 = vmatprep.subr.mxu0 0.0
  %1649 = vmatpush1.msra.mxu0 0.0
  %1650 = vmatprep.subr.mxu0 0.0
  %1651 = vmatpush1.msra.mxu0 0.0
  %1652 = vmatprep.subr.mxu0 0.0
  %1653 = vmatpush1.msra.mxu0 0.0
  %1654 = vmatprep.subr.mxu0 0.0
  %1655 = vmatpush1.msra.mxu0 0.0
  %1656 = vmatprep.subr.mxu0 0.0
  %1657 = vmatpush1.msra.mxu0 0.0
  %1658 = vmatprep.subr.mxu0 0.0
  %1659 = vmatpush1.msra.mxu0 0.0
  %1660 = vmatprep.subr.mxu0 0.0
  %1661 = vmatpush1.msra.mxu0 0.0
  %1662 = vmatprep.subr.mxu0 0.0
  %1663 = vmatpush1.msra.mxu0 0.0
  %1664 = vmatprep.subr.mxu0 0.0
  %1665 = vmatpush1.msra.mxu0 0.0
  %1666 = vmatprep.subr.mxu0 0.0
  %1667 = vmatpush1.msra.mxu0 0.0
  %1668 = vmatprep.subr.mxu0 0.0
  %1669 = vmatpush1.msra.mxu0 0.0
  %1670 = vmatprep.mubr.f32.mxu0 0.0
  %1671 = vmatmul.mubr.f32.gmra.mrb[0].mxu0 %v1533
  %v1672 = vpop.f32.mrb[0].mxu0
  %v1673 = vadd.f32 0.0, %v1672
  %v1674 = vpop.f32.mrb[0].mxu0
  %v1675 = vadd.f32 0.0, %v1674
  %1676 = vdwg.mxu0
  %v1677 = vadd.f32 %v240, %v1602
  %v1678 = vadd.f32 %v242, %v1604
  %v1679 = vadd.f32 %v311, %v1673
  %v1680 = vadd.f32 %v313, %v1675
  %v1681 = vxor.u32 %v1677, 2147483648
  %v1682 = vmul.f32 %v1681, 1.442695
  %v1683 = vpow.pop %v1682
  %v1684 = vadd.f32 %v1683, 1.0
  %v1685 = vrcp.pop %v1684
  %v1686 = vmul.f32 1.0, %v1685
  %v1687 = vxor.u32 %v1678, 2147483648
  %v1688 = vmul.f32 %v1687, 1.442695
  %v1689 = vpow.pop %v1688
  %v1690 = vadd.f32 %v1689, 1.0
  %v1691 = vrcp.pop %v1690
  %v1692 = vmul.f32 1.0, %v1691
  %v1693 = vtanh.pop %v1679
  %v1694 = vxor.u32 %v1680, 2147483648
  %v1695 = vmul.f32 %v1694, 1.442695
  %v1696 = vpow.pop %v1695
  %v1697 = vadd.f32 %v1696, 1.0
  %v1698 = vrcp.pop %v1697
  %v1699 = vmul.f32 1.0, %v1698
  %v1700 = vmul.f32 %v1692, %v1534
  %v1701 = vmul.f32 %v1686, %v1693
  %v1702 = vadd.f32 %v1700, %v1701
  %v1703 = vtanh.pop %v1702
  %v1704 = vmul.f32 %v1699, %v1703
  %v1706 = vcombine.high %v1704, %v1704
  %v1708 = vunpack.c.l.s4 1966171168
  %v1709 = vunpack.c.0.s8 %v1708
  %v1710 = vlaneseq
  %v1711 = vshrl.u32 %v1710, 7
  %v1712 = vsub.s32 %v1709, %v1711
  %v1713 = vrot.slane %v1704, %v1712
  %v1715 = vunpack.c.l.s4 1966171168
  %v1716 = vunpack.c.0.s8 %v1715
  %v1717 = vlaneseq
  %v1718 = vshrl.u32 %v1717, 7
  %v1719 = vsub.s32 %v1716, %v1718
  %v1720 = vrot.slane %v1706, %v1719
  %v1721 = vcombine.high %v1713, %v1713
  %v1722 = vcombine.high %v1720, %v1720
  %v1724 = vunpack.c.l.s4 1966171168
  %v1725 = vunpack.c.0.s8 %v1724
  %v1726 = vlaneseq
  %v1727 = vshrl.u32 %v1726, 7
  %v1728 = vsub.s32 %v1725, %v1727
  %v1729 = vrot.slane %v1713, %v1728
  %v1731 = vunpack.c.l.s4 1966171168
  %v1732 = vunpack.c.0.s8 %v1731
  %v1733 = vlaneseq
  %v1734 = vshrl.u32 %v1733, 7
  %v1735 = vsub.s32 %v1732, %v1734
  %v1736 = vrot.slane %v1720, %v1735
  %v1738 = vunpack.c.l.s4 1966171168
  %v1739 = vunpack.c.0.s8 %v1738
  %v1740 = vlaneseq
  %v1741 = vshrl.u32 %v1740, 7
  %v1742 = vsub.s32 %v1739, %v1741
  %v1743 = vrot.slane %v1721, %v1742
  %v1745 = vunpack.c.l.s4 1966171168
  %v1746 = vunpack.c.0.s8 %v1745
  %v1747 = vlaneseq
  %v1748 = vshrl.u32 %v1747, 7
  %v1749 = vsub.s32 %v1746, %v1748
  %v1750 = vrot.slane %v1722, %v1749
  %v1751 = vcombine.high %v1729, %v1729
  %v1752 = vcombine.high %v1736, %v1736
  %v1753 = vcombine.high %v1743, %v1743
  %v1754 = vcombine.high %v1750, %v1750
  %1763 = vst [vmem:[%s6] sm:$0x1] %v1729
  %1764 = vst [vmem:[%s6 + $0x8] sm:$0x1] %v1743
  %1765 = vst [vmem:[%s6 + $0x10] sm:$0x1] %v1751
  %1766 = vst [vmem:[%s6 + $0x18] sm:$0x1] %v1753
  %1767 = vst [vmem:[%s6 + $0x20] sm:$0x1] %v1736
  %1768 = vst [vmem:[%s6 + $0x28] sm:$0x1] %v1750
  %1769 = vst [vmem:[%s6 + $0x30] sm:$0x1] %v1752
  %1770 = vst [vmem:[%s6 + $0x38] sm:$0x1] %v1754
  %1771 = vmatprep.subr.mxu0 %v35
  %1772 = vmatpush1.msra.mxu0 %v34
  %1773 = vmatprep.subr.mxu0 %v39
  %1774 = vmatpush1.msra.mxu0 %v38
  %1775 = vmatprep.subr.mxu0 %v43
  %1776 = vmatpush1.msra.mxu0 %v42
  %1777 = vmatprep.subr.mxu0 %v47
  %1778 = vmatpush1.msra.mxu0 %v46
  %1779 = vmatprep.subr.mxu0 %v51
  %1780 = vmatpush1.msra.mxu0 %v50
  %1781 = vmatprep.subr.mxu0 %v55
  %1782 = vmatpush1.msra.mxu0 %v54
  %1783 = vmatprep.subr.mxu0 %v59
  %1784 = vmatpush1.msra.mxu0 %v58
  %1785 = vmatprep.subr.mxu0 %v63
  %1786 = vmatpush1.msra.mxu0 %v62
  %1787 = vmatprep.subr.mxu0 %v67
  %1788 = vmatpush1.msra.mxu0 %v66
  %1789 = vmatprep.subr.mxu0 %v71
  %1790 = vmatpush1.msra.mxu0 %v70
  %1791 = vmatprep.subr.mxu0 %v75
  %1792 = vmatpush1.msra.mxu0 %v74
  %1793 = vmatprep.subr.mxu0 %v79
  %1794 = vmatpush1.msra.mxu0 %v78
  %1795 = vmatprep.subr.mxu0 %v83
  %1796 = vmatpush1.msra.mxu0 %v82
  %1797 = vmatprep.subr.mxu0 %v87
  %1798 = vmatpush1.msra.mxu0 %v86
  %1799 = vmatprep.subr.mxu0 %v91
  %1800 = vmatpush1.msra.mxu0 %v90
  %1801 = vmatprep.subr.mxu0 %v95
  %1802 = vmatpush1.msra.mxu0 %v94
  %1803 = vmatprep.subr.mxu0 0.0
  %1804 = vmatpush1.msra.mxu0 0.0
  %1805 = vmatprep.subr.mxu0 0.0
  %1806 = vmatpush1.msra.mxu0 0.0
  %1807 = vmatprep.subr.mxu0 0.0
  %1808 = vmatpush1.msra.mxu0 0.0
  %1809 = vmatprep.subr.mxu0 0.0
  %1810 = vmatpush1.msra.mxu0 0.0
  %1811 = vmatprep.subr.mxu0 0.0
  %1812 = vmatpush1.msra.mxu0 0.0
  %1813 = vmatprep.subr.mxu0 0.0
  %1814 = vmatpush1.msra.mxu0 0.0
  %1815 = vmatprep.subr.mxu0 0.0
  %1816 = vmatpush1.msra.mxu0 0.0
  %1817 = vmatprep.subr.mxu0 0.0
  %1818 = vmatpush1.msra.mxu0 0.0
  %1819 = vmatprep.subr.mxu0 0.0
  %1820 = vmatpush1.msra.mxu0 0.0
  %1821 = vmatprep.subr.mxu0 0.0
  %1822 = vmatpush1.msra.mxu0 0.0
  %1823 = vmatprep.subr.mxu0 0.0
  %1824 = vmatpush1.msra.mxu0 0.0
  %1825 = vmatprep.subr.mxu0 0.0
  %1826 = vmatpush1.msra.mxu0 0.0
  %1827 = vmatprep.subr.mxu0 0.0
  %1828 = vmatpush1.msra.mxu0 0.0
  %1829 = vmatprep.subr.mxu0 0.0
  %1830 = vmatpush1.msra.mxu0 0.0
  %1831 = vmatprep.subr.mxu0 0.0
  %1832 = vmatpush1.msra.mxu0 0.0
  %1833 = vmatprep.subr.mxu0 0.0
  %1834 = vmatpush1.msra.mxu0 0.0
  %1835 = vmatprep.mubr.f32.mxu0 0.0
  %1836 = vmatmul.mubr.f32.gmra.mrb[0].mxu0 %v1704
  %v1837 = vpop.f32.mrb[0].mxu0
  %v1838 = vadd.f32 0.0, %v1837
  %v1839 = vpop.f32.mrb[0].mxu0
  %v1840 = vadd.f32 0.0, %v1839
  %1841 = vdwg.mxu0
  %1842 = vmatprep.subr.mxu0 %v37
  %1843 = vmatpush1.msra.mxu0 %v36
  %1844 = vmatprep.subr.mxu0 %v41
  %1845 = vmatpush1.msra.mxu0 %v40
  %1846 = vmatprep.subr.mxu0 %v45
  %1847 = vmatpush1.msra.mxu0 %v44
  %1848 = vmatprep.subr.mxu0 %v49
  %1849 = vmatpush1.msra.mxu0 %v48
  %1850 = vmatprep.subr.mxu0 %v53
  %1851 = vmatpush1.msra.mxu0 %v52
  %1852 = vmatprep.subr.mxu0 %v57
  %1853 = vmatpush1.msra.mxu0 %v56
  %1854 = vmatprep.subr.mxu0 %v61
  %1855 = vmatpush1.msra.mxu0 %v60
  %1856 = vmatprep.subr.mxu0 %v65
  %1857 = vmatpush1.msra.mxu0 %v64
  %1858 = vmatprep.subr.mxu0 %v69
  %1859 = vmatpush1.msra.mxu0 %v68
  %1860 = vmatprep.subr.mxu0 %v73
  %1861 = vmatpush1.msra.mxu0 %v72
  %1862 = vmatprep.subr.mxu0 %v77
  %1863 = vmatpush1.msra.mxu0 %v76
  %1864 = vmatprep.subr.mxu0 %v81
  %1865 = vmatpush1.msra.mxu0 %v80
  %1866 = vmatprep.subr.mxu0 %v85
  %1867 = vmatpush1.msra.mxu0 %v84
  %1868 = vmatprep.subr.mxu0 %v89
  %1869 = vmatpush1.msra.mxu0 %v88
  %1870 = vmatprep.subr.mxu0 %v93
  %1871 = vmatpush1.msra.mxu0 %v92
  %1872 = vmatprep.subr.mxu0 %v97
  %1873 = vmatpush1.msra.mxu0 %v96
  %1874 = vmatprep.subr.mxu0 0.0
  %1875 = vmatpush1.msra.mxu0 0.0
  %1876 = vmatprep.subr.mxu0 0.0
  %1877 = vmatpush1.msra.mxu0 0.0
  %1878 = vmatprep.subr.mxu0 0.0
  %1879 = vmatpush1.msra.mxu0 0.0
  %1880 = vmatprep.subr.mxu0 0.0
  %1881 = vmatpush1.msra.mxu0 0.0
  %1882 = vmatprep.subr.mxu0 0.0
  %1883 = vmatpush1.msra.mxu0 0.0
  %1884 = vmatprep.subr.mxu0 0.0
  %1885 = vmatpush1.msra.mxu0 0.0
  %1886 = vmatprep.subr.mxu0 0.0
  %1887 = vmatpush1.msra.mxu0 0.0
  %1888 = vmatprep.subr.mxu0 0.0
  %1889 = vmatpush1.msra.mxu0 0.0
  %1890 = vmatprep.subr.mxu0 0.0
  %1891 = vmatpush1.msra.mxu0 0.0
  %1892 = vmatprep.subr.mxu0 0.0
  %1893 = vmatpush1.msra.mxu0 0.0
  %1894 = vmatprep.subr.mxu0 0.0
  %1895 = vmatpush1.msra.mxu0 0.0
  %1896 = vmatprep.subr.mxu0 0.0
  %1897 = vmatpush1.msra.mxu0 0.0
  %1898 = vmatprep.subr.mxu0 0.0
  %1899 = vmatpush1.msra.mxu0 0.0
  %1900 = vmatprep.subr.mxu0 0.0
  %1901 = vmatpush1.msra.mxu0 0.0
  %1902 = vmatprep.subr.mxu0 0.0
  %1903 = vmatpush1.msra.mxu0 0.0
  %1904 = vmatprep.subr.mxu0 0.0
  %1905 = vmatpush1.msra.mxu0 0.0
  %1906 = vmatprep.mubr.f32.mxu0 0.0
  %1907 = vmatmul.mubr.f32.gmra.mrb[0].mxu0 %v1704
  %v1908 = vpop.f32.mrb[0].mxu0
  %v1909 = vadd.f32 0.0, %v1908
  %v1910 = vpop.f32.mrb[0].mxu0
  %v1911 = vadd.f32 0.0, %v1910
  %1912 = vdwg.mxu0
  %v1913 = vadd.f32 %v414, %v1838
  %v1914 = vadd.f32 %v416, %v1840
  %v1915 = vadd.f32 %v485, %v1909
  %v1916 = vadd.f32 %v487, %v1911
  %v1917 = vxor.u32 %v1913, 2147483648
  %v1918 = vmul.f32 %v1917, 1.442695
  %v1919 = vpow.pop %v1918
  %v1920 = vadd.f32 %v1919, 1.0
  %v1921 = vrcp.pop %v1920
  %v1922 = vmul.f32 1.0, %v1921
  %v1923 = vxor.u32 %v1914, 2147483648
  %v1924 = vmul.f32 %v1923, 1.442695
  %v1925 = vpow.pop %v1924
  %v1926 = vadd.f32 %v1925, 1.0
  %v1927 = vrcp.pop %v1926
  %v1928 = vmul.f32 1.0, %v1927
  %v1929 = vtanh.pop %v1915
  %v1930 = vxor.u32 %v1916, 2147483648
  %v1931 = vmul.f32 %v1930, 1.442695
  %v1932 = vpow.pop %v1931
  %v1933 = vadd.f32 %v1932, 1.0
  %v1934 = vrcp.pop %v1933
  %v1935 = vmul.f32 1.0, %v1934
  %v1936 = vmul.f32 %v1928, %v1702
  %v1937 = vmul.f32 %v1922, %v1929
  %v1938 = vadd.f32 %v1936, %v1937
  %v1939 = vtanh.pop %v1938
  %v1940 = vmul.f32 %v1935, %v1939
  %v1942 = vcombine.high %v1940, %v1940
  %v1944 = vunpack.c.l.s4 1966171168
  %v1945 = vunpack.c.0.s8 %v1944
  %v1946 = vlaneseq
  %v1947 = vshrl.u32 %v1946, 7
  %v1948 = vsub.s32 %v1945, %v1947
  %v1949 = vrot.slane %v1940, %v1948
  %v1951 = vunpack.c.l.s4 1966171168
  %v1952 = vunpack.c.0.s8 %v1951
  %v1953 = vlaneseq
  %v1954 = vshrl.u32 %v1953, 7
  %v1955 = vsub.s32 %v1952, %v1954
  %v1956 = vrot.slane %v1942, %v1955
  %v1957 = vcombine.high %v1949, %v1949
  %v1958 = vcombine.high %v1956, %v1956
  %v1960 = vunpack.c.l.s4 1966171168
  %v1961 = vunpack.c.0.s8 %v1960
  %v1962 = vlaneseq
  %v1963 = vshrl.u32 %v1962, 7
  %v1964 = vsub.s32 %v1961, %v1963
  %v1965 = vrot.slane %v1949, %v1964
  %v1967 = vunpack.c.l.s4 1966171168
  %v1968 = vunpack.c.0.s8 %v1967
  %v1969 = vlaneseq
  %v1970 = vshrl.u32 %v1969, 7
  %v1971 = vsub.s32 %v1968, %v1970
  %v1972 = vrot.slane %v1956, %v1971
  %v1974 = vunpack.c.l.s4 1966171168
  %v1975 = vunpack.c.0.s8 %v1974
  %v1976 = vlaneseq
  %v1977 = vshrl.u32 %v1976, 7
  %v1978 = vsub.s32 %v1975, %v1977
  %v1979 = vrot.slane %v1957, %v1978
  %v1981 = vunpack.c.l.s4 1966171168
  %v1982 = vunpack.c.0.s8 %v1981
  %v1983 = vlaneseq
  %v1984 = vshrl.u32 %v1983, 7
  %v1985 = vsub.s32 %v1982, %v1984
  %v1986 = vrot.slane %v1958, %v1985
  %v1987 = vcombine.high %v1965, %v1965
  %v1988 = vcombine.high %v1972, %v1972
  %v1989 = vcombine.high %v1979, %v1979
  %v1990 = vcombine.high %v1986, %v1986
  %1999 = vst [vmem:[%s6 + $0x1] sm:$0x1] %v1965
  %2000 = vst [vmem:[%s6 + $0x9] sm:$0x1] %v1979
  %2001 = vst [vmem:[%s6 + $0x11] sm:$0x1] %v1987
  %2002 = vst [vmem:[%s6 + $0x19] sm:$0x1] %v1989
  %2003 = vst [vmem:[%s6 + $0x21] sm:$0x1] %v1972
  %2004 = vst [vmem:[%s6 + $0x29] sm:$0x1] %v1986
  %2005 = vst [vmem:[%s6 + $0x31] sm:$0x1] %v1988
  %2006 = vst [vmem:[%s6 + $0x39] sm:$0x1] %v1990
  %2007 = vmatprep.subr.mxu0 %v35
  %2008 = vmatpush1.msra.mxu0 %v34
  %2009 = vmatprep.subr.mxu0 %v39
  %2010 = vmatpush1.msra.mxu0 %v38
  %2011 = vmatprep.subr.mxu0 %v43
  %2012 = vmatpush1.msra.mxu0 %v42
  %2013 = vmatprep.subr.mxu0 %v47
  %2014 = vmatpush1.msra.mxu0 %v46
  %2015 = vmatprep.subr.mxu0 %v51
  %2016 = vmatpush1.msra.mxu0 %v50
  %2017 = vmatprep.subr.mxu0 %v55
  %2018 = vmatpush1.msra.mxu0 %v54
  %2019 = vmatprep.subr.mxu0 %v59
  %2020 = vmatpush1.msra.mxu0 %v58
  %2021 = vmatprep.subr.mxu0 %v63
  %2022 = vmatpush1.msra.mxu0 %v62
  %2023 = vmatprep.subr.mxu0 %v67
  %2024 = vmatpush1.msra.mxu0 %v66
  %2025 = vmatprep.subr.mxu0 %v71
  %2026 = vmatpush1.msra.mxu0 %v70
  %2027 = vmatprep.subr.mxu0 %v75
  %2028 = vmatpush1.msra.mxu0 %v74
  %2029 = vmatprep.subr.mxu0 %v79
  %2030 = vmatpush1.msra.mxu0 %v78
  %2031 = vmatprep.subr.mxu0 %v83
  %2032 = vmatpush1.msra.mxu0 %v82
  %2033 = vmatprep.subr.mxu0 %v87
  %2034 = vmatpush1.msra.mxu0 %v86
  %2035 = vmatprep.subr.mxu0 %v91
  %2036 = vmatpush1.msra.mxu0 %v90
  %2037 = vmatprep.subr.mxu0 %v95
  %2038 = vmatpush1.msra.mxu0 %v94
  %2039 = vmatprep.subr.mxu0 0.0
  %2040 = vmatpush1.msra.mxu0 0.0
  %2041 = vmatprep.subr.mxu0 0.0
  %2042 = vmatpush1.msra.mxu0 0.0
  %2043 = vmatprep.subr.mxu0 0.0
  %2044 = vmatpush1.msra.mxu0 0.0
  %2045 = vmatprep.subr.mxu0 0.0
  %2046 = vmatpush1.msra.mxu0 0.0
  %2047 = vmatprep.subr.mxu0 0.0
  %2048 = vmatpush1.msra.mxu0 0.0
  %2049 = vmatprep.subr.mxu0 0.0
  %2050 = vmatpush1.msra.mxu0 0.0
  %2051 = vmatprep.subr.mxu0 0.0
  %2052 = vmatpush1.msra.mxu0 0.0
  %2053 = vmatprep.subr.mxu0 0.0
  %2054 = vmatpush1.msra.mxu0 0.0
  %2055 = vmatprep.subr.mxu0 0.0
  %2056 = vmatpush1.msra.mxu0 0.0
  %2057 = vmatprep.subr.mxu0 0.0
  %2058 = vmatpush1.msra.mxu0 0.0
  %2059 = vmatprep.subr.mxu0 0.0
  %2060 = vmatpush1.msra.mxu0 0.0
  %2061 = vmatprep.subr.mxu0 0.0
  %2062 = vmatpush1.msra.mxu0 0.0
  %2063 = vmatprep.subr.mxu0 0.0
  %2064 = vmatpush1.msra.mxu0 0.0
  %2065 = vmatprep.subr.mxu0 0.0
  %2066 = vmatpush1.msra.mxu0 0.0
  %2067 = vmatprep.subr.mxu0 0.0
  %2068 = vmatpush1.msra.mxu0 0.0
  %2069 = vmatprep.subr.mxu0 0.0
  %2070 = vmatpush1.msra.mxu0 0.0
  %2071 = vmatprep.mubr.f32.mxu0 0.0
  %2072 = vmatmul.mubr.f32.gmra.mrb[0].mxu0 %v1940
  %v2073 = vpop.f32.mrb[0].mxu0
  %v2074 = vadd.f32 0.0, %v2073
  %v2075 = vpop.f32.mrb[0].mxu0
  %v2076 = vadd.f32 0.0, %v2075
  %2077 = vdwg.mxu0
  %2078 = vmatprep.subr.mxu0 %v37
  %2079 = vmatpush1.msra.mxu0 %v36
  %2080 = vmatprep.subr.mxu0 %v41
  %2081 = vmatpush1.msra.mxu0 %v40
  %2082 = vmatprep.subr.mxu0 %v45
  %2083 = vmatpush1.msra.mxu0 %v44
  %2084 = vmatprep.subr.mxu0 %v49
  %2085 = vmatpush1.msra.mxu0 %v48
  %2086 = vmatprep.subr.mxu0 %v53
  %2087 = vmatpush1.msra.mxu0 %v52
  %2088 = vmatprep.subr.mxu0 %v57
  %2089 = vmatpush1.msra.mxu0 %v56
  %2090 = vmatprep.subr.mxu0 %v61
  %2091 = vmatpush1.msra.mxu0 %v60
  %2092 = vmatprep.subr.mxu0 %v65
  %2093 = vmatpush1.msra.mxu0 %v64
  %2094 = vmatprep.subr.mxu0 %v69
  %2095 = vmatpush1.msra.mxu0 %v68
  %2096 = vmatprep.subr.mxu0 %v73
  %2097 = vmatpush1.msra.mxu0 %v72
  %2098 = vmatprep.subr.mxu0 %v77
  %2099 = vmatpush1.msra.mxu0 %v76
  %2100 = vmatprep.subr.mxu0 %v81
  %2101 = vmatpush1.msra.mxu0 %v80
  %2102 = vmatprep.subr.mxu0 %v85
  %2103 = vmatpush1.msra.mxu0 %v84
  %2104 = vmatprep.subr.mxu0 %v89
  %2105 = vmatpush1.msra.mxu0 %v88
  %2106 = vmatprep.subr.mxu0 %v93
  %2107 = vmatpush1.msra.mxu0 %v92
  %2108 = vmatprep.subr.mxu0 %v97
  %2109 = vmatpush1.msra.mxu0 %v96
  %2110 = vmatprep.subr.mxu0 0.0
  %2111 = vmatpush1.msra.mxu0 0.0
  %2112 = vmatprep.subr.mxu0 0.0
  %2113 = vmatpush1.msra.mxu0 0.0
  %2114 = vmatprep.subr.mxu0 0.0
  %2115 = vmatpush1.msra.mxu0 0.0
  %2116 = vmatprep.subr.mxu0 0.0
  %2117 = vmatpush1.msra.mxu0 0.0
  %2118 = vmatprep.subr.mxu0 0.0
  %2119 = vmatpush1.msra.mxu0 0.0
  %2120 = vmatprep.subr.mxu0 0.0
  %2121 = vmatpush1.msra.mxu0 0.0
  %2122 = vmatprep.subr.mxu0 0.0
  %2123 = vmatpush1.msra.mxu0 0.0
  %2124 = vmatprep.subr.mxu0 0.0
  %2125 = vmatpush1.msra.mxu0 0.0
  %2126 = vmatprep.subr.mxu0 0.0
  %2127 = vmatpush1.msra.mxu0 0.0
  %2128 = vmatprep.subr.mxu0 0.0
  %2129 = vmatpush1.msra.mxu0 0.0
  %2130 = vmatprep.subr.mxu0 0.0
  %2131 = vmatpush1.msra.mxu0 0.0
  %2132 = vmatprep.subr.mxu0 0.0
  %2133 = vmatpush1.msra.mxu0 0.0
  %2134 = vmatprep.subr.mxu0 0.0
  %2135 = vmatpush1.msra.mxu0 0.0
  %2136 = vmatprep.subr.mxu0 0.0
  %2137 = vmatpush1.msra.mxu0 0.0
  %2138 = vmatprep.subr.mxu0 0.0
  %2139 = vmatpush1.msra.mxu0 0.0
  %2140 = vmatprep.subr.mxu0 0.0
  %2141 = vmatpush1.msra.mxu0 0.0
  %2142 = vmatprep.mubr.f32.mxu0 0.0
  %2143 = vmatmul.mubr.f32.gmra.mrb[0].mxu0 %v1940
  %v2144 = vpop.f32.mrb[0].mxu0
  %v2145 = vadd.f32 0.0, %v2144
  %v2146 = vpop.f32.mrb[0].mxu0
  %v2147 = vadd.f32 0.0, %v2146
  %2148 = vdwg.mxu0
  %v2149 = vadd.f32 %v588, %v2074
  %v2150 = vadd.f32 %v590, %v2076
  %v2151 = vadd.f32 %v659, %v2145
  %v2152 = vadd.f32 %v661, %v2147
  %v2153 = vxor.u32 %v2149, 2147483648
  %v2154 = vmul.f32 %v2153, 1.442695
  %v2155 = vpow.pop %v2154
  %v2156 = vadd.f32 %v2155, 1.0
  %v2157 = vrcp.pop %v2156
  %v2158 = vmul.f32 1.0, %v2157
  %v2159 = vxor.u32 %v2150, 2147483648
  %v2160 = vmul.f32 %v2159, 1.442695
  %v2161 = vpow.pop %v2160
  %v2162 = vadd.f32 %v2161, 1.0
  %v2163 = vrcp.pop %v2162
  %v2164 = vmul.f32 1.0, %v2163
  %v2165 = vtanh.pop %v2151
  %v2166 = vxor.u32 %v2152, 2147483648
  %v2167 = vmul.f32 %v2166, 1.442695
  %v2168 = vpow.pop %v2167
  %v2169 = vadd.f32 %v2168, 1.0
  %v2170 = vrcp.pop %v2169
  %v2171 = vmul.f32 1.0, %v2170
  %v2172 = vmul.f32 %v2164, %v1938
  %v2173 = vmul.f32 %v2158, %v2165
  %v2174 = vadd.f32 %v2172, %v2173
  %v2175 = vtanh.pop %v2174
  %v2176 = vmul.f32 %v2171, %v2175
  %v2178 = vcombine.high %v2176, %v2176
  %v2180 = vunpack.c.l.s4 1966171168
  %v2181 = vunpack.c.0.s8 %v2180
  %v2182 = vlaneseq
  %v2183 = vshrl.u32 %v2182, 7
  %v2184 = vsub.s32 %v2181, %v2183
  %v2185 = vrot.slane %v2176, %v2184
  %v2187 = vunpack.c.l.s4 1966171168
  %v2188 = vunpack.c.0.s8 %v2187
  %v2189 = vlaneseq
  %v2190 = vshrl.u32 %v2189, 7
  %v2191 = vsub.s32 %v2188, %v2190
  %v2192 = vrot.slane %v2178, %v2191
  %v2193 = vcombine.high %v2185, %v2185
  %v2194 = vcombine.high %v2192, %v2192
  %v2196 = vunpack.c.l.s4 1966171168
  %v2197 = vunpack.c.0.s8 %v2196
  %v2198 = vlaneseq
  %v2199 = vshrl.u32 %v2198, 7
  %v2200 = vsub.s32 %v2197, %v2199
  %v2201 = vrot.slane %v2185, %v2200
  %v2203 = vunpack.c.l.s4 1966171168
  %v2204 = vunpack.c.0.s8 %v2203
  %v2205 = vlaneseq
  %v2206 = vshrl.u32 %v2205, 7
  %v2207 = vsub.s32 %v2204, %v2206
  %v2208 = vrot.slane %v2192, %v2207
  %v2210 = vunpack.c.l.s4 1966171168
  %v2211 = vunpack.c.0.s8 %v2210
  %v2212 = vlaneseq
  %v2213 = vshrl.u32 %v2212, 7
  %v2214 = vsub.s32 %v2211, %v2213
  %v2215 = vrot.slane %v2193, %v2214
  %v2217 = vunpack.c.l.s4 1966171168
  %v2218 = vunpack.c.0.s8 %v2217
  %v2219 = vlaneseq
  %v2220 = vshrl.u32 %v2219, 7
  %v2221 = vsub.s32 %v2218, %v2220
  %v2222 = vrot.slane %v2194, %v2221
  %v2223 = vcombine.high %v2201, %v2201
  %v2224 = vcombine.high %v2208, %v2208
  %v2225 = vcombine.high %v2215, %v2215
  %v2226 = vcombine.high %v2222, %v2222
  %2235 = vst [vmem:[%s6 + $0x2] sm:$0x1] %v2201
  %2236 = vst [vmem:[%s6 + $0xa] sm:$0x1] %v2215
  %2237 = vst [vmem:[%s6 + $0x12] sm:$0x1] %v2223
  %2238 = vst [vmem:[%s6 + $0x1a] sm:$0x1] %v2225
  %2239 = vst [vmem:[%s6 + $0x22] sm:$0x1] %v2208
  %2240 = vst [vmem:[%s6 + $0x2a] sm:$0x1] %v2222
  %2241 = vst [vmem:[%s6 + $0x32] sm:$0x1] %v2224
  %2242 = vst [vmem:[%s6 + $0x3a] sm:$0x1] %v2226
  %2243 = vmatprep.subr.mxu0 %v35
  %2244 = vmatpush1.msra.mxu0 %v34
  %2245 = vmatprep.subr.mxu0 %v39
  %2246 = vmatpush1.msra.mxu0 %v38
  %2247 = vmatprep.subr.mxu0 %v43
  %2248 = vmatpush1.msra.mxu0 %v42
  %2249 = vmatprep.subr.mxu0 %v47
  %2250 = vmatpush1.msra.mxu0 %v46
  %2251 = vmatprep.subr.mxu0 %v51
  %2252 = vmatpush1.msra.mxu0 %v50
  %2253 = vmatprep.subr.mxu0 %v55
  %2254 = vmatpush1.msra.mxu0 %v54
  %2255 = vmatprep.subr.mxu0 %v59
  %2256 = vmatpush1.msra.mxu0 %v58
  %2257 = vmatprep.subr.mxu0 %v63
  %2258 = vmatpush1.msra.mxu0 %v62
  %2259 = vmatprep.subr.mxu0 %v67
  %2260 = vmatpush1.msra.mxu0 %v66
  %2261 = vmatprep.subr.mxu0 %v71
  %2262 = vmatpush1.msra.mxu0 %v70
  %2263 = vmatprep.subr.mxu0 %v75
  %2264 = vmatpush1.msra.mxu0 %v74
  %2265 = vmatprep.subr.mxu0 %v79
  %2266 = vmatpush1.msra.mxu0 %v78
  %2267 = vmatprep.subr.mxu0 %v83
  %2268 = vmatpush1.msra.mxu0 %v82
  %2269 = vmatprep.subr.mxu0 %v87
  %2270 = vmatpush1.msra.mxu0 %v86
  %2271 = vmatprep.subr.mxu0 %v91
  %2272 = vmatpush1.msra.mxu0 %v90
  %2273 = vmatprep.subr.mxu0 %v95
  %2274 = vmatpush1.msra.mxu0 %v94
  %2275 = vmatprep.subr.mxu0 0.0
  %2276 = vmatpush1.msra.mxu0 0.0
  %2277 = vmatprep.subr.mxu0 0.0
  %2278 = vmatpush1.msra.mxu0 0.0
  %2279 = vmatprep.subr.mxu0 0.0
  %2280 = vmatpush1.msra.mxu0 0.0
  %2281 = vmatprep.subr.mxu0 0.0
  %2282 = vmatpush1.msra.mxu0 0.0
  %2283 = vmatprep.subr.mxu0 0.0
  %2284 = vmatpush1.msra.mxu0 0.0
  %2285 = vmatprep.subr.mxu0 0.0
  %2286 = vmatpush1.msra.mxu0 0.0
  %2287 = vmatprep.subr.mxu0 0.0
  %2288 = vmatpush1.msra.mxu0 0.0
  %2289 = vmatprep.subr.mxu0 0.0
  %2290 = vmatpush1.msra.mxu0 0.0
  %2291 = vmatprep.subr.mxu0 0.0
  %2292 = vmatpush1.msra.mxu0 0.0
  %2293 = vmatprep.subr.mxu0 0.0
  %2294 = vmatpush1.msra.mxu0 0.0
  %2295 = vmatprep.subr.mxu0 0.0
  %2296 = vmatpush1.msra.mxu0 0.0
  %2297 = vmatprep.subr.mxu0 0.0
  %2298 = vmatpush1.msra.mxu0 0.0
  %2299 = vmatprep.subr.mxu0 0.0
  %2300 = vmatpush1.msra.mxu0 0.0
  %2301 = vmatprep.subr.mxu0 0.0
  %2302 = vmatpush1.msra.mxu0 0.0
  %2303 = vmatprep.subr.mxu0 0.0
  %2304 = vmatpush1.msra.mxu0 0.0
  %2305 = vmatprep.subr.mxu0 0.0
  %2306 = vmatpush1.msra.mxu0 0.0
  %2307 = vmatprep.mubr.f32.mxu0 0.0
  %2308 = vmatmul.mubr.f32.gmra.mrb[0].mxu0 %v2176
  %v2309 = vpop.f32.mrb[0].mxu0
  %v2310 = vadd.f32 0.0, %v2309
  %v2311 = vpop.f32.mrb[0].mxu0
  %v2312 = vadd.f32 0.0, %v2311
  %2313 = vdwg.mxu0
  %2314 = vmatprep.subr.mxu0 %v37
  %2315 = vmatpush1.msra.mxu0 %v36
  %2316 = vmatprep.subr.mxu0 %v41
  %2317 = vmatpush1.msra.mxu0 %v40
  %2318 = vmatprep.subr.mxu0 %v45
  %2319 = vmatpush1.msra.mxu0 %v44
  %2320 = vmatprep.subr.mxu0 %v49
  %2321 = vmatpush1.msra.mxu0 %v48
  %2322 = vmatprep.subr.mxu0 %v53
  %2323 = vmatpush1.msra.mxu0 %v52
  %2324 = vmatprep.subr.mxu0 %v57
  %2325 = vmatpush1.msra.mxu0 %v56
  %2326 = vmatprep.subr.mxu0 %v61
  %2327 = vmatpush1.msra.mxu0 %v60
  %2328 = vmatprep.subr.mxu0 %v65
  %2329 = vmatpush1.msra.mxu0 %v64
  %2330 = vmatprep.subr.mxu0 %v69
  %2331 = vmatpush1.msra.mxu0 %v68
  %2332 = vmatprep.subr.mxu0 %v73
  %2333 = vmatpush1.msra.mxu0 %v72
  %2334 = vmatprep.subr.mxu0 %v77
  %2335 = vmatpush1.msra.mxu0 %v76
  %2336 = vmatprep.subr.mxu0 %v81
  %2337 = vmatpush1.msra.mxu0 %v80
  %2338 = vmatprep.subr.mxu0 %v85
  %2339 = vmatpush1.msra.mxu0 %v84
  %2340 = vmatprep.subr.mxu0 %v89
  %2341 = vmatpush1.msra.mxu0 %v88
  %2342 = vmatprep.subr.mxu0 %v93
  %2343 = vmatpush1.msra.mxu0 %v92
  %2344 = vmatprep.subr.mxu0 %v97
  %2345 = vmatpush1.msra.mxu0 %v96
  %2346 = vmatprep.subr.mxu0 0.0
  %2347 = vmatpush1.msra.mxu0 0.0
  %2348 = vmatprep.subr.mxu0 0.0
  %2349 = vmatpush1.msra.mxu0 0.0
  %2350 = vmatprep.subr.mxu0 0.0
  %2351 = vmatpush1.msra.mxu0 0.0
  %2352 = vmatprep.subr.mxu0 0.0
  %2353 = vmatpush1.msra.mxu0 0.0
  %2354 = vmatprep.subr.mxu0 0.0
  %2355 = vmatpush1.msra.mxu0 0.0
  %2356 = vmatprep.subr.mxu0 0.0
  %2357 = vmatpush1.msra.mxu0 0.0
  %2358 = vmatprep.subr.mxu0 0.0
  %2359 = vmatpush1.msra.mxu0 0.0
  %2360 = vmatprep.subr.mxu0 0.0
  %2361 = vmatpush1.msra.mxu0 0.0
  %2362 = vmatprep.subr.mxu0 0.0
  %2363 = vmatpush1.msra.mxu0 0.0
  %2364 = vmatprep.subr.mxu0 0.0
  %2365 = vmatpush1.msra.mxu0 0.0
  %2366 = vmatprep.subr.mxu0 0.0
  %2367 = vmatpush1.msra.mxu0 0.0
  %2368 = vmatprep.subr.mxu0 0.0
  %2369 = vmatpush1.msra.mxu0 0.0
  %2370 = vmatprep.subr.mxu0 0.0
  %2371 = vmatpush1.msra.mxu0 0.0
  %2372 = vmatprep.subr.mxu0 0.0
  %2373 = vmatpush1.msra.mxu0 0.0
  %2374 = vmatprep.subr.mxu0 0.0
  %2375 = vmatpush1.msra.mxu0 0.0
  %2376 = vmatprep.subr.mxu0 0.0
  %2377 = vmatpush1.msra.mxu0 0.0
  %2378 = vmatprep.mubr.f32.mxu0 0.0
  %2379 = vmatmul.mubr.f32.gmra.mrb[0].mxu0 %v2176
  %v2380 = vpop.f32.mrb[0].mxu0
  %v2381 = vadd.f32 0.0, %v2380
  %v2382 = vpop.f32.mrb[0].mxu0
  %v2383 = vadd.f32 0.0, %v2382
  %2384 = vdwg.mxu0
  %v2385 = vadd.f32 %v762, %v2310
  %v2386 = vadd.f32 %v764, %v2312
  %v2387 = vadd.f32 %v833, %v2381
  %v2388 = vadd.f32 %v835, %v2383
  %v2389 = vxor.u32 %v2385, 2147483648
  %v2390 = vmul.f32 %v2389, 1.442695
  %v2391 = vpow.pop %v2390
  %v2392 = vadd.f32 %v2391, 1.0
  %v2393 = vrcp.pop %v2392
  %v2394 = vmul.f32 1.0, %v2393
  %v2395 = vxor.u32 %v2386, 2147483648
  %v2396 = vmul.f32 %v2395, 1.442695
  %v2397 = vpow.pop %v2396
  %v2398 = vadd.f32 %v2397, 1.0
  %v2399 = vrcp.pop %v2398
  %v2400 = vmul.f32 1.0, %v2399
  %v2401 = vtanh.pop %v2387
  %v2402 = vxor.u32 %v2388, 2147483648
  %v2403 = vmul.f32 %v2402, 1.442695
  %v2404 = vpow.pop %v2403
  %v2405 = vadd.f32 %v2404, 1.0
  %v2406 = vrcp.pop %v2405
  %v2407 = vmul.f32 1.0, %v2406
  %v2408 = vmul.f32 %v2400, %v2174
  %v2409 = vmul.f32 %v2394, %v2401
  %v2410 = vadd.f32 %v2408, %v2409
  %v2411 = vtanh.pop %v2410
  %v2412 = vmul.f32 %v2407, %v2411
  %v2414 = vcombine.high %v2412, %v2412
  %v2416 = vunpack.c.l.s4 1966171168
  %v2417 = vunpack.c.0.s8 %v2416
  %v2418 = vlaneseq
  %v2419 = vshrl.u32 %v2418, 7
  %v2420 = vsub.s32 %v2417, %v2419
  %v2421 = vrot.slane %v2412, %v2420
  %v2423 = vunpack.c.l.s4 1966171168
  %v2424 = vunpack.c.0.s8 %v2423
  %v2425 = vlaneseq
  %v2426 = vshrl.u32 %v2425, 7
  %v2427 = vsub.s32 %v2424, %v2426
  %v2428 = vrot.slane %v2414, %v2427
  %v2429 = vcombine.high %v2421, %v2421
  %v2430 = vcombine.high %v2428, %v2428
  %v2432 = vunpack.c.l.s4 1966171168
  %v2433 = vunpack.c.0.s8 %v2432
  %v2434 = vlaneseq
  %v2435 = vshrl.u32 %v2434, 7
  %v2436 = vsub.s32 %v2433, %v2435
  %v2437 = vrot.slane %v2421, %v2436
  %v2439 = vunpack.c.l.s4 1966171168
  %v2440 = vunpack.c.0.s8 %v2439
  %v2441 = vlaneseq
  %v2442 = vshrl.u32 %v2441, 7
  %v2443 = vsub.s32 %v2440, %v2442
  %v2444 = vrot.slane %v2428, %v2443
  %v2446 = vunpack.c.l.s4 1966171168
  %v2447 = vunpack.c.0.s8 %v2446
  %v2448 = vlaneseq
  %v2449 = vshrl.u32 %v2448, 7
  %v2450 = vsub.s32 %v2447, %v2449
  %v2451 = vrot.slane %v2429, %v2450
  %v2453 = vunpack.c.l.s4 1966171168
  %v2454 = vunpack.c.0.s8 %v2453
  %v2455 = vlaneseq
  %v2456 = vshrl.u32 %v2455, 7
  %v2457 = vsub.s32 %v2454, %v2456
  %v2458 = vrot.slane %v2430, %v2457
  %v2459 = vcombine.high %v2437, %v2437
  %v2460 = vcombine.high %v2444, %v2444
  %v2461 = vcombine.high %v2451, %v2451
  %v2462 = vcombine.high %v2458, %v2458
  %2471 = vst [vmem:[%s6 + $0x3] sm:$0x1] %v2437
  %2472 = vst [vmem:[%s6 + $0xb] sm:$0x1] %v2451
  %2473 = vst [vmem:[%s6 + $0x13] sm:$0x1] %v2459
  %2474 = vst [vmem:[%s6 + $0x1b] sm:$0x1] %v2461
  %2475 = vst [vmem:[%s6 + $0x23] sm:$0x1] %v2444
  %2476 = vst [vmem:[%s6 + $0x2b] sm:$0x1] %v2458
  %2477 = vst [vmem:[%s6 + $0x33] sm:$0x1] %v2460
  %2478 = vst [vmem:[%s6 + $0x3b] sm:$0x1] %v2462
  %2479 = vmatprep.subr.mxu0 %v35
  %2480 = vmatpush1.msra.mxu0 %v34
  %2481 = vmatprep.subr.mxu0 %v39
  %2482 = vmatpush1.msra.mxu0 %v38
  %2483 = vmatprep.subr.mxu0 %v43
  %2484 = vmatpush1.msra.mxu0 %v42
  %2485 = vmatprep.subr.mxu0 %v47
  %2486 = vmatpush1.msra.mxu0 %v46
  %2487 = vmatprep.subr.mxu0 %v51
  %2488 = vmatpush1.msra.mxu0 %v50
  %2489 = vmatprep.subr.mxu0 %v55
  %2490 = vmatpush1.msra.mxu0 %v54
  %2491 = vmatprep.subr.mxu0 %v59
  %2492 = vmatpush1.msra.mxu0 %v58
  %2493 = vmatprep.subr.mxu0 %v63
  %2494 = vmatpush1.msra.mxu0 %v62
  %2495 = vmatprep.subr.mxu0 %v67
  %2496 = vmatpush1.msra.mxu0 %v66
  %2497 = vmatprep.subr.mxu0 %v71
  %2498 = vmatpush1.msra.mxu0 %v70
  %2499 = vmatprep.subr.mxu0 %v75
  %2500 = vmatpush1.msra.mxu0 %v74
  %2501 = vmatprep.subr.mxu0 %v79
  %2502 = vmatpush1.msra.mxu0 %v78
  %2503 = vmatprep.subr.mxu0 %v83
  %2504 = vmatpush1.msra.mxu0 %v82
  %2505 = vmatprep.subr.mxu0 %v87
  %2506 = vmatpush1.msra.mxu0 %v86
  %2507 = vmatprep.subr.mxu0 %v91
  %2508 = vmatpush1.msra.mxu0 %v90
  %2509 = vmatprep.subr.mxu0 %v95
  %2510 = vmatpush1.msra.mxu0 %v94
  %2511 = vmatprep.subr.mxu0 0.0
  %2512 = vmatpush1.msra.mxu0 0.0
  %2513 = vmatprep.subr.mxu0 0.0
  %2514 = vmatpush1.msra.mxu0 0.0
  %2515 = vmatprep.subr.mxu0 0.0
  %2516 = vmatpush1.msra.mxu0 0.0
  %2517 = vmatprep.subr.mxu0 0.0
  %2518 = vmatpush1.msra.mxu0 0.0
  %2519 = vmatprep.subr.mxu0 0.0
  %2520 = vmatpush1.msra.mxu0 0.0
  %2521 = vmatprep.subr.mxu0 0.0
  %2522 = vmatpush1.msra.mxu0 0.0
  %2523 = vmatprep.subr.mxu0 0.0
  %2524 = vmatpush1.msra.mxu0 0.0
  %2525 = vmatprep.subr.mxu0 0.0
  %2526 = vmatpush1.msra.mxu0 0.0
  %2527 = vmatprep.subr.mxu0 0.0
  %2528 = vmatpush1.msra.mxu0 0.0
  %2529 = vmatprep.subr.mxu0 0.0
  %2530 = vmatpush1.msra.mxu0 0.0
  %2531 = vmatprep.subr.mxu0 0.0
  %2532 = vmatpush1.msra.mxu0 0.0
  %2533 = vmatprep.subr.mxu0 0.0
  %2534 = vmatpush1.msra.mxu0 0.0
  %2535 = vmatprep.subr.mxu0 0.0
  %2536 = vmatpush1.msra.mxu0 0.0
  %2537 = vmatprep.subr.mxu0 0.0
  %2538 = vmatpush1.msra.mxu0 0.0
  %2539 = vmatprep.subr.mxu0 0.0
  %2540 = vmatpush1.msra.mxu0 0.0
  %2541 = vmatprep.subr.mxu0 0.0
  %2542 = vmatpush1.msra.mxu0 0.0
  %2543 = vmatprep.mubr.f32.mxu0 0.0
  %2544 = vmatmul.mubr.f32.gmra.mrb[0].mxu0 %v2412
  %v2545 = vpop.f32.mrb[0].mxu0
  %v2546 = vadd.f32 0.0, %v2545
  %v2547 = vpop.f32.mrb[0].mxu0
  %v2548 = vadd.f32 0.0, %v2547
  %2549 = vdwg.mxu0
  %2550 = vmatprep.subr.mxu0 %v37
  %2551 = vmatpush1.msra.mxu0 %v36
  %2552 = vmatprep.subr.mxu0 %v41
  %2553 = vmatpush1.msra.mxu0 %v40
  %2554 = vmatprep.subr.mxu0 %v45
  %2555 = vmatpush1.msra.mxu0 %v44
  %2556 = vmatprep.subr.mxu0 %v49
  %2557 = vmatpush1.msra.mxu0 %v48
  %2558 = vmatprep.subr.mxu0 %v53
  %2559 = vmatpush1.msra.mxu0 %v52
  %2560 = vmatprep.subr.mxu0 %v57
  %2561 = vmatpush1.msra.mxu0 %v56
  %2562 = vmatprep.subr.mxu0 %v61
  %2563 = vmatpush1.msra.mxu0 %v60
  %2564 = vmatprep.subr.mxu0 %v65
  %2565 = vmatpush1.msra.mxu0 %v64
  %2566 = vmatprep.subr.mxu0 %v69
  %2567 = vmatpush1.msra.mxu0 %v68
  %2568 = vmatprep.subr.mxu0 %v73
  %2569 = vmatpush1.msra.mxu0 %v72
  %2570 = vmatprep.subr.mxu0 %v77
  %2571 = vmatpush1.msra.mxu0 %v76
  %2572 = vmatprep.subr.mxu0 %v81
  %2573 = vmatpush1.msra.mxu0 %v80
  %2574 = vmatprep.subr.mxu0 %v85
  %2575 = vmatpush1.msra.mxu0 %v84
  %2576 = vmatprep.subr.mxu0 %v89
  %2577 = vmatpush1.msra.mxu0 %v88
  %2578 = vmatprep.subr.mxu0 %v93
  %2579 = vmatpush1.msra.mxu0 %v92
  %2580 = vmatprep.subr.mxu0 %v97
  %2581 = vmatpush1.msra.mxu0 %v96
  %2582 = vmatprep.subr.mxu0 0.0
  %2583 = vmatpush1.msra.mxu0 0.0
  %2584 = vmatprep.subr.mxu0 0.0
  %2585 = vmatpush1.msra.mxu0 0.0
  %2586 = vmatprep.subr.mxu0 0.0
  %2587 = vmatpush1.msra.mxu0 0.0
  %2588 = vmatprep.subr.mxu0 0.0
  %2589 = vmatpush1.msra.mxu0 0.0
  %2590 = vmatprep.subr.mxu0 0.0
  %2591 = vmatpush1.msra.mxu0 0.0
  %2592 = vmatprep.subr.mxu0 0.0
  %2593 = vmatpush1.msra.mxu0 0.0
  %2594 = vmatprep.subr.mxu0 0.0
  %2595 = vmatpush1.msra.mxu0 0.0
  %2596 = vmatprep.subr.mxu0 0.0
  %2597 = vmatpush1.msra.mxu0 0.0
  %2598 = vmatprep.subr.mxu0 0.0
  %2599 = vmatpush1.msra.mxu0 0.0
  %2600 = vmatprep.subr.mxu0 0.0
  %2601 = vmatpush1.msra.mxu0 0.0
  %2602 = vmatprep.subr.mxu0 0.0
  %2603 = vmatpush1.msra.mxu0 0.0
  %2604 = vmatprep.subr.mxu0 0.0
  %2605 = vmatpush1.msra.mxu0 0.0
  %2606 = vmatprep.subr.mxu0 0.0
  %2607 = vmatpush1.msra.mxu0 0.0
  %2608 = vmatprep.subr.mxu0 0.0
  %2609 = vmatpush1.msra.mxu0 0.0
  %2610 = vmatprep.subr.mxu0 0.0
  %2611 = vmatpush1.msra.mxu0 0.0
  %2612 = vmatprep.subr.mxu0 0.0
  %2613 = vmatpush1.msra.mxu0 0.0
  %2614 = vmatprep.mubr.f32.mxu0 0.0
  %2615 = vmatmul.mubr.f32.gmra.mrb[0].mxu0 %v2412
  %v2616 = vpop.f32.mrb[0].mxu0
  %v2617 = vadd.f32 0.0, %v2616
  %v2618 = vpop.f32.mrb[0].mxu0
  %v2619 = vadd.f32 0.0, %v2618
  %2620 = vdwg.mxu0
  %v2621 = vadd.f32 %v936, %v2546
  %v2622 = vadd.f32 %v938, %v2548
  %v2623 = vadd.f32 %v1007, %v2617
  %v2624 = vadd.f32 %v1009, %v2619
  %v2625 = vxor.u32 %v2621, 2147483648
  %v2626 = vmul.f32 %v2625, 1.442695
  %v2627 = vpow.pop %v2626
  %v2628 = vadd.f32 %v2627, 1.0
  %v2629 = vrcp.pop %v2628
  %v2630 = vmul.f32 1.0, %v2629
  %v2631 = vxor.u32 %v2622, 2147483648
  %v2632 = vmul.f32 %v2631, 1.442695
  %v2633 = vpow.pop %v2632
  %v2634 = vadd.f32 %v2633, 1.0
  %v2635 = vrcp.pop %v2634
  %v2636 = vmul.f32 1.0, %v2635
  %v2637 = vtanh.pop %v2623
  %v2638 = vxor.u32 %v2624, 2147483648
  %v2639 = vmul.f32 %v2638, 1.442695
  %v2640 = vpow.pop %v2639
  %v2641 = vadd.f32 %v2640, 1.0
  %v2642 = vrcp.pop %v2641
  %v2643 = vmul.f32 1.0, %v2642
  %v2644 = vmul.f32 %v2636, %v2410
  %v2645 = vmul.f32 %v2630, %v2637
  %v2646 = vadd.f32 %v2644, %v2645
  %v2647 = vtanh.pop %v2646
  %v2648 = vmul.f32 %v2643, %v2647
  %v2650 = vcombine.high %v2648, %v2648
  %v2652 = vunpack.c.l.s4 1966171168
  %v2653 = vunpack.c.0.s8 %v2652
  %v2654 = vlaneseq
  %v2655 = vshrl.u32 %v2654, 7
  %v2656 = vsub.s32 %v2653, %v2655
  %v2657 = vrot.slane %v2648, %v2656
  %v2659 = vunpack.c.l.s4 1966171168
  %v2660 = vunpack.c.0.s8 %v2659
  %v2661 = vlaneseq
  %v2662 = vshrl.u32 %v2661, 7
  %v2663 = vsub.s32 %v2660, %v2662
  %v2664 = vrot.slane %v2650, %v2663
  %v2665 = vcombine.high %v2657, %v2657
  %v2666 = vcombine.high %v2664, %v2664
  %v2668 = vunpack.c.l.s4 1966171168
  %v2669 = vunpack.c.0.s8 %v2668
  %v2670 = vlaneseq
  %v2671 = vshrl.u32 %v2670, 7
  %v2672 = vsub.s32 %v2669, %v2671
  %v2673 = vrot.slane %v2657, %v2672
  %v2675 = vunpack.c.l.s4 1966171168
  %v2676 = vunpack.c.0.s8 %v2675
  %v2677 = vlaneseq
  %v2678 = vshrl.u32 %v2677, 7
  %v2679 = vsub.s32 %v2676, %v2678
  %v2680 = vrot.slane %v2664, %v2679
  %v2682 = vunpack.c.l.s4 1966171168
  %v2683 = vunpack.c.0.s8 %v2682
  %v2684 = vlaneseq
  %v2685 = vshrl.u32 %v2684, 7
  %v2686 = vsub.s32 %v2683, %v2685
  %v2687 = vrot.slane %v2665, %v2686
  %v2689 = vunpack.c.l.s4 1966171168
  %v2690 = vunpack.c.0.s8 %v2689
  %v2691 = vlaneseq
  %v2692 = vshrl.u32 %v2691, 7
  %v2693 = vsub.s32 %v2690, %v2692
  %v2694 = vrot.slane %v2666, %v2693
  %v2695 = vcombine.high %v2673, %v2673
  %v2696 = vcombine.high %v2680, %v2680
  %v2697 = vcombine.high %v2687, %v2687
  %v2698 = vcombine.high %v2694, %v2694
  %2707 = vst [vmem:[%s6 + $0x4] sm:$0x1] %v2673
  %2708 = vst [vmem:[%s6 + $0xc] sm:$0x1] %v2687
  %2709 = vst [vmem:[%s6 + $0x14] sm:$0x1] %v2695
  %2710 = vst [vmem:[%s6 + $0x1c] sm:$0x1] %v2697
  %2711 = vst [vmem:[%s6 + $0x24] sm:$0x1] %v2680
  %2712 = vst [vmem:[%s6 + $0x2c] sm:$0x1] %v2694
  %2713 = vst [vmem:[%s6 + $0x34] sm:$0x1] %v2696
  %2714 = vst [vmem:[%s6 + $0x3c] sm:$0x1] %v2698
  %2715 = vmatprep.subr.mxu0 %v35
  %2716 = vmatpush1.msra.mxu0 %v34
  %2717 = vmatprep.subr.mxu0 %v39
  %2718 = vmatpush1.msra.mxu0 %v38
  %2719 = vmatprep.subr.mxu0 %v43
  %2720 = vmatpush1.msra.mxu0 %v42
  %2721 = vmatprep.subr.mxu0 %v47
  %2722 = vmatpush1.msra.mxu0 %v46
  %2723 = vmatprep.subr.mxu0 %v51
  %2724 = vmatpush1.msra.mxu0 %v50
  %2725 = vmatprep.subr.mxu0 %v55
  %2726 = vmatpush1.msra.mxu0 %v54
  %2727 = vmatprep.subr.mxu0 %v59
  %2728 = vmatpush1.msra.mxu0 %v58
  %2729 = vmatprep.subr.mxu0 %v63
  %2730 = vmatpush1.msra.mxu0 %v62
  %2731 = vmatprep.subr.mxu0 %v67
  %2732 = vmatpush1.msra.mxu0 %v66
  %2733 = vmatprep.subr.mxu0 %v71
  %2734 = vmatpush1.msra.mxu0 %v70
  %2735 = vmatprep.subr.mxu0 %v75
  %2736 = vmatpush1.msra.mxu0 %v74
  %2737 = vmatprep.subr.mxu0 %v79
  %2738 = vmatpush1.msra.mxu0 %v78
  %2739 = vmatprep.subr.mxu0 %v83
  %2740 = vmatpush1.msra.mxu0 %v82
  %2741 = vmatprep.subr.mxu0 %v87
  %2742 = vmatpush1.msra.mxu0 %v86
  %2743 = vmatprep.subr.mxu0 %v91
  %2744 = vmatpush1.msra.mxu0 %v90
  %2745 = vmatprep.subr.mxu0 %v95
  %2746 = vmatpush1.msra.mxu0 %v94
  %2747 = vmatprep.subr.mxu0 0.0
  %2748 = vmatpush1.msra.mxu0 0.0
  %2749 = vmatprep.subr.mxu0 0.0
  %2750 = vmatpush1.msra.mxu0 0.0
  %2751 = vmatprep.subr.mxu0 0.0
  %2752 = vmatpush1.msra.mxu0 0.0
  %2753 = vmatprep.subr.mxu0 0.0
  %2754 = vmatpush1.msra.mxu0 0.0
  %2755 = vmatprep.subr.mxu0 0.0
  %2756 = vmatpush1.msra.mxu0 0.0
  %2757 = vmatprep.subr.mxu0 0.0
  %2758 = vmatpush1.msra.mxu0 0.0
  %2759 = vmatprep.subr.mxu0 0.0
  %2760 = vmatpush1.msra.mxu0 0.0
  %2761 = vmatprep.subr.mxu0 0.0
  %2762 = vmatpush1.msra.mxu0 0.0
  %2763 = vmatprep.subr.mxu0 0.0
  %2764 = vmatpush1.msra.mxu0 0.0
  %2765 = vmatprep.subr.mxu0 0.0
  %2766 = vmatpush1.msra.mxu0 0.0
  %2767 = vmatprep.subr.mxu0 0.0
  %2768 = vmatpush1.msra.mxu0 0.0
  %2769 = vmatprep.subr.mxu0 0.0
  %2770 = vmatpush1.msra.mxu0 0.0
  %2771 = vmatprep.subr.mxu0 0.0
  %2772 = vmatpush1.msra.mxu0 0.0
  %2773 = vmatprep.subr.mxu0 0.0
  %2774 = vmatpush1.msra.mxu0 0.0
  %2775 = vmatprep.subr.mxu0 0.0
  %2776 = vmatpush1.msra.mxu0 0.0
  %2777 = vmatprep.subr.mxu0 0.0
  %2778 = vmatpush1.msra.mxu0 0.0
  %2779 = vmatprep.mubr.f32.mxu0 0.0
  %2780 = vmatmul.mubr.f32.gmra.mrb[0].mxu0 %v2648
  %v2781 = vpop.f32.mrb[0].mxu0
  %v2782 = vadd.f32 0.0, %v2781
  %v2783 = vpop.f32.mrb[0].mxu0
  %v2784 = vadd.f32 0.0, %v2783
  %2785 = vdwg.mxu0
  %2786 = vmatprep.subr.mxu0 %v37
  %2787 = vmatpush1.msra.mxu0 %v36
  %2788 = vmatprep.subr.mxu0 %v41
  %2789 = vmatpush1.msra.mxu0 %v40
  %2790 = vmatprep.subr.mxu0 %v45
  %2791 = vmatpush1.msra.mxu0 %v44
  %2792 = vmatprep.subr.mxu0 %v49
  %2793 = vmatpush1.msra.mxu0 %v48
  %2794 = vmatprep.subr.mxu0 %v53
  %2795 = vmatpush1.msra.mxu0 %v52
  %2796 = vmatprep.subr.mxu0 %v57
  %2797 = vmatpush1.msra.mxu0 %v56
  %2798 = vmatprep.subr.mxu0 %v61
  %2799 = vmatpush1.msra.mxu0 %v60
  %2800 = vmatprep.subr.mxu0 %v65
  %2801 = vmatpush1.msra.mxu0 %v64
  %2802 = vmatprep.subr.mxu0 %v69
  %2803 = vmatpush1.msra.mxu0 %v68
  %2804 = vmatprep.subr.mxu0 %v73
  %2805 = vmatpush1.msra.mxu0 %v72
  %2806 = vmatprep.subr.mxu0 %v77
  %2807 = vmatpush1.msra.mxu0 %v76
  %2808 = vmatprep.subr.mxu0 %v81
  %2809 = vmatpush1.msra.mxu0 %v80
  %2810 = vmatprep.subr.mxu0 %v85
  %2811 = vmatpush1.msra.mxu0 %v84
  %2812 = vmatprep.subr.mxu0 %v89
  %2813 = vmatpush1.msra.mxu0 %v88
  %2814 = vmatprep.subr.mxu0 %v93
  %2815 = vmatpush1.msra.mxu0 %v92
  %2816 = vmatprep.subr.mxu0 %v97
  %2817 = vmatpush1.msra.mxu0 %v96
  %2818 = vmatprep.subr.mxu0 0.0
  %2819 = vmatpush1.msra.mxu0 0.0
  %2820 = vmatprep.subr.mxu0 0.0
  %2821 = vmatpush1.msra.mxu0 0.0
  %2822 = vmatprep.subr.mxu0 0.0
  %2823 = vmatpush1.msra.mxu0 0.0
  %2824 = vmatprep.subr.mxu0 0.0
  %2825 = vmatpush1.msra.mxu0 0.0
  %2826 = vmatprep.subr.mxu0 0.0
  %2827 = vmatpush1.msra.mxu0 0.0
  %2828 = vmatprep.subr.mxu0 0.0
  %2829 = vmatpush1.msra.mxu0 0.0
  %2830 = vmatprep.subr.mxu0 0.0
  %2831 = vmatpush1.msra.mxu0 0.0
  %2832 = vmatprep.subr.mxu0 0.0
  %2833 = vmatpush1.msra.mxu0 0.0
  %2834 = vmatprep.subr.mxu0 0.0
  %2835 = vmatpush1.msra.mxu0 0.0
  %2836 = vmatprep.subr.mxu0 0.0
  %2837 = vmatpush1.msra.mxu0 0.0
  %2838 = vmatprep.subr.mxu0 0.0
  %2839 = vmatpush1.msra.mxu0 0.0
  %2840 = vmatprep.subr.mxu0 0.0
  %2841 = vmatpush1.msra.mxu0 0.0
  %2842 = vmatprep.subr.mxu0 0.0
  %2843 = vmatpush1.msra.mxu0 0.0
  %2844 = vmatprep.subr.mxu0 0.0
  %2845 = vmatpush1.msra.mxu0 0.0
  %2846 = vmatprep.subr.mxu0 0.0
  %2847 = vmatpush1.msra.mxu0 0.0
  %2848 = vmatprep.subr.mxu0 0.0
  %2849 = vmatpush1.msra.mxu0 0.0
  %2850 = vmatprep.mubr.f32.mxu0 0.0
  %2851 = vmatmul.mubr.f32.gmra.mrb[0].mxu0 %v2648
  %v2852 = vpop.f32.mrb[0].mxu0
  %v2853 = vadd.f32 0.0, %v2852
  %v2854 = vpop.f32.mrb[0].mxu0
  %v2855 = vadd.f32 0.0, %v2854
  %2856 = vdwg.mxu0
  %v2857 = vadd.f32 %v1110, %v2782
  %v2858 = vadd.f32 %v1112, %v2784
  %v2859 = vadd.f32 %v1181, %v2853
  %v2860 = vadd.f32 %v1183, %v2855
  %v2861 = vxor.u32 %v2857, 2147483648
  %v2862 = vmul.f32 %v2861, 1.442695
  %v2863 = vpow.pop %v2862
  %v2864 = vadd.f32 %v2863, 1.0
  %v2865 = vrcp.pop %v2864
  %v2866 = vmul.f32 1.0, %v2865
  %v2867 = vxor.u32 %v2858, 2147483648
  %v2868 = vmul.f32 %v2867, 1.442695
  %v2869 = vpow.pop %v2868
  %v2870 = vadd.f32 %v2869, 1.0
  %v2871 = vrcp.pop %v2870
  %v2872 = vmul.f32 1.0, %v2871
  %v2873 = vtanh.pop %v2859
  %v2874 = vxor.u32 %v2860, 2147483648
  %v2875 = vmul.f32 %v2874, 1.442695
  %v2876 = vpow.pop %v2875
  %v2877 = vadd.f32 %v2876, 1.0
  %v2878 = vrcp.pop %v2877
  %v2879 = vmul.f32 1.0, %v2878
  %v2880 = vmul.f32 %v2872, %v2646
  %v2881 = vmul.f32 %v2866, %v2873
  %v2882 = vadd.f32 %v2880, %v2881
  %v2883 = vtanh.pop %v2882
  %v2884 = vmul.f32 %v2879, %v2883
  %v2886 = vcombine.high %v2884, %v2884
  %v2888 = vunpack.c.l.s4 1966171168
  %v2889 = vunpack.c.0.s8 %v2888
  %v2890 = vlaneseq
  %v2891 = vshrl.u32 %v2890, 7
  %v2892 = vsub.s32 %v2889, %v2891
  %v2893 = vrot.slane %v2884, %v2892
  %v2895 = vunpack.c.l.s4 1966171168
  %v2896 = vunpack.c.0.s8 %v2895
  %v2897 = vlaneseq
  %v2898 = vshrl.u32 %v2897, 7
  %v2899 = vsub.s32 %v2896, %v2898
  %v2900 = vrot.slane %v2886, %v2899
  %v2901 = vcombine.high %v2893, %v2893
  %v2902 = vcombine.high %v2900, %v2900
  %v2904 = vunpack.c.l.s4 1966171168
  %v2905 = vunpack.c.0.s8 %v2904
  %v2906 = vlaneseq
  %v2907 = vshrl.u32 %v2906, 7
  %v2908 = vsub.s32 %v2905, %v2907
  %v2909 = vrot.slane %v2893, %v2908
  %v2911 = vunpack.c.l.s4 1966171168
  %v2912 = vunpack.c.0.s8 %v2911
  %v2913 = vlaneseq
  %v2914 = vshrl.u32 %v2913, 7
  %v2915 = vsub.s32 %v2912, %v2914
  %v2916 = vrot.slane %v2900, %v2915
  %v2918 = vunpack.c.l.s4 1966171168
  %v2919 = vunpack.c.0.s8 %v2918
  %v2920 = vlaneseq
  %v2921 = vshrl.u32 %v2920, 7
  %v2922 = vsub.s32 %v2919, %v2921
  %v2923 = vrot.slane %v2901, %v2922
  %v2925 = vunpack.c.l.s4 1966171168
  %v2926 = vunpack.c.0.s8 %v2925
  %v2927 = vlaneseq
  %v2928 = vshrl.u32 %v2927, 7
  %v2929 = vsub.s32 %v2926, %v2928
  %v2930 = vrot.slane %v2902, %v2929
  %v2931 = vcombine.high %v2909, %v2909
  %v2932 = vcombine.high %v2916, %v2916
  %v2933 = vcombine.high %v2923, %v2923
  %v2934 = vcombine.high %v2930, %v2930
  %2943 = vst [vmem:[%s6 + $0x5] sm:$0x1] %v2909
  %2944 = vst [vmem:[%s6 + $0xd] sm:$0x1] %v2923
  %2945 = vst [vmem:[%s6 + $0x15] sm:$0x1] %v2931
  %2946 = vst [vmem:[%s6 + $0x1d] sm:$0x1] %v2933
  %2947 = vst [vmem:[%s6 + $0x25] sm:$0x1] %v2916
  %2948 = vst [vmem:[%s6 + $0x2d] sm:$0x1] %v2930
  %2949 = vst [vmem:[%s6 + $0x35] sm:$0x1] %v2932
  %2950 = vst [vmem:[%s6 + $0x3d] sm:$0x1] %v2934
  %2951 = vmatprep.subr.mxu0 %v35
  %2952 = vmatpush1.msra.mxu0 %v34
  %2953 = vmatprep.subr.mxu0 %v39
  %2954 = vmatpush1.msra.mxu0 %v38
  %2955 = vmatprep.subr.mxu0 %v43
  %2956 = vmatpush1.msra.mxu0 %v42
  %2957 = vmatprep.subr.mxu0 %v47
  %2958 = vmatpush1.msra.mxu0 %v46
  %2959 = vmatprep.subr.mxu0 %v51
  %2960 = vmatpush1.msra.mxu0 %v50
  %2961 = vmatprep.subr.mxu0 %v55
  %2962 = vmatpush1.msra.mxu0 %v54
  %2963 = vmatprep.subr.mxu0 %v59
  %2964 = vmatpush1.msra.mxu0 %v58
  %2965 = vmatprep.subr.mxu0 %v63
  %2966 = vmatpush1.msra.mxu0 %v62
  %2967 = vmatprep.subr.mxu0 %v67
  %2968 = vmatpush1.msra.mxu0 %v66
  %2969 = vmatprep.subr.mxu0 %v71
  %2970 = vmatpush1.msra.mxu0 %v70
  %2971 = vmatprep.subr.mxu0 %v75
  %2972 = vmatpush1.msra.mxu0 %v74
  %2973 = vmatprep.subr.mxu0 %v79
  %2974 = vmatpush1.msra.mxu0 %v78
  %2975 = vmatprep.subr.mxu0 %v83
  %2976 = vmatpush1.msra.mxu0 %v82
  %2977 = vmatprep.subr.mxu0 %v87
  %2978 = vmatpush1.msra.mxu0 %v86
  %2979 = vmatprep.subr.mxu0 %v91
  %2980 = vmatpush1.msra.mxu0 %v90
  %2981 = vmatprep.subr.mxu0 %v95
  %2982 = vmatpush1.msra.mxu0 %v94
  %2983 = vmatprep.subr.mxu0 0.0
  %2984 = vmatpush1.msra.mxu0 0.0
  %2985 = vmatprep.subr.mxu0 0.0
  %2986 = vmatpush1.msra.mxu0 0.0
  %2987 = vmatprep.subr.mxu0 0.0
  %2988 = vmatpush1.msra.mxu0 0.0
  %2989 = vmatprep.subr.mxu0 0.0
  %2990 = vmatpush1.msra.mxu0 0.0
  %2991 = vmatprep.subr.mxu0 0.0
  %2992 = vmatpush1.msra.mxu0 0.0
  %2993 = vmatprep.subr.mxu0 0.0
  %2994 = vmatpush1.msra.mxu0 0.0
  %2995 = vmatprep.subr.mxu0 0.0
  %2996 = vmatpush1.msra.mxu0 0.0
  %2997 = vmatprep.subr.mxu0 0.0
  %2998 = vmatpush1.msra.mxu0 0.0
  %2999 = vmatprep.subr.mxu0 0.0
  %3000 = vmatpush1.msra.mxu0 0.0
  %3001 = vmatprep.subr.mxu0 0.0
  %3002 = vmatpush1.msra.mxu0 0.0
  %3003 = vmatprep.subr.mxu0 0.0
  %3004 = vmatpush1.msra.mxu0 0.0
  %3005 = vmatprep.subr.mxu0 0.0
  %3006 = vmatpush1.msra.mxu0 0.0
  %3007 = vmatprep.subr.mxu0 0.0
  %3008 = vmatpush1.msra.mxu0 0.0
  %3009 = vmatprep.subr.mxu0 0.0
  %3010 = vmatpush1.msra.mxu0 0.0
  %3011 = vmatprep.subr.mxu0 0.0
  %3012 = vmatpush1.msra.mxu0 0.0
  %3013 = vmatprep.subr.mxu0 0.0
  %3014 = vmatpush1.msra.mxu0 0.0
  %3015 = vmatprep.mubr.f32.mxu0 0.0
  %3016 = vmatmul.mubr.f32.gmra.mrb[0].mxu0 %v2884
  %v3017 = vpop.f32.mrb[0].mxu0
  %v3018 = vadd.f32 0.0, %v3017
  %v3019 = vpop.f32.mrb[0].mxu0
  %v3020 = vadd.f32 0.0, %v3019
  %3021 = vdwg.mxu0
  %3022 = vmatprep.subr.mxu0 %v37
  %3023 = vmatpush1.msra.mxu0 %v36
  %3024 = vmatprep.subr.mxu0 %v41
  %3025 = vmatpush1.msra.mxu0 %v40
  %3026 = vmatprep.subr.mxu0 %v45
  %3027 = vmatpush1.msra.mxu0 %v44
  %3028 = vmatprep.subr.mxu0 %v49
  %3029 = vmatpush1.msra.mxu0 %v48
  %3030 = vmatprep.subr.mxu0 %v53
  %3031 = vmatpush1.msra.mxu0 %v52
  %3032 = vmatprep.subr.mxu0 %v57
  %3033 = vmatpush1.msra.mxu0 %v56
  %3034 = vmatprep.subr.mxu0 %v61
  %3035 = vmatpush1.msra.mxu0 %v60
  %3036 = vmatprep.subr.mxu0 %v65
  %3037 = vmatpush1.msra.mxu0 %v64
  %3038 = vmatprep.subr.mxu0 %v69
  %3039 = vmatpush1.msra.mxu0 %v68
  %3040 = vmatprep.subr.mxu0 %v73
  %3041 = vmatpush1.msra.mxu0 %v72
  %3042 = vmatprep.subr.mxu0 %v77
  %3043 = vmatpush1.msra.mxu0 %v76
  %3044 = vmatprep.subr.mxu0 %v81
  %3045 = vmatpush1.msra.mxu0 %v80
  %3046 = vmatprep.subr.mxu0 %v85
  %3047 = vmatpush1.msra.mxu0 %v84
  %3048 = vmatprep.subr.mxu0 %v89
  %3049 = vmatpush1.msra.mxu0 %v88
  %3050 = vmatprep.subr.mxu0 %v93
  %3051 = vmatpush1.msra.mxu0 %v92
  %3052 = vmatprep.subr.mxu0 %v97
  %3053 = vmatpush1.msra.mxu0 %v96
  %3054 = vmatprep.subr.mxu0 0.0
  %3055 = vmatpush1.msra.mxu0 0.0
  %3056 = vmatprep.subr.mxu0 0.0
  %3057 = vmatpush1.msra.mxu0 0.0
  %3058 = vmatprep.subr.mxu0 0.0
  %3059 = vmatpush1.msra.mxu0 0.0
  %3060 = vmatprep.subr.mxu0 0.0
  %3061 = vmatpush1.msra.mxu0 0.0
  %3062 = vmatprep.subr.mxu0 0.0
  %3063 = vmatpush1.msra.mxu0 0.0
  %3064 = vmatprep.subr.mxu0 0.0
  %3065 = vmatpush1.msra.mxu0 0.0
  %3066 = vmatprep.subr.mxu0 0.0
  %3067 = vmatpush1.msra.mxu0 0.0
  %3068 = vmatprep.subr.mxu0 0.0
  %3069 = vmatpush1.msra.mxu0 0.0
  %3070 = vmatprep.subr.mxu0 0.0
  %3071 = vmatpush1.msra.mxu0 0.0
  %3072 = vmatprep.subr.mxu0 0.0
  %3073 = vmatpush1.msra.mxu0 0.0
  %3074 = vmatprep.subr.mxu0 0.0
  %3075 = vmatpush1.msra.mxu0 0.0
  %3076 = vmatprep.subr.mxu0 0.0
  %3077 = vmatpush1.msra.mxu0 0.0
  %3078 = vmatprep.subr.mxu0 0.0
  %3079 = vmatpush1.msra.mxu0 0.0
  %3080 = vmatprep.subr.mxu0 0.0
  %3081 = vmatpush1.msra.mxu0 0.0
  %3082 = vmatprep.subr.mxu0 0.0
  %3083 = vmatpush1.msra.mxu0 0.0
  %3084 = vmatprep.subr.mxu0 0.0
  %3085 = vmatpush1.msra.mxu0 0.0
  %3086 = vmatprep.mubr.f32.mxu0 0.0
  %3087 = vmatmul.mubr.f32.gmra.mrb[0].mxu0 %v2884
  %v3088 = vpop.f32.mrb[0].mxu0
  %v3089 = vadd.f32 0.0, %v3088
  %v3090 = vpop.f32.mrb[0].mxu0
  %v3091 = vadd.f32 0.0, %v3090
  %3092 = vdwg.mxu0
  %v3093 = vadd.f32 %v1284, %v3018
  %v3094 = vadd.f32 %v1286, %v3020
  %v3095 = vadd.f32 %v1355, %v3089
  %v3096 = vadd.f32 %v1357, %v3091
  %v3097 = vxor.u32 %v3093, 2147483648
  %v3098 = vmul.f32 %v3097, 1.442695
  %v3099 = vpow.pop %v3098
  %v3100 = vadd.f32 %v3099, 1.0
  %v3101 = vrcp.pop %v3100
  %v3102 = vmul.f32 1.0, %v3101
  %v3103 = vxor.u32 %v3094, 2147483648
  %v3104 = vmul.f32 %v3103, 1.442695
  %v3105 = vpow.pop %v3104
  %v3106 = vadd.f32 %v3105, 1.0
  %v3107 = vrcp.pop %v3106
  %v3108 = vmul.f32 1.0, %v3107
  %v3109 = vtanh.pop %v3095
  %v3110 = vxor.u32 %v3096, 2147483648
  %v3111 = vmul.f32 %v3110, 1.442695
  %v3112 = vpow.pop %v3111
  %v3113 = vadd.f32 %v3112, 1.0
  %v3114 = vrcp.pop %v3113
  %v3115 = vmul.f32 1.0, %v3114
  %v3116 = vmul.f32 %v3108, %v2882
  %v3117 = vmul.f32 %v3102, %v3109
  %v3118 = vadd.f32 %v3116, %v3117
  %v3119 = vtanh.pop %v3118
  %v3120 = vmul.f32 %v3115, %v3119
  %v3122 = vcombine.high %v3120, %v3120
  %v3124 = vunpack.c.l.s4 1966171168
  %v3125 = vunpack.c.0.s8 %v3124
  %v3126 = vlaneseq
  %v3127 = vshrl.u32 %v3126, 7
  %v3128 = vsub.s32 %v3125, %v3127
  %v3129 = vrot.slane %v3120, %v3128
  %v3131 = vunpack.c.l.s4 1966171168
  %v3132 = vunpack.c.0.s8 %v3131
  %v3133 = vlaneseq
  %v3134 = vshrl.u32 %v3133, 7
  %v3135 = vsub.s32 %v3132, %v3134
  %v3136 = vrot.slane %v3122, %v3135
  %v3137 = vcombine.high %v3129, %v3129
  %v3138 = vcombine.high %v3136, %v3136
  %v3140 = vunpack.c.l.s4 1966171168
  %v3141 = vunpack.c.0.s8 %v3140
  %v3142 = vlaneseq
  %v3143 = vshrl.u32 %v3142, 7
  %v3144 = vsub.s32 %v3141, %v3143
  %v3145 = vrot.slane %v3129, %v3144
  %v3147 = vunpack.c.l.s4 1966171168
  %v3148 = vunpack.c.0.s8 %v3147
  %v3149 = vlaneseq
  %v3150 = vshrl.u32 %v3149, 7
  %v3151 = vsub.s32 %v3148, %v3150
  %v3152 = vrot.slane %v3136, %v3151
  %v3154 = vunpack.c.l.s4 1966171168
  %v3155 = vunpack.c.0.s8 %v3154
  %v3156 = vlaneseq
  %v3157 = vshrl.u32 %v3156, 7
  %v3158 = vsub.s32 %v3155, %v3157
  %v3159 = vrot.slane %v3137, %v3158
  %v3161 = vunpack.c.l.s4 1966171168
  %v3162 = vunpack.c.0.s8 %v3161
  %v3163 = vlaneseq
  %v3164 = vshrl.u32 %v3163, 7
  %v3165 = vsub.s32 %v3162, %v3164
  %v3166 = vrot.slane %v3138, %v3165
  %v3167 = vcombine.high %v3145, %v3145
  %v3168 = vcombine.high %v3152, %v3152
  %v3169 = vcombine.high %v3159, %v3159
  %v3170 = vcombine.high %v3166, %v3166
  %3179 = vst [vmem:[%s6 + $0x6] sm:$0x1] %v3145
  %3180 = vst [vmem:[%s6 + $0xe] sm:$0x1] %v3159
  %3181 = vst [vmem:[%s6 + $0x16] sm:$0x1] %v3167
  %3182 = vst [vmem:[%s6 + $0x1e] sm:$0x1] %v3169
  %3183 = vst [vmem:[%s6 + $0x26] sm:$0x1] %v3152
  %3184 = vst [vmem:[%s6 + $0x2e] sm:$0x1] %v3166
  %3185 = vst [vmem:[%s6 + $0x36] sm:$0x1] %v3168
  %3186 = vst [vmem:[%s6 + $0x3e] sm:$0x1] %v3170
  %3187 = vmatprep.subr.mxu0 %v35
  %3188 = vmatpush1.msra.mxu0 %v34
  %3189 = vmatprep.subr.mxu0 %v39
  %3190 = vmatpush1.msra.mxu0 %v38
  %3191 = vmatprep.subr.mxu0 %v43
  %3192 = vmatpush1.msra.mxu0 %v42
  %3193 = vmatprep.subr.mxu0 %v47
  %3194 = vmatpush1.msra.mxu0 %v46
  %3195 = vmatprep.subr.mxu0 %v51
  %3196 = vmatpush1.msra.mxu0 %v50
  %3197 = vmatprep.subr.mxu0 %v55
  %3198 = vmatpush1.msra.mxu0 %v54
  %3199 = vmatprep.subr.mxu0 %v59
  %3200 = vmatpush1.msra.mxu0 %v58
  %3201 = vmatprep.subr.mxu0 %v63
  %3202 = vmatpush1.msra.mxu0 %v62
  %3203 = vmatprep.subr.mxu0 %v67
  %3204 = vmatpush1.msra.mxu0 %v66
  %3205 = vmatprep.subr.mxu0 %v71
  %3206 = vmatpush1.msra.mxu0 %v70
  %3207 = vmatprep.subr.mxu0 %v75
  %3208 = vmatpush1.msra.mxu0 %v74
  %3209 = vmatprep.subr.mxu0 %v79
  %3210 = vmatpush1.msra.mxu0 %v78
  %3211 = vmatprep.subr.mxu0 %v83
  %3212 = vmatpush1.msra.mxu0 %v82
  %3213 = vmatprep.subr.mxu0 %v87
  %3214 = vmatpush1.msra.mxu0 %v86
  %3215 = vmatprep.subr.mxu0 %v91
  %3216 = vmatpush1.msra.mxu0 %v90
  %3217 = vmatprep.subr.mxu0 %v95
  %3218 = vmatpush1.msra.mxu0 %v94
  %3219 = vmatprep.subr.mxu0 0.0
  %3220 = vmatpush1.msra.mxu0 0.0
  %3221 = vmatprep.subr.mxu0 0.0
  %3222 = vmatpush1.msra.mxu0 0.0
  %3223 = vmatprep.subr.mxu0 0.0
  %3224 = vmatpush1.msra.mxu0 0.0
  %3225 = vmatprep.subr.mxu0 0.0
  %3226 = vmatpush1.msra.mxu0 0.0
  %3227 = vmatprep.subr.mxu0 0.0
  %3228 = vmatpush1.msra.mxu0 0.0
  %3229 = vmatprep.subr.mxu0 0.0
  %3230 = vmatpush1.msra.mxu0 0.0
  %3231 = vmatprep.subr.mxu0 0.0
  %3232 = vmatpush1.msra.mxu0 0.0
  %3233 = vmatprep.subr.mxu0 0.0
  %3234 = vmatpush1.msra.mxu0 0.0
  %3235 = vmatprep.subr.mxu0 0.0
  %3236 = vmatpush1.msra.mxu0 0.0
  %3237 = vmatprep.subr.mxu0 0.0
  %3238 = vmatpush1.msra.mxu0 0.0
  %3239 = vmatprep.subr.mxu0 0.0
  %3240 = vmatpush1.msra.mxu0 0.0
  %3241 = vmatprep.subr.mxu0 0.0
  %3242 = vmatpush1.msra.mxu0 0.0
  %3243 = vmatprep.subr.mxu0 0.0
  %3244 = vmatpush1.msra.mxu0 0.0
  %3245 = vmatprep.subr.mxu0 0.0
  %3246 = vmatpush1.msra.mxu0 0.0
  %3247 = vmatprep.subr.mxu0 0.0
  %3248 = vmatpush1.msra.mxu0 0.0
  %3249 = vmatprep.subr.mxu0 0.0
  %3250 = vmatpush1.msra.mxu0 0.0
  %3251 = vmatprep.mubr.f32.mxu0 0.0
  %3252 = vmatmul.mubr.f32.gmra.mrb[0].mxu0 %v3120
  %v3253 = vpop.f32.mrb[0].mxu0
  %v3254 = vadd.f32 0.0, %v3253
  %v3255 = vpop.f32.mrb[0].mxu0
  %v3256 = vadd.f32 0.0, %v3255
  %3257 = vdwg.mxu0
  %3258 = vmatprep.subr.mxu0 %v37
  %3259 = vmatpush1.msra.mxu0 %v36
  %3260 = vmatprep.subr.mxu0 %v41
  %3261 = vmatpush1.msra.mxu0 %v40
  %3262 = vmatprep.subr.mxu0 %v45
  %3263 = vmatpush1.msra.mxu0 %v44
  %3264 = vmatprep.subr.mxu0 %v49
  %3265 = vmatpush1.msra.mxu0 %v48
  %3266 = vmatprep.subr.mxu0 %v53
  %3267 = vmatpush1.msra.mxu0 %v52
  %3268 = vmatprep.subr.mxu0 %v57
  %3269 = vmatpush1.msra.mxu0 %v56
  %3270 = vmatprep.subr.mxu0 %v61
  %3271 = vmatpush1.msra.mxu0 %v60
  %3272 = vmatprep.subr.mxu0 %v65
  %3273 = vmatpush1.msra.mxu0 %v64
  %3274 = vmatprep.subr.mxu0 %v69
  %3275 = vmatpush1.msra.mxu0 %v68
  %3276 = vmatprep.subr.mxu0 %v73
  %3277 = vmatpush1.msra.mxu0 %v72
  %3278 = vmatprep.subr.mxu0 %v77
  %3279 = vmatpush1.msra.mxu0 %v76
  %3280 = vmatprep.subr.mxu0 %v81
  %3281 = vmatpush1.msra.mxu0 %v80
  %3282 = vmatprep.subr.mxu0 %v85
  %3283 = vmatpush1.msra.mxu0 %v84
  %3284 = vmatprep.subr.mxu0 %v89
  %3285 = vmatpush1.msra.mxu0 %v88
  %3286 = vmatprep.subr.mxu0 %v93
  %3287 = vmatpush1.msra.mxu0 %v92
  %3288 = vmatprep.subr.mxu0 %v97
  %3289 = vmatpush1.msra.mxu0 %v96
  %3290 = vmatprep.subr.mxu0 0.0
  %3291 = vmatpush1.msra.mxu0 0.0
  %3292 = vmatprep.subr.mxu0 0.0
  %3293 = vmatpush1.msra.mxu0 0.0
  %3294 = vmatprep.subr.mxu0 0.0
  %3295 = vmatpush1.msra.mxu0 0.0
  %3296 = vmatprep.subr.mxu0 0.0
  %3297 = vmatpush1.msra.mxu0 0.0
  %3298 = vmatprep.subr.mxu0 0.0
  %3299 = vmatpush1.msra.mxu0 0.0
  %3300 = vmatprep.subr.mxu0 0.0
  %3301 = vmatpush1.msra.mxu0 0.0
  %3302 = vmatprep.subr.mxu0 0.0
  %3303 = vmatpush1.msra.mxu0 0.0
  %3304 = vmatprep.subr.mxu0 0.0
  %3305 = vmatpush1.msra.mxu0 0.0
  %3306 = vmatprep.subr.mxu0 0.0
  %3307 = vmatpush1.msra.mxu0 0.0
  %3308 = vmatprep.subr.mxu0 0.0
  %3309 = vmatpush1.msra.mxu0 0.0
  %3310 = vmatprep.subr.mxu0 0.0
  %3311 = vmatpush1.msra.mxu0 0.0
  %3312 = vmatprep.subr.mxu0 0.0
  %3313 = vmatpush1.msra.mxu0 0.0
  %3314 = vmatprep.subr.mxu0 0.0
  %3315 = vmatpush1.msra.mxu0 0.0
  %3316 = vmatprep.subr.mxu0 0.0
  %3317 = vmatpush1.msra.mxu0 0.0
  %3318 = vmatprep.subr.mxu0 0.0
  %3319 = vmatpush1.msra.mxu0 0.0
  %3320 = vmatprep.subr.mxu0 0.0
  %3321 = vmatpush1.msra.mxu0 0.0
  %3322 = vmatprep.mubr.f32.mxu0 0.0
  %3323 = vmatmul.mubr.f32.gmra.mrb[0].mxu0 %v3120
  %v3324 = vpop.f32.mrb[0].mxu0
  %v3325 = vadd.f32 0.0, %v3324
  %v3326 = vpop.f32.mrb[0].mxu0
  %v3327 = vadd.f32 0.0, %v3326
  %3328 = vdwg.mxu0
  %v3329 = vadd.f32 %v1458, %v3254
  %v3330 = vadd.f32 %v1460, %v3256
  %v3331 = vadd.f32 %v1529, %v3325
  %v3332 = vadd.f32 %v1531, %v3327
  %v3333 = vxor.u32 %v3329, 2147483648
  %v3334 = vmul.f32 %v3333, 1.442695
  %v3335 = vpow.pop %v3334
  %v3336 = vadd.f32 %v3335, 1.0
  %v3337 = vrcp.pop %v3336
  %v3338 = vmul.f32 1.0, %v3337
  %v3339 = vxor.u32 %v3330, 2147483648
  %v3340 = vmul.f32 %v3339, 1.442695
  %v3341 = vpow.pop %v3340
  %v3342 = vadd.f32 %v3341, 1.0
  %v3343 = vrcp.pop %v3342
  %v3344 = vmul.f32 1.0, %v3343
  %v3345 = vtanh.pop %v3331
  %v3346 = vxor.u32 %v3332, 2147483648
  %v3347 = vmul.f32 %v3346, 1.442695
  %v3348 = vpow.pop %v3347
  %v3349 = vadd.f32 %v3348, 1.0
  %v3350 = vrcp.pop %v3349
  %v3351 = vmul.f32 1.0, %v3350
  %v3352 = vmul.f32 %v3344, %v3118
  %v3353 = vmul.f32 %v3338, %v3345
  %v3354 = vadd.f32 %v3352, %v3353
  %v3355 = vtanh.pop %v3354
  %v3356 = vmul.f32 %v3351, %v3355
  %v3358 = vcombine.high %v3356, %v3356
  %v3360 = vunpack.c.l.s4 1966171168
  %v3361 = vunpack.c.0.s8 %v3360
  %v3362 = vlaneseq
  %v3363 = vshrl.u32 %v3362, 7
  %v3364 = vsub.s32 %v3361, %v3363
  %v3365 = vrot.slane %v3356, %v3364
  %v3367 = vunpack.c.l.s4 1966171168
  %v3368 = vunpack.c.0.s8 %v3367
  %v3369 = vlaneseq
  %v3370 = vshrl.u32 %v3369, 7
  %v3371 = vsub.s32 %v3368, %v3370
  %v3372 = vrot.slane %v3358, %v3371
  %v3373 = vcombine.high %v3365, %v3365
  %v3374 = vcombine.high %v3372, %v3372
  %v3376 = vunpack.c.l.s4 1966171168
  %v3377 = vunpack.c.0.s8 %v3376
  %v3378 = vlaneseq
  %v3379 = vshrl.u32 %v3378, 7
  %v3380 = vsub.s32 %v3377, %v3379
  %v3381 = vrot.slane %v3365, %v3380
  %v3383 = vunpack.c.l.s4 1966171168
  %v3384 = vunpack.c.0.s8 %v3383
  %v3385 = vlaneseq
  %v3386 = vshrl.u32 %v3385, 7
  %v3387 = vsub.s32 %v3384, %v3386
  %v3388 = vrot.slane %v3372, %v3387
  %v3390 = vunpack.c.l.s4 1966171168
  %v3391 = vunpack.c.0.s8 %v3390
  %v3392 = vlaneseq
  %v3393 = vshrl.u32 %v3392, 7
  %v3394 = vsub.s32 %v3391, %v3393
  %v3395 = vrot.slane %v3373, %v3394
  %v3397 = vunpack.c.l.s4 1966171168
  %v3398 = vunpack.c.0.s8 %v3397
  %v3399 = vlaneseq
  %v3400 = vshrl.u32 %v3399, 7
  %v3401 = vsub.s32 %v3398, %v3400
  %v3402 = vrot.slane %v3374, %v3401
  %v3403 = vcombine.high %v3381, %v3381
  %v3404 = vcombine.high %v3388, %v3388
  %v3405 = vcombine.high %v3395, %v3395
  %v3406 = vcombine.high %v3402, %v3402
  %3415 = vst [vmem:[%s6 + $0x7] sm:$0x1] %v3381
  %3416 = vst [vmem:[%s6 + $0xf] sm:$0x1] %v3395
  %3417 = vst [vmem:[%s6 + $0x17] sm:$0x1] %v3403
  %3418 = vst [vmem:[%s6 + $0x1f] sm:$0x1] %v3405
  %3419 = vst [vmem:[%s6 + $0x27] sm:$0x1] %v3388
  %3420 = vst [vmem:[%s6 + $0x2f] sm:$0x1] %v3402
  %3421 = vst [vmem:[%s6 + $0x37] sm:$0x1] %v3404
  %3422 = vst [vmem:[%s6 + $0x3f] sm:$0x1] %v3406
  %3423 = vst [vmem:[%s7] sm:$0xff] %v3356
  %3424 = vst [vmem:[%s8] sm:$0xff] %v3354
  // Predicated region
  $region26: #{stateful_model_forward.1} parent=0 // pred_check
    _
  $region27: #{stateful_model_forward.1} parent=0 // pred_check_branch
    %3426 = sbr.rel (0) target = $region29
  $region28: #{stateful_model_forward.1} parent=0 // pred_region
    _
  $region29: #{stateful_model_forward.1} parent=0 // pred_fallthru
    _
  // Predicated region
  $region30: #{stateful_model_forward.1} parent=0 // pred_check
    _
  $region31: #{stateful_model_forward.1} parent=0 // pred_check_branch
    %3428 = sbr.rel (0) target = $region33
  $region32: #{stateful_model_forward.1} parent=0 // pred_region
    _
  $region33: #{stateful_model_forward.1} parent=0 // pred_fallthru
    _
  // Predicated region
  $region34: #{stateful_model_forward.1} parent=0 // pred_check
    _
  $region35: #{stateful_model_forward.1} parent=0 // pred_check_branch
    %3430 = sbr.rel (0) target = $region37
  $region36: #{stateful_model_forward.1} parent=0 // pred_region
    _
  $region37: #{stateful_model_forward.1} parent=0 // pred_fallthru
    _
  // Predicated region
  $region38: #{stateful_model_forward.1} parent=0 // pred_check
    _
  $region39: #{stateful_model_forward.1} parent=0 // pred_check_branch
    %3432 = sbr.rel (0) target = $region41
  $region40: #{stateful_model_forward.1} parent=0 // pred_region
    _
  $region41: #{stateful_model_forward.1} parent=0 // pred_fallthru
    _
  // Predicated region
  $region42: #{stateful_model_forward.1} parent=0 // pred_check
    _
  $region43: #{stateful_model_forward.1} parent=0 // pred_check_branch
    %3434 = sbr.rel (0) target = $region45
  $region44: #{stateful_model_forward.1} parent=0 // pred_region
    _
  $region45: #{stateful_model_forward.1} parent=0 // pred_fallthru
    _
  // Predicated region
  $region46: #{stateful_model_forward.1} parent=0 // pred_check
    _
  $region47: #{stateful_model_forward.1} parent=0 // pred_check_branch
    %3436 = sbr.rel (0) target = $region49
  $region48: #{stateful_model_forward.1} parent=0 // pred_region
    _
  $region49: #{stateful_model_forward.1} parent=0 // pred_fallthru
    _

</llo_original>
